<compile_context>
chip_gen: v7x
topology: tpu7x:2x2x1
jax: 0.10.0
libtpu: 0.0.40
codegen_flags: <defaults>
</compile_context>

<pallas_src>
import jax
import jax.numpy as jnp
from jax import lax
from jax.experimental import pallas as pl
from jax.experimental.pallas import tpu as pltpu

# ----------------- small config consistent with the module -----------------
VOCAB = 16        # vocab_size
EMBED = 32        # embed_size
ENC_DIM = 32      # enc_dim
JOT_DIM = 32      # jot_dim
HIDDEN = 32       # hidden (dec_dim)
NUM_LAYERS = 2    # num_layers
N = 2             # batch
TI = 8            # encoder frames
U = 8             # To + 1 (blank padded at t=0)

# Batch chunking over the grid:
#   * v5e / v6e (single TensorCore): NUM_BATCH_BLOCKS = 1 -> the whole batch is
#     processed in one grid step, rows batched in sublanes.
#   * v7x (2 TensorCores): set NUM_BATCH_BLOCKS = 2 so each core gets N/2 rows.
NUM_BATCH_BLOCKS = 1
assert N % NUM_BATCH_BLOCKS == 0
NB = N // NUM_BATCH_BLOCKS           # batch rows per grid step (in sublanes)

assert EMBED == HIDDEN  # lets us stack per-layer LSTM input weights into one array


# --------------------------- fused decoder kernel ---------------------------
def fused_decoder_kernel(tgt_ref,                                    # (1, U*NB, 1) int32 (time-major ids)
                         enc_ref, embed_ref, wih_ref, whh_ref, b_ref,
                         wenc_ref, wdec_ref, bdec_ref, wout_ref,     # VMEM inputs
                         out_ref):                                   # (NB, TI*U, V)
    # ---------- embedding lookup as a one-hot MXU matmul (vector compare) ----------
    ids = tgt_ref[0]                                                 # (U*NB, 1), row = u*NB + nb
    col = lax.broadcasted_iota(jnp.int32, (U * NB, VOCAB), 1)
    onehot = (col == ids).astype(jnp.float32)                        # (U*NB, V)
    x_seq = jnp.dot(onehot, embed_ref[...],
                    preferred_element_type=jnp.float32)              # (U*NB, E), time-major

    # ---------- multi-layer LSTM: layer-major, hoisted input projection ----------
    # NB batch rows ride in sublanes; only h @ W_hh stays on the serial path.
    dec_bm = None
    for l in range(NUM_LAYERS):
        gates_x = (jnp.dot(x_seq, wih_ref[l],
                           preferred_element_type=jnp.float32)
                   + b_ref[l:l + 1, :])                              # (U*NB, 4H)
        w_hh = whh_ref[l]                                            # (H, 4H)
        h = jnp.zeros((NB, HIDDEN), jnp.float32)
        c = jnp.zeros((NB, HIDDEN), jnp.float32)
        hs = []
        # TODO(synk): hold w_hh resident in MXU weight registers across the U steps
        # (pltpu.matmul_push_rhs / matmul_acc_lhs / matmul_pop) once validated on all
        # targets; jnp.dot re-stages the (32,128) RHS every timestep.
        for t in range(U):                                           # statically unrolled recurrence
            gates = gates_x[t * NB:(t + 1) * NB, :] + jnp.dot(
                h, w_hh, preferred_element_type=jnp.float32)         # (NB, 4H)
            sig = jax.nn.sigmoid(gates)                              # full 128-lane EUP op
            tah = jnp.tanh(gates)                                    # full 128-lane EUP op
            i_g = sig[:, 0 * HIDDEN:1 * HIDDEN]
            f_g = sig[:, 1 * HIDDEN:2 * HIDDEN]
            g_g = tah[:, 2 * HIDDEN:3 * HIDDEN]
            o_g = sig[:, 3 * HIDDEN:4 * HIDDEN]
            c = f_g * c + i_g * g_g
            h = o_g * jnp.tanh(c)
            hs.append(h)                                             # stays in vregs
        if l < NUM_LAYERS - 1:
            x_seq = jnp.concatenate(hs, axis=0)                      # (U*NB, H) time-major
        else:
            dec_bm = jnp.stack(hs, axis=1)                           # (NB, U, H) batch-major

    # ---------- projections + joint: batched matmuls, one store ----------
    dec_p = (jnp.dot(dec_bm.reshape(NB * U, HIDDEN), wdec_ref[...],
                     preferred_element_type=jnp.float32)
             + bdec_ref[...]).reshape(NB, U, JOT_DIM)                # (NB, U, J)
    enc_p = jnp.dot(enc_ref[...].reshape(NB * TI, ENC_DIM), wenc_ref[...],
                    preferred_element_type=jnp.float32
                    ).reshape(NB, TI, JOT_DIM)                       # (NB, TI, J)
    add = enc_p[:, :, None, :] + dec_p[:, None, :, :]                # (NB, TI, U, J)
    act = jnp.tanh(add).reshape(NB * TI * U, JOT_DIM)                # (NB*TI*U, J)
    out = jnp.dot(act, wout_ref[...],
                  preferred_element_type=jnp.float32)                # (NB*TI*U, V)
    out_ref[...] = out.reshape(NB, TI * U, VOCAB)


# ------------------------------- wrapper ------------------------------------
def decoder_forward(enc_out, tgt_pad, p):
    # Time-major token ids per batch chunk: row = u*NB + nb  (layout plumbing done
    # host-side so the kernel needs no transposes/gathers).
    tgt_tm = (tgt_pad.astype(jnp.int32)
              .reshape(NUM_BATCH_BLOCKS, NB, U)
              .transpose(0, 2, 1)
              .reshape(NUM_BATCH_BLOCKS, U * NB, 1))

    flat = pl.pallas_call(
        fused_decoder_kernel,
        out_shape=jax.ShapeDtypeStruct((N, TI * U, VOCAB), jnp.float32),
        grid_spec=pltpu.PrefetchScalarGridSpec(
            num_scalar_prefetch=0,
            grid=(NUM_BATCH_BLOCKS,),
            in_specs=[
                pl.BlockSpec((1, U * NB, 1), lambda b: (b, 0, 0)),
                pl.BlockSpec((NB, TI, ENC_DIM), lambda b: (b, 0, 0)),
                pl.BlockSpec((VOCAB, EMBED), lambda b: (0, 0)),
                pl.BlockSpec((NUM_LAYERS, EMBED, 4 * HIDDEN), lambda b: (0, 0, 0)),
                pl.BlockSpec((NUM_LAYERS, HIDDEN, 4 * HIDDEN), lambda b: (0, 0, 0)),
                pl.BlockSpec((NUM_LAYERS, 4 * HIDDEN), lambda b: (0, 0)),
                pl.BlockSpec((ENC_DIM, JOT_DIM), lambda b: (0, 0)),
                pl.BlockSpec((HIDDEN, JOT_DIM), lambda b: (0, 0)),
                pl.BlockSpec((1, JOT_DIM), lambda b: (0, 0)),
                pl.BlockSpec((JOT_DIM, VOCAB), lambda b: (0, 0)),
            ],
            out_specs=pl.BlockSpec((NB, TI * U, VOCAB), lambda b: (b, 0, 0)),
        ),
        compiler_params=pltpu.CompilerParams(dimension_semantics=("parallel",)),
    )(tgt_tm, enc_out,
      p["embed"], p["wih_t"], p["whh_t"], p["b_lstm"],
      p["wenc_t"], p["wdec_t"], p["bdec"], p["wout_t"])
    return flat.reshape(N, TI, U, VOCAB)


# --------------------------- parameter init ---------------------------------
def init_params(key):
    s = 0.1
    ks = jax.random.split(key, 6)
    embed = jax.random.normal(ks[0], (VOCAB, EMBED), jnp.float32) * s
    w_enc = jax.random.normal(ks[1], (JOT_DIM, ENC_DIM), jnp.float32) * s   # Linear(enc_dim, jot, bias=False)
    w_dec = jax.random.normal(ks[2], (JOT_DIM, HIDDEN), jnp.float32) * s    # Linear(hidden, jot)
    b_dec = jax.random.normal(ks[3], (JOT_DIM,), jnp.float32) * s
    w_out = jax.random.normal(ks[4], (VOCAB, JOT_DIM), jnp.float32) * s     # Linear(jot, vocab, bias=False)

    wih_t, whh_t, b_lstm = [], [], []
    kl = jax.random.split(ks[5], NUM_LAYERS * 4)
    for l in range(NUM_LAYERS):
        in_dim = EMBED if l == 0 else HIDDEN
        w_ih = jax.random.normal(kl[4 * l + 0], (4 * HIDDEN, in_dim), jnp.float32) * s
        w_hh = jax.random.normal(kl[4 * l + 1], (4 * HIDDEN, HIDDEN), jnp.float32) * s
        b_ih = jax.random.normal(kl[4 * l + 2], (4 * HIDDEN,), jnp.float32) * s
        b_hh = jax.random.normal(kl[4 * l + 3], (4 * HIDDEN,), jnp.float32) * s
        wih_t.append(w_ih.T)
        whh_t.append(w_hh.T)
        b_lstm.append(b_ih + b_hh)

    return dict(
        embed=embed,
        wenc_t=w_enc.T, wdec_t=w_dec.T, bdec=b_dec[None, :], wout_t=w_out.T,
        wih_t=jnp.stack(wih_t), whh_t=jnp.stack(whh_t), b_lstm=jnp.stack(b_lstm),
    )


# ------------------------- pure-JAX reference --------------------------------
def reference_forward(enc_out, tgt_pad, p):
    hp = jax.lax.Precision.HIGHEST
    emb = p["embed"][tgt_pad]                                # (N, U, E)
    h = jnp.zeros((NUM_LAYERS, N, HIDDEN), jnp.float32)
    c = jnp.zeros((NUM_LAYERS, N, HIDDEN), jnp.float32)
    dec_steps = []
    for t in range(U):
        inp = emb[:, t, :]
        h_new, c_new = [], []
        for l in range(NUM_LAYERS):
            gates = (jnp.dot(inp, p["wih_t"][l], precision=hp)
                     + jnp.dot(h[l], p["whh_t"][l], precision=hp)
                     + p["b_lstm"][l])
            i_g = jax.nn.sigmoid(gates[:, :HIDDEN])
            f_g = jax.nn.sigmoid(gates[:, HIDDEN:2 * HIDDEN])
            g_g = jnp.tanh(gates[:, 2 * HIDDEN:3 * HIDDEN])
            o_g = jax.nn.sigmoid(gates[:, 3 * HIDDEN:])
            cl = f_g * c[l] + i_g * g_g
            hl = o_g * jnp.tanh(cl)
            h_new.append(hl)
            c_new.append(cl)
            inp = hl
        h = jnp.stack(h_new)
        c = jnp.stack(c_new)
        dec_steps.append(inp)
    dec = jnp.stack(dec_steps, axis=1)                       # (N, U, H)
    enc_p = jnp.dot(enc_out, p["wenc_t"], precision=hp)      # (N, TI, J)
    dec_p = jnp.dot(dec, p["wdec_t"], precision=hp) + p["bdec"][0]
    add = enc_p[:, :, None, :] + dec_p[:, None, :, :]        # (N, TI, U, J)
    return jnp.dot(jnp.tanh(add), p["wout_t"], precision=hp)  # (N, TI, U, V)


# TODO(synk): the incremental `pred()` single-step API (stateful hidden carried
# across calls) is not implemented; only forward().

if __name__ == "__main__":
    key = jax.random.PRNGKey(0)
    k_p, k_enc, k_tgt = jax.random.split(key, 3)
    params = init_params(k_p)
    enc_out = jax.random.normal(k_enc, (N, TI, ENC_DIM), jnp.float32)
    tgt_pad = jax.random.randint(k_tgt, (N, U), 0, VOCAB)

    out = decoder_forward(enc_out, tgt_pad, params)
    out = jax.block_until_ready(out)

    ref = reference_forward(enc_out, tgt_pad, params)
    assert out.shape == (N, TI, U, VOCAB), out.shape
    assert jnp.allclose(out, ref, atol=1e-3, rtol=1e-3), float(jnp.max(jnp.abs(out - ref)))
    print("KERNEL_OK")
</pallas_src>

<mosaic_0001>
module attributes {stable_mosaic.version = 11 : i64} {
  func.func @fused_decoder_kernel(%arg0: i32, %arg1: memref<1x16x1xi32, #tpu.memory_space<vmem>>, %arg2: memref<2x8x32xf32, #tpu.memory_space<vmem>>, %arg3: memref<16x32xf32, #tpu.memory_space<vmem>>, %arg4: memref<2x32x128xf32, #tpu.memory_space<vmem>>, %arg5: memref<2x32x128xf32, #tpu.memory_space<vmem>>, %arg6: memref<2x128xf32, #tpu.memory_space<vmem>>, %arg7: memref<32x32xf32, #tpu.memory_space<vmem>>, %arg8: memref<32x32xf32, #tpu.memory_space<vmem>>, %arg9: memref<1x32xf32, #tpu.memory_space<vmem>>, %arg10: memref<32x16xf32, #tpu.memory_space<vmem>>, %arg11: memref<2x64x16xf32, #tpu.memory_space<vmem>>) attributes {dimension_semantics = [#tpu.dimension_semantics<parallel>], iteration_bounds = array<i64: 1>, scalar_prefetch = 0 : i64, scratch_operands = 0 : i64, tpu.core_type = #tpu.core_type<tc>, window_params = [{transform_indices = @transform_0, window_bounds = array<i64: 1, 16, 1>}, {transform_indices = @transform_1, window_bounds = array<i64: 2, 8, 32>}, {pipeline_mode = #tpu.pipeline_mode<synchronous>, transform_indices = @transform_2, window_bounds = array<i64: 16, 32>}, {pipeline_mode = #tpu.pipeline_mode<synchronous>, transform_indices = @transform_3, window_bounds = array<i64: 2, 32, 128>}, {pipeline_mode = #tpu.pipeline_mode<synchronous>, transform_indices = @transform_4, window_bounds = array<i64: 2, 32, 128>}, {pipeline_mode = #tpu.pipeline_mode<synchronous>, transform_indices = @transform_5, window_bounds = array<i64: 2, 128>}, {pipeline_mode = #tpu.pipeline_mode<synchronous>, transform_indices = @transform_6, window_bounds = array<i64: 32, 32>}, {pipeline_mode = #tpu.pipeline_mode<synchronous>, transform_indices = @transform_7, window_bounds = array<i64: 32, 32>}, {pipeline_mode = #tpu.pipeline_mode<synchronous>, transform_indices = @transform_8, window_bounds = array<i64: 1, 32>}, {pipeline_mode = #tpu.pipeline_mode<synchronous>, transform_indices = @transform_9, window_bounds = array<i64: 32, 16>}, {transform_indices = @transform_10, window_bounds = array<i64: 2, 64, 16>}]} {
    %c0 = arith.constant 0 : index
    %c0_0 = arith.constant 0 : index
    %c0_1 = arith.constant 0 : index
    %0 = vector.load %arg1[%c0, %c0_0, %c0_1] : memref<1x16x1xi32, #tpu.memory_space<vmem>>, vector<1x16x1xi32>
    %1 = vector.shape_cast %0 : vector<1x16x1xi32> to vector<16x1xi32>
    %2 = tpu.iota {dimensions = array<i32: 1>} : vector<16x16xi32>
    %3 = vector.broadcast %1 : vector<16x1xi32> to vector<16x16xi32>
    %4 = arith.cmpi eq, %2, %3 : vector<16x16xi32>
    %5 = arith.extui %4 : vector<16x16xi1> to vector<16x16xi32>
    %6 = arith.sitofp %5 : vector<16x16xi32> to vector<16x16xf32>
    %c0_2 = arith.constant 0 : index
    %c0_3 = arith.constant 0 : index
    %7 = vector.load %arg3[%c0_2, %c0_3] : memref<16x32xf32, #tpu.memory_space<vmem>>, vector<16x32xf32>
    %cst = arith.constant dense<0.000000e+00> : vector<16x32xf32>
    %8 = tpu.matmul %6, %7, %cst {dimension_numbers = #tpu.dot_dimension_numbers<[1], [0], [0], [1], [0, 0, 1, 1], [], []>} : vector<16x16xf32>, vector<16x32xf32>, vector<16x32xf32> -> vector<16x32xf32>
    %c0_4 = arith.constant 0 : index
    %c0_5 = arith.constant 0 : index
    %c0_6 = arith.constant 0 : index
    %9 = vector.load %arg4[%c0_4, %c0_5, %c0_6] : memref<2x32x128xf32, #tpu.memory_space<vmem>>, vector<1x32x128xf32>
    %10 = vector.shape_cast %9 : vector<1x32x128xf32> to vector<32x128xf32>
    %cst_7 = arith.constant dense<0.000000e+00> : vector<16x128xf32>
    %11 = tpu.matmul %8, %10, %cst_7 {dimension_numbers = #tpu.dot_dimension_numbers<[1], [0], [0], [1], [0, 0, 1, 1], [], []>} : vector<16x32xf32>, vector<32x128xf32>, vector<16x128xf32> -> vector<16x128xf32>
    %c0_8 = arith.constant 0 : index
    %c0_9 = arith.constant 0 : index
    %12 = vector.load %arg6[%c0_8, %c0_9] : memref<2x128xf32, #tpu.memory_space<vmem>>, vector<1x128xf32>
    %13 = vector.broadcast %12 : vector<1x128xf32> to vector<16x128xf32>
    %14 = arith.addf %11, %13 : vector<16x128xf32>
    %c0_10 = arith.constant 0 : index
    %c0_11 = arith.constant 0 : index
    %c0_12 = arith.constant 0 : index
    %15 = vector.load %arg5[%c0_10, %c0_11, %c0_12] : memref<2x32x128xf32, #tpu.memory_space<vmem>>, vector<1x32x128xf32>
    %16 = vector.shape_cast %15 : vector<1x32x128xf32> to vector<32x128xf32>
    %cst_13 = arith.constant 0.000000e+00 : f32
    %17 = vector.broadcast %cst_13 : f32 to vector<2x32xf32>
    %cst_14 = arith.constant 0.000000e+00 : f32
    %18 = vector.broadcast %cst_14 : f32 to vector<2x32xf32>
    %19 = vector.extract_strided_slice %14 {offsets = [0, 0], sizes = [2, 128], strides = [1, 1]} : vector<16x128xf32> to vector<2x128xf32>
    %cst_15 = arith.constant dense<0.000000e+00> : vector<2x128xf32>
    %20 = tpu.matmul %17, %16, %cst_15 {dimension_numbers = #tpu.dot_dimension_numbers<[1], [0], [0], [1], [0, 0, 1, 1], [], []>} : vector<2x32xf32>, vector<32x128xf32>, vector<2x128xf32> -> vector<2x128xf32>
    %21 = arith.addf %19, %20 : vector<2x128xf32>
    %22 = arith.negf %21 : vector<2x128xf32>
    %23 = math.exp %22 : vector<2x128xf32>
    %cst_16 = arith.constant 1.000000e+00 : f32
    %24 = vector.broadcast %cst_16 : f32 to vector<2x128xf32>
    %25 = arith.addf %24, %23 : vector<2x128xf32>
    %26 = arith.divf %24, %25 : vector<2x128xf32>
    %27 = math.tanh %21 : vector<2x128xf32>
    %28 = vector.extract_strided_slice %26 {offsets = [0, 0], sizes = [2, 32], strides = [1, 1]} : vector<2x128xf32> to vector<2x32xf32>
    %29 = vector.extract_strided_slice %26 {offsets = [0, 32], sizes = [2, 32], strides = [1, 1]} : vector<2x128xf32> to vector<2x32xf32>
    %30 = vector.extract_strided_slice %27 {offsets = [0, 64], sizes = [2, 32], strides = [1, 1]} : vector<2x128xf32> to vector<2x32xf32>
    %31 = vector.extract_strided_slice %26 {offsets = [0, 96], sizes = [2, 32], strides = [1, 1]} : vector<2x128xf32> to vector<2x32xf32>
    %32 = arith.mulf %29, %18 : vector<2x32xf32>
    %33 = arith.mulf %28, %30 : vector<2x32xf32>
    %34 = arith.addf %32, %33 : vector<2x32xf32>
    %35 = math.tanh %34 : vector<2x32xf32>
    %36 = arith.mulf %31, %35 : vector<2x32xf32>
    %37 = vector.extract_strided_slice %14 {offsets = [2, 0], sizes = [2, 128], strides = [1, 1]} : vector<16x128xf32> to vector<2x128xf32>
    %cst_17 = arith.constant dense<0.000000e+00> : vector<2x128xf32>
    %38 = tpu.matmul %36, %16, %cst_17 {dimension_numbers = #tpu.dot_dimension_numbers<[1], [0], [0], [1], [0, 0, 1, 1], [], []>} : vector<2x32xf32>, vector<32x128xf32>, vector<2x128xf32> -> vector<2x128xf32>
    %39 = arith.addf %37, %38 : vector<2x128xf32>
    %40 = arith.negf %39 : vector<2x128xf32>
    %41 = math.exp %40 : vector<2x128xf32>
    %cst_18 = arith.constant 1.000000e+00 : f32
    %42 = vector.broadcast %cst_18 : f32 to vector<2x128xf32>
    %43 = arith.addf %42, %41 : vector<2x128xf32>
    %44 = arith.divf %42, %43 : vector<2x128xf32>
    %45 = math.tanh %39 : vector<2x128xf32>
    %46 = vector.extract_strided_slice %44 {offsets = [0, 0], sizes = [2, 32], strides = [1, 1]} : vector<2x128xf32> to vector<2x32xf32>
    %47 = vector.extract_strided_slice %44 {offsets = [0, 32], sizes = [2, 32], strides = [1, 1]} : vector<2x128xf32> to vector<2x32xf32>
    %48 = vector.extract_strided_slice %45 {offsets = [0, 64], sizes = [2, 32], strides = [1, 1]} : vector<2x128xf32> to vector<2x32xf32>
    %49 = vector.extract_strided_slice %44 {offsets = [0, 96], sizes = [2, 32], strides = [1, 1]} : vector<2x128xf32> to vector<2x32xf32>
    %50 = arith.mulf %47, %34 : vector<2x32xf32>
    %51 = arith.mulf %46, %48 : vector<2x32xf32>
    %52 = arith.addf %50, %51 : vector<2x32xf32>
    %53 = math.tanh %52 : vector<2x32xf32>
    %54 = arith.mulf %49, %53 : vector<2x32xf32>
    %55 = vector.extract_strided_slice %14 {offsets = [4, 0], sizes = [2, 128], strides = [1, 1]} : vector<16x128xf32> to vector<2x128xf32>
    %cst_19 = arith.constant dense<0.000000e+00> : vector<2x128xf32>
    %56 = tpu.matmul %54, %16, %cst_19 {dimension_numbers = #tpu.dot_dimension_numbers<[1], [0], [0], [1], [0, 0, 1, 1], [], []>} : vector<2x32xf32>, vector<32x128xf32>, vector<2x128xf32> -> vector<2x128xf32>
    %57 = arith.addf %55, %56 : vector<2x128xf32>
    %58 = arith.negf %57 : vector<2x128xf32>
    %59 = math.exp %58 : vector<2x128xf32>
    %cst_20 = arith.constant 1.000000e+00 : f32
    %60 = vector.broadcast %cst_20 : f32 to vector<2x128xf32>
    %61 = arith.addf %60, %59 : vector<2x128xf32>
    %62 = arith.divf %60, %61 : vector<2x128xf32>
    %63 = math.tanh %57 : vector<2x128xf32>
    %64 = vector.extract_strided_slice %62 {offsets = [0, 0], sizes = [2, 32], strides = [1, 1]} : vector<2x128xf32> to vector<2x32xf32>
    %65 = vector.extract_strided_slice %62 {offsets = [0, 32], sizes = [2, 32], strides = [1, 1]} : vector<2x128xf32> to vector<2x32xf32>
    %66 = vector.extract_strided_slice %63 {offsets = [0, 64], sizes = [2, 32], strides = [1, 1]} : vector<2x128xf32> to vector<2x32xf32>
    %67 = vector.extract_strided_slice %62 {offsets = [0, 96], sizes = [2, 32], strides = [1, 1]} : vector<2x128xf32> to vector<2x32xf32>
    %68 = arith.mulf %65, %52 : vector<2x32xf32>
    %69 = arith.mulf %64, %66 : vector<2x32xf32>
    %70 = arith.addf %68, %69 : vector<2x32xf32>
    %71 = math.tanh %70 : vector<2x32xf32>
    %72 = arith.mulf %67, %71 : vector<2x32xf32>
    %73 = vector.extract_strided_slice %14 {offsets = [6, 0], sizes = [2, 128], strides = [1, 1]} : vector<16x128xf32> to vector<2x128xf32>
    %cst_21 = arith.constant dense<0.000000e+00> : vector<2x128xf32>
    %74 = tpu.matmul %72, %16, %cst_21 {dimension_numbers = #tpu.dot_dimension_numbers<[1], [0], [0], [1], [0, 0, 1, 1], [], []>} : vector<2x32xf32>, vector<32x128xf32>, vector<2x128xf32> -> vector<2x128xf32>
    %75 = arith.addf %73, %74 : vector<2x128xf32>
    %76 = arith.negf %75 : vector<2x128xf32>
    %77 = math.exp %76 : vector<2x128xf32>
    %cst_22 = arith.constant 1.000000e+00 : f32
    %78 = vector.broadcast %cst_22 : f32 to vector<2x128xf32>
    %79 = arith.addf %78, %77 : vector<2x128xf32>
    %80 = arith.divf %78, %79 : vector<2x128xf32>
    %81 = math.tanh %75 : vector<2x128xf32>
    %82 = vector.extract_strided_slice %80 {offsets = [0, 0], sizes = [2, 32], strides = [1, 1]} : vector<2x128xf32> to vector<2x32xf32>
    %83 = vector.extract_strided_slice %80 {offsets = [0, 32], sizes = [2, 32], strides = [1, 1]} : vector<2x128xf32> to vector<2x32xf32>
    %84 = vector.extract_strided_slice %81 {offsets = [0, 64], sizes = [2, 32], strides = [1, 1]} : vector<2x128xf32> to vector<2x32xf32>
    %85 = vector.extract_strided_slice %80 {offsets = [0, 96], sizes = [2, 32], strides = [1, 1]} : vector<2x128xf32> to vector<2x32xf32>
    %86 = arith.mulf %83, %70 : vector<2x32xf32>
    %87 = arith.mulf %82, %84 : vector<2x32xf32>
    %88 = arith.addf %86, %87 : vector<2x32xf32>
    %89 = math.tanh %88 : vector<2x32xf32>
    %90 = arith.mulf %85, %89 : vector<2x32xf32>
    %91 = vector.extract_strided_slice %14 {offsets = [8, 0], sizes = [2, 128], strides = [1, 1]} : vector<16x128xf32> to vector<2x128xf32>
    %cst_23 = arith.constant dense<0.000000e+00> : vector<2x128xf32>
    %92 = tpu.matmul %90, %16, %cst_23 {dimension_numbers = #tpu.dot_dimension_numbers<[1], [0], [0], [1], [0, 0, 1, 1], [], []>} : vector<2x32xf32>, vector<32x128xf32>, vector<2x128xf32> -> vector<2x128xf32>
    %93 = arith.addf %91, %92 : vector<2x128xf32>
    %94 = arith.negf %93 : vector<2x128xf32>
    %95 = math.exp %94 : vector<2x128xf32>
    %cst_24 = arith.constant 1.000000e+00 : f32
    %96 = vector.broadcast %cst_24 : f32 to vector<2x128xf32>
    %97 = arith.addf %96, %95 : vector<2x128xf32>
    %98 = arith.divf %96, %97 : vector<2x128xf32>
    %99 = math.tanh %93 : vector<2x128xf32>
    %100 = vector.extract_strided_slice %98 {offsets = [0, 0], sizes = [2, 32], strides = [1, 1]} : vector<2x128xf32> to vector<2x32xf32>
    %101 = vector.extract_strided_slice %98 {offsets = [0, 32], sizes = [2, 32], strides = [1, 1]} : vector<2x128xf32> to vector<2x32xf32>
    %102 = vector.extract_strided_slice %99 {offsets = [0, 64], sizes = [2, 32], strides = [1, 1]} : vector<2x128xf32> to vector<2x32xf32>
    %103 = vector.extract_strided_slice %98 {offsets = [0, 96], sizes = [2, 32], strides = [1, 1]} : vector<2x128xf32> to vector<2x32xf32>
    %104 = arith.mulf %101, %88 : vector<2x32xf32>
    %105 = arith.mulf %100, %102 : vector<2x32xf32>
    %106 = arith.addf %104, %105 : vector<2x32xf32>
    %107 = math.tanh %106 : vector<2x32xf32>
    %108 = arith.mulf %103, %107 : vector<2x32xf32>
    %109 = vector.extract_strided_slice %14 {offsets = [10, 0], sizes = [2, 128], strides = [1, 1]} : vector<16x128xf32> to vector<2x128xf32>
    %cst_25 = arith.constant dense<0.000000e+00> : vector<2x128xf32>
    %110 = tpu.matmul %108, %16, %cst_25 {dimension_numbers = #tpu.dot_dimension_numbers<[1], [0], [0], [1], [0, 0, 1, 1], [], []>} : vector<2x32xf32>, vector<32x128xf32>, vector<2x128xf32> -> vector<2x128xf32>
    %111 = arith.addf %109, %110 : vector<2x128xf32>
    %112 = arith.negf %111 : vector<2x128xf32>
    %113 = math.exp %112 : vector<2x128xf32>
    %cst_26 = arith.constant 1.000000e+00 : f32
    %114 = vector.broadcast %cst_26 : f32 to vector<2x128xf32>
    %115 = arith.addf %114, %113 : vector<2x128xf32>
    %116 = arith.divf %114, %115 : vector<2x128xf32>
    %117 = math.tanh %111 : vector<2x128xf32>
    %118 = vector.extract_strided_slice %116 {offsets = [0, 0], sizes = [2, 32], strides = [1, 1]} : vector<2x128xf32> to vector<2x32xf32>
    %119 = vector.extract_strided_slice %116 {offsets = [0, 32], sizes = [2, 32], strides = [1, 1]} : vector<2x128xf32> to vector<2x32xf32>
    %120 = vector.extract_strided_slice %117 {offsets = [0, 64], sizes = [2, 32], strides = [1, 1]} : vector<2x128xf32> to vector<2x32xf32>
    %121 = vector.extract_strided_slice %116 {offsets = [0, 96], sizes = [2, 32], strides = [1, 1]} : vector<2x128xf32> to vector<2x32xf32>
    %122 = arith.mulf %119, %106 : vector<2x32xf32>
    %123 = arith.mulf %118, %120 : vector<2x32xf32>
    %124 = arith.addf %122, %123 : vector<2x32xf32>
    %125 = math.tanh %124 : vector<2x32xf32>
    %126 = arith.mulf %121, %125 : vector<2x32xf32>
    %127 = vector.extract_strided_slice %14 {offsets = [12, 0], sizes = [2, 128], strides = [1, 1]} : vector<16x128xf32> to vector<2x128xf32>
    %cst_27 = arith.constant dense<0.000000e+00> : vector<2x128xf32>
    %128 = tpu.matmul %126, %16, %cst_27 {dimension_numbers = #tpu.dot_dimension_numbers<[1], [0], [0], [1], [0, 0, 1, 1], [], []>} : vector<2x32xf32>, vector<32x128xf32>, vector<2x128xf32> -> vector<2x128xf32>
    %129 = arith.addf %127, %128 : vector<2x128xf32>
    %130 = arith.negf %129 : vector<2x128xf32>
    %131 = math.exp %130 : vector<2x128xf32>
    %cst_28 = arith.constant 1.000000e+00 : f32
    %132 = vector.broadcast %cst_28 : f32 to vector<2x128xf32>
    %133 = arith.addf %132, %131 : vector<2x128xf32>
    %134 = arith.divf %132, %133 : vector<2x128xf32>
    %135 = math.tanh %129 : vector<2x128xf32>
    %136 = vector.extract_strided_slice %134 {offsets = [0, 0], sizes = [2, 32], strides = [1, 1]} : vector<2x128xf32> to vector<2x32xf32>
    %137 = vector.extract_strided_slice %134 {offsets = [0, 32], sizes = [2, 32], strides = [1, 1]} : vector<2x128xf32> to vector<2x32xf32>
    %138 = vector.extract_strided_slice %135 {offsets = [0, 64], sizes = [2, 32], strides = [1, 1]} : vector<2x128xf32> to vector<2x32xf32>
    %139 = vector.extract_strided_slice %134 {offsets = [0, 96], sizes = [2, 32], strides = [1, 1]} : vector<2x128xf32> to vector<2x32xf32>
    %140 = arith.mulf %137, %124 : vector<2x32xf32>
    %141 = arith.mulf %136, %138 : vector<2x32xf32>
    %142 = arith.addf %140, %141 : vector<2x32xf32>
    %143 = math.tanh %142 : vector<2x32xf32>
    %144 = arith.mulf %139, %143 : vector<2x32xf32>
    %145 = vector.extract_strided_slice %14 {offsets = [14, 0], sizes = [2, 128], strides = [1, 1]} : vector<16x128xf32> to vector<2x128xf32>
    %cst_29 = arith.constant dense<0.000000e+00> : vector<2x128xf32>
    %146 = tpu.matmul %144, %16, %cst_29 {dimension_numbers = #tpu.dot_dimension_numbers<[1], [0], [0], [1], [0, 0, 1, 1], [], []>} : vector<2x32xf32>, vector<32x128xf32>, vector<2x128xf32> -> vector<2x128xf32>
    %147 = arith.addf %145, %146 : vector<2x128xf32>
    %148 = arith.negf %147 : vector<2x128xf32>
    %149 = math.exp %148 : vector<2x128xf32>
    %cst_30 = arith.constant 1.000000e+00 : f32
    %150 = vector.broadcast %cst_30 : f32 to vector<2x128xf32>
    %151 = arith.addf %150, %149 : vector<2x128xf32>
    %152 = arith.divf %150, %151 : vector<2x128xf32>
    %153 = math.tanh %147 : vector<2x128xf32>
    %154 = vector.extract_strided_slice %152 {offsets = [0, 0], sizes = [2, 32], strides = [1, 1]} : vector<2x128xf32> to vector<2x32xf32>
    %155 = vector.extract_strided_slice %152 {offsets = [0, 32], sizes = [2, 32], strides = [1, 1]} : vector<2x128xf32> to vector<2x32xf32>
    %156 = vector.extract_strided_slice %153 {offsets = [0, 64], sizes = [2, 32], strides = [1, 1]} : vector<2x128xf32> to vector<2x32xf32>
    %157 = vector.extract_strided_slice %152 {offsets = [0, 96], sizes = [2, 32], strides = [1, 1]} : vector<2x128xf32> to vector<2x32xf32>
    %158 = arith.mulf %155, %142 : vector<2x32xf32>
    %159 = arith.mulf %154, %156 : vector<2x32xf32>
    %160 = arith.addf %158, %159 : vector<2x32xf32>
    %161 = math.tanh %160 : vector<2x32xf32>
    %162 = arith.mulf %157, %161 : vector<2x32xf32>
    %163 = tpu.concatenate %36, %54, %72, %90, %108, %126, %144, %162 in 0 : vector<2x32xf32>, vector<2x32xf32>, vector<2x32xf32>, vector<2x32xf32>, vector<2x32xf32>, vector<2x32xf32>, vector<2x32xf32>, vector<2x32xf32> -> vector<16x32xf32>
    %c1 = arith.constant 1 : index
    %c0_31 = arith.constant 0 : index
    %c0_32 = arith.constant 0 : index
    %164 = vector.load %arg4[%c1, %c0_31, %c0_32] : memref<2x32x128xf32, #tpu.memory_space<vmem>>, vector<1x32x128xf32>
    %165 = vector.shape_cast %164 : vector<1x32x128xf32> to vector<32x128xf32>
    %cst_33 = arith.constant dense<0.000000e+00> : vector<16x128xf32>
    %166 = tpu.matmul %163, %165, %cst_33 {dimension_numbers = #tpu.dot_dimension_numbers<[1], [0], [0], [1], [0, 0, 1, 1], [], []>} : vector<16x32xf32>, vector<32x128xf32>, vector<16x128xf32> -> vector<16x128xf32>
    %c1_34 = arith.constant 1 : index
    %c0_35 = arith.constant 0 : index
    %167 = vector.load %arg6[%c1_34, %c0_35] : memref<2x128xf32, #tpu.memory_space<vmem>>, vector<1x128xf32>
    %168 = vector.broadcast %167 : vector<1x128xf32> to vector<16x128xf32>
    %169 = arith.addf %166, %168 : vector<16x128xf32>
    %c1_36 = arith.constant 1 : index
    %c0_37 = arith.constant 0 : index
    %c0_38 = arith.constant 0 : index
    %170 = vector.load %arg5[%c1_36, %c0_37, %c0_38] : memref<2x32x128xf32, #tpu.memory_space<vmem>>, vector<1x32x128xf32>
    %171 = vector.shape_cast %170 : vector<1x32x128xf32> to vector<32x128xf32>
    %cst_39 = arith.constant 0.000000e+00 : f32
    %172 = vector.broadcast %cst_39 : f32 to vector<2x32xf32>
    %cst_40 = arith.constant 0.000000e+00 : f32
    %173 = vector.broadcast %cst_40 : f32 to vector<2x32xf32>
    %174 = vector.extract_strided_slice %169 {offsets = [0, 0], sizes = [2, 128], strides = [1, 1]} : vector<16x128xf32> to vector<2x128xf32>
    %cst_41 = arith.constant dense<0.000000e+00> : vector<2x128xf32>
    %175 = tpu.matmul %172, %171, %cst_41 {dimension_numbers = #tpu.dot_dimension_numbers<[1], [0], [0], [1], [0, 0, 1, 1], [], []>} : vector<2x32xf32>, vector<32x128xf32>, vector<2x128xf32> -> vector<2x128xf32>
    %176 = arith.addf %174, %175 : vector<2x128xf32>
    %177 = arith.negf %176 : vector<2x128xf32>
    %178 = math.exp %177 : vector<2x128xf32>
    %cst_42 = arith.constant 1.000000e+00 : f32
    %179 = vector.broadcast %cst_42 : f32 to vector<2x128xf32>
    %180 = arith.addf %179, %178 : vector<2x128xf32>
    %181 = arith.divf %179, %180 : vector<2x128xf32>
    %182 = math.tanh %176 : vector<2x128xf32>
    %183 = vector.extract_strided_slice %181 {offsets = [0, 0], sizes = [2, 32], strides = [1, 1]} : vector<2x128xf32> to vector<2x32xf32>
    %184 = vector.extract_strided_slice %181 {offsets = [0, 32], sizes = [2, 32], strides = [1, 1]} : vector<2x128xf32> to vector<2x32xf32>
    %185 = vector.extract_strided_slice %182 {offsets = [0, 64], sizes = [2, 32], strides = [1, 1]} : vector<2x128xf32> to vector<2x32xf32>
    %186 = vector.extract_strided_slice %181 {offsets = [0, 96], sizes = [2, 32], strides = [1, 1]} : vector<2x128xf32> to vector<2x32xf32>
    %187 = arith.mulf %184, %173 : vector<2x32xf32>
    %188 = arith.mulf %183, %185 : vector<2x32xf32>
    %189 = arith.addf %187, %188 : vector<2x32xf32>
    %190 = math.tanh %189 : vector<2x32xf32>
    %191 = arith.mulf %186, %190 : vector<2x32xf32>
    %192 = vector.extract_strided_slice %169 {offsets = [2, 0], sizes = [2, 128], strides = [1, 1]} : vector<16x128xf32> to vector<2x128xf32>
    %cst_43 = arith.constant dense<0.000000e+00> : vector<2x128xf32>
    %193 = tpu.matmul %191, %171, %cst_43 {dimension_numbers = #tpu.dot_dimension_numbers<[1], [0], [0], [1], [0, 0, 1, 1], [], []>} : vector<2x32xf32>, vector<32x128xf32>, vector<2x128xf32> -> vector<2x128xf32>
    %194 = arith.addf %192, %193 : vector<2x128xf32>
    %195 = arith.negf %194 : vector<2x128xf32>
    %196 = math.exp %195 : vector<2x128xf32>
    %cst_44 = arith.constant 1.000000e+00 : f32
    %197 = vector.broadcast %cst_44 : f32 to vector<2x128xf32>
    %198 = arith.addf %197, %196 : vector<2x128xf32>
    %199 = arith.divf %197, %198 : vector<2x128xf32>
    %200 = math.tanh %194 : vector<2x128xf32>
    %201 = vector.extract_strided_slice %199 {offsets = [0, 0], sizes = [2, 32], strides = [1, 1]} : vector<2x128xf32> to vector<2x32xf32>
    %202 = vector.extract_strided_slice %199 {offsets = [0, 32], sizes = [2, 32], strides = [1, 1]} : vector<2x128xf32> to vector<2x32xf32>
    %203 = vector.extract_strided_slice %200 {offsets = [0, 64], sizes = [2, 32], strides = [1, 1]} : vector<2x128xf32> to vector<2x32xf32>
    %204 = vector.extract_strided_slice %199 {offsets = [0, 96], sizes = [2, 32], strides = [1, 1]} : vector<2x128xf32> to vector<2x32xf32>
    %205 = arith.mulf %202, %189 : vector<2x32xf32>
    %206 = arith.mulf %201, %203 : vector<2x32xf32>
    %207 = arith.addf %205, %206 : vector<2x32xf32>
    %208 = math.tanh %207 : vector<2x32xf32>
    %209 = arith.mulf %204, %208 : vector<2x32xf32>
    %210 = vector.extract_strided_slice %169 {offsets = [4, 0], sizes = [2, 128], strides = [1, 1]} : vector<16x128xf32> to vector<2x128xf32>
    %cst_45 = arith.constant dense<0.000000e+00> : vector<2x128xf32>
    %211 = tpu.matmul %209, %171, %cst_45 {dimension_numbers = #tpu.dot_dimension_numbers<[1], [0], [0], [1], [0, 0, 1, 1], [], []>} : vector<2x32xf32>, vector<32x128xf32>, vector<2x128xf32> -> vector<2x128xf32>
    %212 = arith.addf %210, %211 : vector<2x128xf32>
    %213 = arith.negf %212 : vector<2x128xf32>
    %214 = math.exp %213 : vector<2x128xf32>
    %cst_46 = arith.constant 1.000000e+00 : f32
    %215 = vector.broadcast %cst_46 : f32 to vector<2x128xf32>
    %216 = arith.addf %215, %214 : vector<2x128xf32>
    %217 = arith.divf %215, %216 : vector<2x128xf32>
    %218 = math.tanh %212 : vector<2x128xf32>
    %219 = vector.extract_strided_slice %217 {offsets = [0, 0], sizes = [2, 32], strides = [1, 1]} : vector<2x128xf32> to vector<2x32xf32>
    %220 = vector.extract_strided_slice %217 {offsets = [0, 32], sizes = [2, 32], strides = [1, 1]} : vector<2x128xf32> to vector<2x32xf32>
    %221 = vector.extract_strided_slice %218 {offsets = [0, 64], sizes = [2, 32], strides = [1, 1]} : vector<2x128xf32> to vector<2x32xf32>
    %222 = vector.extract_strided_slice %217 {offsets = [0, 96], sizes = [2, 32], strides = [1, 1]} : vector<2x128xf32> to vector<2x32xf32>
    %223 = arith.mulf %220, %207 : vector<2x32xf32>
    %224 = arith.mulf %219, %221 : vector<2x32xf32>
    %225 = arith.addf %223, %224 : vector<2x32xf32>
    %226 = math.tanh %225 : vector<2x32xf32>
    %227 = arith.mulf %222, %226 : vector<2x32xf32>
    %228 = vector.extract_strided_slice %169 {offsets = [6, 0], sizes = [2, 128], strides = [1, 1]} : vector<16x128xf32> to vector<2x128xf32>
    %cst_47 = arith.constant dense<0.000000e+00> : vector<2x128xf32>
    %229 = tpu.matmul %227, %171, %cst_47 {dimension_numbers = #tpu.dot_dimension_numbers<[1], [0], [0], [1], [0, 0, 1, 1], [], []>} : vector<2x32xf32>, vector<32x128xf32>, vector<2x128xf32> -> vector<2x128xf32>
    %230 = arith.addf %228, %229 : vector<2x128xf32>
    %231 = arith.negf %230 : vector<2x128xf32>
    %232 = math.exp %231 : vector<2x128xf32>
    %cst_48 = arith.constant 1.000000e+00 : f32
    %233 = vector.broadcast %cst_48 : f32 to vector<2x128xf32>
    %234 = arith.addf %233, %232 : vector<2x128xf32>
    %235 = arith.divf %233, %234 : vector<2x128xf32>
    %236 = math.tanh %230 : vector<2x128xf32>
    %237 = vector.extract_strided_slice %235 {offsets = [0, 0], sizes = [2, 32], strides = [1, 1]} : vector<2x128xf32> to vector<2x32xf32>
    %238 = vector.extract_strided_slice %235 {offsets = [0, 32], sizes = [2, 32], strides = [1, 1]} : vector<2x128xf32> to vector<2x32xf32>
    %239 = vector.extract_strided_slice %236 {offsets = [0, 64], sizes = [2, 32], strides = [1, 1]} : vector<2x128xf32> to vector<2x32xf32>
    %240 = vector.extract_strided_slice %235 {offsets = [0, 96], sizes = [2, 32], strides = [1, 1]} : vector<2x128xf32> to vector<2x32xf32>
    %241 = arith.mulf %238, %225 : vector<2x32xf32>
    %242 = arith.mulf %237, %239 : vector<2x32xf32>
    %243 = arith.addf %241, %242 : vector<2x32xf32>
    %244 = math.tanh %243 : vector<2x32xf32>
    %245 = arith.mulf %240, %244 : vector<2x32xf32>
    %246 = vector.extract_strided_slice %169 {offsets = [8, 0], sizes = [2, 128], strides = [1, 1]} : vector<16x128xf32> to vector<2x128xf32>
    %cst_49 = arith.constant dense<0.000000e+00> : vector<2x128xf32>
    %247 = tpu.matmul %245, %171, %cst_49 {dimension_numbers = #tpu.dot_dimension_numbers<[1], [0], [0], [1], [0, 0, 1, 1], [], []>} : vector<2x32xf32>, vector<32x128xf32>, vector<2x128xf32> -> vector<2x128xf32>
    %248 = arith.addf %246, %247 : vector<2x128xf32>
    %249 = arith.negf %248 : vector<2x128xf32>
    %250 = math.exp %249 : vector<2x128xf32>
    %cst_50 = arith.constant 1.000000e+00 : f32
    %251 = vector.broadcast %cst_50 : f32 to vector<2x128xf32>
    %252 = arith.addf %251, %250 : vector<2x128xf32>
    %253 = arith.divf %251, %252 : vector<2x128xf32>
    %254 = math.tanh %248 : vector<2x128xf32>
    %255 = vector.extract_strided_slice %253 {offsets = [0, 0], sizes = [2, 32], strides = [1, 1]} : vector<2x128xf32> to vector<2x32xf32>
    %256 = vector.extract_strided_slice %253 {offsets = [0, 32], sizes = [2, 32], strides = [1, 1]} : vector<2x128xf32> to vector<2x32xf32>
    %257 = vector.extract_strided_slice %254 {offsets = [0, 64], sizes = [2, 32], strides = [1, 1]} : vector<2x128xf32> to vector<2x32xf32>
    %258 = vector.extract_strided_slice %253 {offsets = [0, 96], sizes = [2, 32], strides = [1, 1]} : vector<2x128xf32> to vector<2x32xf32>
    %259 = arith.mulf %256, %243 : vector<2x32xf32>
    %260 = arith.mulf %255, %257 : vector<2x32xf32>
    %261 = arith.addf %259, %260 : vector<2x32xf32>
    %262 = math.tanh %261 : vector<2x32xf32>
    %263 = arith.mulf %258, %262 : vector<2x32xf32>
    %264 = vector.extract_strided_slice %169 {offsets = [10, 0], sizes = [2, 128], strides = [1, 1]} : vector<16x128xf32> to vector<2x128xf32>
    %cst_51 = arith.constant dense<0.000000e+00> : vector<2x128xf32>
    %265 = tpu.matmul %263, %171, %cst_51 {dimension_numbers = #tpu.dot_dimension_numbers<[1], [0], [0], [1], [0, 0, 1, 1], [], []>} : vector<2x32xf32>, vector<32x128xf32>, vector<2x128xf32> -> vector<2x128xf32>
    %266 = arith.addf %264, %265 : vector<2x128xf32>
    %267 = arith.negf %266 : vector<2x128xf32>
    %268 = math.exp %267 : vector<2x128xf32>
    %cst_52 = arith.constant 1.000000e+00 : f32
    %269 = vector.broadcast %cst_52 : f32 to vector<2x128xf32>
    %270 = arith.addf %269, %268 : vector<2x128xf32>
    %271 = arith.divf %269, %270 : vector<2x128xf32>
    %272 = math.tanh %266 : vector<2x128xf32>
    %273 = vector.extract_strided_slice %271 {offsets = [0, 0], sizes = [2, 32], strides = [1, 1]} : vector<2x128xf32> to vector<2x32xf32>
    %274 = vector.extract_strided_slice %271 {offsets = [0, 32], sizes = [2, 32], strides = [1, 1]} : vector<2x128xf32> to vector<2x32xf32>
    %275 = vector.extract_strided_slice %272 {offsets = [0, 64], sizes = [2, 32], strides = [1, 1]} : vector<2x128xf32> to vector<2x32xf32>
    %276 = vector.extract_strided_slice %271 {offsets = [0, 96], sizes = [2, 32], strides = [1, 1]} : vector<2x128xf32> to vector<2x32xf32>
    %277 = arith.mulf %274, %261 : vector<2x32xf32>
    %278 = arith.mulf %273, %275 : vector<2x32xf32>
    %279 = arith.addf %277, %278 : vector<2x32xf32>
    %280 = math.tanh %279 : vector<2x32xf32>
    %281 = arith.mulf %276, %280 : vector<2x32xf32>
    %282 = vector.extract_strided_slice %169 {offsets = [12, 0], sizes = [2, 128], strides = [1, 1]} : vector<16x128xf32> to vector<2x128xf32>
    %cst_53 = arith.constant dense<0.000000e+00> : vector<2x128xf32>
    %283 = tpu.matmul %281, %171, %cst_53 {dimension_numbers = #tpu.dot_dimension_numbers<[1], [0], [0], [1], [0, 0, 1, 1], [], []>} : vector<2x32xf32>, vector<32x128xf32>, vector<2x128xf32> -> vector<2x128xf32>
    %284 = arith.addf %282, %283 : vector<2x128xf32>
    %285 = arith.negf %284 : vector<2x128xf32>
    %286 = math.exp %285 : vector<2x128xf32>
    %cst_54 = arith.constant 1.000000e+00 : f32
    %287 = vector.broadcast %cst_54 : f32 to vector<2x128xf32>
    %288 = arith.addf %287, %286 : vector<2x128xf32>
    %289 = arith.divf %287, %288 : vector<2x128xf32>
    %290 = math.tanh %284 : vector<2x128xf32>
    %291 = vector.extract_strided_slice %289 {offsets = [0, 0], sizes = [2, 32], strides = [1, 1]} : vector<2x128xf32> to vector<2x32xf32>
    %292 = vector.extract_strided_slice %289 {offsets = [0, 32], sizes = [2, 32], strides = [1, 1]} : vector<2x128xf32> to vector<2x32xf32>
    %293 = vector.extract_strided_slice %290 {offsets = [0, 64], sizes = [2, 32], strides = [1, 1]} : vector<2x128xf32> to vector<2x32xf32>
    %294 = vector.extract_strided_slice %289 {offsets = [0, 96], sizes = [2, 32], strides = [1, 1]} : vector<2x128xf32> to vector<2x32xf32>
    %295 = arith.mulf %292, %279 : vector<2x32xf32>
    %296 = arith.mulf %291, %293 : vector<2x32xf32>
    %297 = arith.addf %295, %296 : vector<2x32xf32>
    %298 = math.tanh %297 : vector<2x32xf32>
    %299 = arith.mulf %294, %298 : vector<2x32xf32>
    %300 = vector.extract_strided_slice %169 {offsets = [14, 0], sizes = [2, 128], strides = [1, 1]} : vector<16x128xf32> to vector<2x128xf32>
    %cst_55 = arith.constant dense<0.000000e+00> : vector<2x128xf32>
    %301 = tpu.matmul %299, %171, %cst_55 {dimension_numbers = #tpu.dot_dimension_numbers<[1], [0], [0], [1], [0, 0, 1, 1], [], []>} : vector<2x32xf32>, vector<32x128xf32>, vector<2x128xf32> -> vector<2x128xf32>
    %302 = arith.addf %300, %301 : vector<2x128xf32>
    %303 = arith.negf %302 : vector<2x128xf32>
    %304 = math.exp %303 : vector<2x128xf32>
    %cst_56 = arith.constant 1.000000e+00 : f32
    %305 = vector.broadcast %cst_56 : f32 to vector<2x128xf32>
    %306 = arith.addf %305, %304 : vector<2x128xf32>
    %307 = arith.divf %305, %306 : vector<2x128xf32>
    %308 = math.tanh %302 : vector<2x128xf32>
    %309 = vector.extract_strided_slice %307 {offsets = [0, 0], sizes = [2, 32], strides = [1, 1]} : vector<2x128xf32> to vector<2x32xf32>
    %310 = vector.extract_strided_slice %307 {offsets = [0, 32], sizes = [2, 32], strides = [1, 1]} : vector<2x128xf32> to vector<2x32xf32>
    %311 = vector.extract_strided_slice %308 {offsets = [0, 64], sizes = [2, 32], strides = [1, 1]} : vector<2x128xf32> to vector<2x32xf32>
    %312 = vector.extract_strided_slice %307 {offsets = [0, 96], sizes = [2, 32], strides = [1, 1]} : vector<2x128xf32> to vector<2x32xf32>
    %313 = arith.mulf %310, %297 : vector<2x32xf32>
    %314 = arith.mulf %309, %311 : vector<2x32xf32>
    %315 = arith.addf %313, %314 : vector<2x32xf32>
    %316 = math.tanh %315 : vector<2x32xf32>
    %317 = arith.mulf %312, %316 : vector<2x32xf32>
    %318 = vector.shape_cast %191 : vector<2x32xf32> to vector<2x1x32xf32>
    %319 = vector.shape_cast %209 : vector<2x32xf32> to vector<2x1x32xf32>
    %320 = vector.shape_cast %227 : vector<2x32xf32> to vector<2x1x32xf32>
    %321 = vector.shape_cast %245 : vector<2x32xf32> to vector<2x1x32xf32>
    %322 = vector.shape_cast %263 : vector<2x32xf32> to vector<2x1x32xf32>
    %323 = vector.shape_cast %281 : vector<2x32xf32> to vector<2x1x32xf32>
    %324 = vector.shape_cast %299 : vector<2x32xf32> to vector<2x1x32xf32>
    %325 = vector.shape_cast %317 : vector<2x32xf32> to vector<2x1x32xf32>
    %326 = tpu.concatenate %318, %319, %320, %321, %322, %323, %324, %325 in 1 : vector<2x1x32xf32>, vector<2x1x32xf32>, vector<2x1x32xf32>, vector<2x1x32xf32>, vector<2x1x32xf32>, vector<2x1x32xf32>, vector<2x1x32xf32>, vector<2x1x32xf32> -> vector<2x8x32xf32>
    %327 = vector.shape_cast %326 : vector<2x8x32xf32> to vector<16x32xf32>
    %c0_57 = arith.constant 0 : index
    %c0_58 = arith.constant 0 : index
    %328 = vector.load %arg8[%c0_57, %c0_58] : memref<32x32xf32, #tpu.memory_space<vmem>>, vector<32x32xf32>
    %cst_59 = arith.constant dense<0.000000e+00> : vector<16x32xf32>
    %329 = tpu.matmul %327, %328, %cst_59 {dimension_numbers = #tpu.dot_dimension_numbers<[1], [0], [0], [1], [0, 0, 1, 1], [], []>} : vector<16x32xf32>, vector<32x32xf32>, vector<16x32xf32> -> vector<16x32xf32>
    %c0_60 = arith.constant 0 : index
    %c0_61 = arith.constant 0 : index
    %330 = vector.load %arg9[%c0_60, %c0_61] : memref<1x32xf32, #tpu.memory_space<vmem>>, vector<1x32xf32>
    %331 = vector.broadcast %330 : vector<1x32xf32> to vector<16x32xf32>
    %332 = arith.addf %329, %331 : vector<16x32xf32>
    %333 = vector.shape_cast %332 : vector<16x32xf32> to vector<2x8x32xf32>
    %c0_62 = arith.constant 0 : index
    %c0_63 = arith.constant 0 : index
    %c0_64 = arith.constant 0 : index
    %334 = vector.load %arg2[%c0_62, %c0_63, %c0_64] : memref<2x8x32xf32, #tpu.memory_space<vmem>>, vector<2x8x32xf32>
    %335 = vector.shape_cast %334 : vector<2x8x32xf32> to vector<16x32xf32>
    %c0_65 = arith.constant 0 : index
    %c0_66 = arith.constant 0 : index
    %336 = vector.load %arg7[%c0_65, %c0_66] : memref<32x32xf32, #tpu.memory_space<vmem>>, vector<32x32xf32>
    %cst_67 = arith.constant dense<0.000000e+00> : vector<16x32xf32>
    %337 = tpu.matmul %335, %336, %cst_67 {dimension_numbers = #tpu.dot_dimension_numbers<[1], [0], [0], [1], [0, 0, 1, 1], [], []>} : vector<16x32xf32>, vector<32x32xf32>, vector<16x32xf32> -> vector<16x32xf32>
    %338 = vector.shape_cast %337 : vector<16x32xf32> to vector<2x8x32xf32>
    %339 = vector.shape_cast %338 : vector<2x8x32xf32> to vector<2x8x1x32xf32>
    %340 = vector.shape_cast %333 : vector<2x8x32xf32> to vector<2x1x8x32xf32>
    %341 = vector.broadcast %339 : vector<2x8x1x32xf32> to vector<2x8x8x32xf32>
    %342 = vector.broadcast %340 : vector<2x1x8x32xf32> to vector<2x8x8x32xf32>
    %343 = arith.addf %341, %342 : vector<2x8x8x32xf32>
    %344 = math.tanh %343 : vector<2x8x8x32xf32>
    %345 = vector.shape_cast %344 : vector<2x8x8x32xf32> to vector<128x32xf32>
    %c0_68 = arith.constant 0 : index
    %c0_69 = arith.constant 0 : index
    %346 = vector.load %arg10[%c0_68, %c0_69] : memref<32x16xf32, #tpu.memory_space<vmem>>, vector<32x16xf32>
    %cst_70 = arith.constant dense<0.000000e+00> : vector<128x16xf32>
    %347 = tpu.matmul %345, %346, %cst_70 {dimension_numbers = #tpu.dot_dimension_numbers<[1], [0], [0], [1], [0, 0, 1, 1], [], []>} : vector<128x32xf32>, vector<32x16xf32>, vector<128x16xf32> -> vector<128x16xf32>
    %348 = vector.shape_cast %347 : vector<128x16xf32> to vector<2x64x16xf32>
    %c0_71 = arith.constant 0 : index
    %c0_72 = arith.constant 0 : index
    %c0_73 = arith.constant 0 : index
    %349 = vector.load %arg11[%c0_71, %c0_72, %c0_73] : memref<2x64x16xf32, #tpu.memory_space<vmem>>, vector<2x64x16xf32>
    tpu.vector_store %arg11[%c0_71, %c0_72, %c0_73], %348 {strides = array<i32>} : memref<2x64x16xf32, #tpu.memory_space<vmem>>, vector<2x64x16xf32>,
    return
  }
  func.func @transform_0(%arg0: i32) -> (i32, i32, i32) {
    %c0_i32 = arith.constant 0 : i32
    %c0_i32_0 = arith.constant 0 : i32
    %c0_i32_1 = arith.constant 0 : i32
    return %arg0, %c0_i32, %c0_i32_0 : i32, i32, i32
  }
  func.func @transform_1(%arg0: i32) -> (i32, i32, i32) {
    %c0_i32 = arith.constant 0 : i32
    %c0_i32_0 = arith.constant 0 : i32
    %c0_i32_1 = arith.constant 0 : i32
    return %arg0, %c0_i32, %c0_i32_0 : i32, i32, i32
  }
  func.func @transform_2(%arg0: i32) -> (i32, i32) {
    %c0_i32 = arith.constant 0 : i32
    %c0_i32_0 = arith.constant 0 : i32
    %c0_i32_1 = arith.constant 0 : i32
    return %c0_i32, %c0_i32_0 : i32, i32
  }
  func.func @transform_3(%arg0: i32) -> (i32, i32, i32) {
    %c0_i32 = arith.constant 0 : i32
    %c0_i32_0 = arith.constant 0 : i32
    %c0_i32_1 = arith.constant 0 : i32
    %c0_i32_2 = arith.constant 0 : i32
    return %c0_i32, %c0_i32_0, %c0_i32_1 : i32, i32, i32
  }
  func.func @transform_4(%arg0: i32) -> (i32, i32, i32) {
    %c0_i32 = arith.constant 0 : i32
    %c0_i32_0 = arith.constant 0 : i32
    %c0_i32_1 = arith.constant 0 : i32
    %c0_i32_2 = arith.constant 0 : i32
    return %c0_i32, %c0_i32_0, %c0_i32_1 : i32, i32, i32
  }
  func.func @transform_5(%arg0: i32) -> (i32, i32) {
    %c0_i32 = arith.constant 0 : i32
    %c0_i32_0 = arith.constant 0 : i32
    %c0_i32_1 = arith.constant 0 : i32
    return %c0_i32, %c0_i32_0 : i32, i32
  }
  func.func @transform_6(%arg0: i32) -> (i32, i32) {
    %c0_i32 = arith.constant 0 : i32
    %c0_i32_0 = arith.constant 0 : i32
    %c0_i32_1 = arith.constant 0 : i32
    return %c0_i32, %c0_i32_0 : i32, i32
  }
  func.func @transform_7(%arg0: i32) -> (i32, i32) {
    %c0_i32 = arith.constant 0 : i32
    %c0_i32_0 = arith.constant 0 : i32
    %c0_i32_1 = arith.constant 0 : i32
    return %c0_i32, %c0_i32_0 : i32, i32
  }
  func.func @transform_8(%arg0: i32) -> (i32, i32) {
    %c0_i32 = arith.constant 0 : i32
    %c0_i32_0 = arith.constant 0 : i32
    %c0_i32_1 = arith.constant 0 : i32
    return %c0_i32, %c0_i32_0 : i32, i32
  }
  func.func @transform_9(%arg0: i32) -> (i32, i32) {
    %c0_i32 = arith.constant 0 : i32
    %c0_i32_0 = arith.constant 0 : i32
    %c0_i32_1 = arith.constant 0 : i32
    return %c0_i32, %c0_i32_0 : i32, i32
  }
  func.func @transform_10(%arg0: i32) -> (i32, i32, i32) {
    %c0_i32 = arith.constant 0 : i32
    %c0_i32_0 = arith.constant 0 : i32
    %c0_i32_1 = arith.constant 0 : i32
    return %arg0, %c0_i32, %c0_i32_0 : i32, i32, i32
  }
}

</mosaic_0001>

<llo_original>
// kernel: tpu_custom_call.1
$region0: #{tpu_custom_call.1}
  #allocation0 [shape = 'u32[]', space=smem, size = 0x4, offset = 0x4, fixed_abs, tag = 'smem constant byte address 0x4 - core index']
  #allocation1 [shape = 'u32[144,128]{1,0:T(1,128)}', space=vmem, size = 0x12000, scoped, tag = 'internal scratch']
  %s0 = inlined_call_operand.vmem [shape: s32[1,16,1], index: 0, kind: input, shape index: {}]
  %s1 = inlined_call_operand.hbm [shape: f32[2,8,32], index: 1, kind: input, shape index: {}]
  %s2 = inlined_call_operand.hbm [shape: f32[16,32], index: 2, kind: input, shape index: {}]
  %s3 = inlined_call_operand.vmem [shape: f32[2,32,128], index: 3, kind: input, shape index: {}]
  %s4 = inlined_call_operand.hbm [shape: f32[2,32,128], index: 4, kind: input, shape index: {}]
  %s5 = inlined_call_operand.vmem [shape: f32[2,128], index: 5, kind: input, shape index: {}]
  %s6 = inlined_call_operand.hbm [shape: f32[32,32], index: 6, kind: input, shape index: {}]
  %s7 = inlined_call_operand.hbm [shape: f32[32,32], index: 7, kind: input, shape index: {}]
  %s8 = inlined_call_operand.vmem [shape: f32[1,32], index: 8, kind: input, shape index: {}]
  %s9 = inlined_call_operand.vmem [shape: f32[32,16], index: 9, kind: input, shape index: {}]
  %s10 = inlined_call_operand.vmem [shape: f32[2,64,16], index: 10, kind: output, shape index: {}]
  %s11 = sld [smem:[#allocation0]]
  $region70: #{tpu_custom_call.1} parent=0
    _
  %s13 = ssub.s32 1, %s11
  %s14 = scalar_select 0, %s13, %s11
  $region1: #{tpu_custom_call.1} parent=0
    #allocation2 [shape = 'u8[8192]{0}', space=vmem, size = 0x2000, scoped, tag = 'input window, operand 1, single buffered']
    #allocation3 [shape = 's32[1]{0}', space=sflag, size = 0x4, scoped, tag = 'scoped memory for tpu_custom_call.1']
    #allocation4 [shape = 'u8[8192]{0}', space=vmem, size = 0x2000, scoped, tag = 'input window, operand 2, single buffered']
    #allocation5 [shape = 's32[1]{0}', space=sflag, size = 0x4, scoped, tag = 'scoped memory for tpu_custom_call.1']
    #allocation6 [shape = 'u8[32768]{0}', space=vmem, size = 0x8000, scoped, tag = 'input window, operand 4, single buffered']
    #allocation7 [shape = 'u8[16384]{0}', space=vmem, size = 0x4000, scoped, tag = 'input window, operand 6, single buffered']
    #allocation8 [shape = 's32[1]{0}', space=sflag, size = 0x4, scoped, tag = 'scoped memory for tpu_custom_call.1']
    #allocation9 [shape = 'u8[16384]{0}', space=vmem, size = 0x4000, scoped, tag = 'input window, operand 7, single buffered']
    %15 = vsyncpa [#allocation3], 0
    %16 = vsyncpa [#allocation5], 0
    %17 = vsyncpa [#allocation8], 0
    // Predicated region
    $region2: #{tpu_custom_call.1} parent=1 // pred_check
      _
    $region3: #{tpu_custom_call.1} parent=1 // pred_check_branch
      %19 = sbr.rel (0) target = $region5
    $region4: #{tpu_custom_call.1} parent=1 // pred_region
      _
    $region5: #{tpu_custom_call.1} parent=1 // pred_fallthru
      _
    // Predicated region
    $region6: #{tpu_custom_call.1} parent=1 // pred_check
      _
    $region7: #{tpu_custom_call.1} parent=1 // pred_check_branch
      %21 = sbr.rel (0) target = $region9
    $region8: #{tpu_custom_call.1} parent=1 // pred_region
      %s23 = ssub.s32 256, 256
      %24 = vsyncadd [#allocation3], %s23
      %s25 = sshll.u32 [#allocation2], 4
      %s26 = int_to_ptr.vmem [resolvable:$true] %s25
      %31 = dma.hbm_to_vmem [thread:$0]  %s1, 256, %s26, [#allocation3], 128, 128, 8
    $region9: #{tpu_custom_call.1} parent=1 // pred_fallthru
      _
    // Predicated region
    $region10: #{tpu_custom_call.1} parent=1 // pred_check
      _
    $region11: #{tpu_custom_call.1} parent=1 // pred_check_branch
      %33 = sbr.rel (0) target = $region13
    $region12: #{tpu_custom_call.1} parent=1 // pred_region
      %s35 = ssub.s32 256, 256
      %36 = vsyncadd [#allocation5], %s35
      %s37 = sshll.u32 [#allocation4], 4
      %s38 = int_to_ptr.vmem [resolvable:$true] %s37
      %43 = dma.hbm_to_vmem [thread:$0]  %s2, 256, %s38, [#allocation5], 128, 128, 8
    $region13: #{tpu_custom_call.1} parent=1 // pred_fallthru
      _
    // Predicated region
    $region14: #{tpu_custom_call.1} parent=1 // pred_check
      _
    $region15: #{tpu_custom_call.1} parent=1 // pred_check_branch
      %45 = sbr.rel (0) target = $region17
    $region16: #{tpu_custom_call.1} parent=1 // pred_region
      _
    $region17: #{tpu_custom_call.1} parent=1 // pred_fallthru
      _
    // Predicated region
    $region18: #{tpu_custom_call.1} parent=1 // pred_check
      _
    $region19: #{tpu_custom_call.1} parent=1 // pred_check_branch
      %47 = sbr.rel (0) target = $region21
    $region20: #{tpu_custom_call.1} parent=1 // pred_region
      %s49 = ssub.s32 1024, 1024
      %50 = vsyncadd [#allocation5], %s49
      %s51 = sshll.u32 [#allocation6], 4
      %s52 = int_to_ptr.vmem [resolvable:$true] %s51
      %57 = dma.hbm_to_vmem [thread:$0]  %s4, 1024, %s52, [#allocation5], 128, 128, 8
    $region21: #{tpu_custom_call.1} parent=1 // pred_fallthru
      _
    // Predicated region
    $region22: #{tpu_custom_call.1} parent=1 // pred_check
      _
    $region23: #{tpu_custom_call.1} parent=1 // pred_check_branch
      %59 = sbr.rel (0) target = $region25
    $region24: #{tpu_custom_call.1} parent=1 // pred_region
      _
    $region25: #{tpu_custom_call.1} parent=1 // pred_fallthru
      _
    // Predicated region
    $region26: #{tpu_custom_call.1} parent=1 // pred_check
      _
    $region27: #{tpu_custom_call.1} parent=1 // pred_check_branch
      %61 = sbr.rel (0) target = $region29
    $region28: #{tpu_custom_call.1} parent=1 // pred_region
      %s63 = ssub.s32 512, 512
      %64 = vsyncadd [#allocation8], %s63
      %s65 = sshll.u32 [#allocation7], 4
      %s66 = int_to_ptr.vmem [resolvable:$true] %s65
      %71 = dma.hbm_to_vmem [thread:$0]  %s6, 512, %s66, [#allocation8], 128, 128, 8
    $region29: #{tpu_custom_call.1} parent=1 // pred_fallthru
      _
    // Predicated region
    $region30: #{tpu_custom_call.1} parent=1 // pred_check
      _
    $region31: #{tpu_custom_call.1} parent=1 // pred_check_branch
      %73 = sbr.rel (0) target = $region33
    $region32: #{tpu_custom_call.1} parent=1 // pred_region
      %s75 = ssub.s32 512, 512
      %76 = vsyncadd [#allocation8], %s75
      %s77 = sshll.u32 [#allocation9], 4
      %s78 = int_to_ptr.vmem [resolvable:$true] %s77
      %83 = dma.hbm_to_vmem [thread:$0]  %s7, 512, %s78, [#allocation8], 128, 128, 8
    $region33: #{tpu_custom_call.1} parent=1 // pred_fallthru
      _
    // Predicated region
    $region34: #{tpu_custom_call.1} parent=1 // pred_check
      _
    $region35: #{tpu_custom_call.1} parent=1 // pred_check_branch
      %85 = sbr.rel (0) target = $region37
    $region36: #{tpu_custom_call.1} parent=1 // pred_region
      _
    $region37: #{tpu_custom_call.1} parent=1 // pred_fallthru
      _
    // Predicated region
    $region38: #{tpu_custom_call.1} parent=1 // pred_check
      _
    $region39: #{tpu_custom_call.1} parent=1 // pred_check_branch
      %87 = sbr.rel (0) target = $region41
    $region40: #{tpu_custom_call.1} parent=1 // pred_region
      _
    $region41: #{tpu_custom_call.1} parent=1 // pred_fallthru
      _
    // Predicated region
    $region42: #{tpu_custom_call.1} parent=1 // pred_check
      _
    $region43: #{tpu_custom_call.1} parent=1 // pred_check_branch
      %89 = sbr.rel (0) target = $region45
    $region44: #{tpu_custom_call.1} parent=1 // pred_region
      %90 = dma.done [#allocation3], 256
    $region45: #{tpu_custom_call.1} parent=1 // pred_fallthru
      _
    // Predicated region
    $region46: #{tpu_custom_call.1} parent=1 // pred_check
      _
    $region47: #{tpu_custom_call.1} parent=1 // pred_check_branch
      %92 = sbr.rel (0) target = $region49
    $region48: #{tpu_custom_call.1} parent=1 // pred_region
      %93 = dma.done [#allocation5], 256
    $region49: #{tpu_custom_call.1} parent=1 // pred_fallthru
      _
    // Predicated region
    $region50: #{tpu_custom_call.1} parent=1 // pred_check
      _
    $region51: #{tpu_custom_call.1} parent=1 // pred_check_branch
      %95 = sbr.rel (0) target = $region53
    $region52: #{tpu_custom_call.1} parent=1 // pred_region
      %96 = dma.done [#allocation5], 1024
    $region53: #{tpu_custom_call.1} parent=1 // pred_fallthru
      _
    // Predicated region
    $region54: #{tpu_custom_call.1} parent=1 // pred_check
      _
    $region55: #{tpu_custom_call.1} parent=1 // pred_check_branch
      %98 = sbr.rel (0) target = $region57
    $region56: #{tpu_custom_call.1} parent=1 // pred_region
      %99 = dma.done [#allocation8], 512
    $region57: #{tpu_custom_call.1} parent=1 // pred_fallthru
      _
    // Predicated region
    $region58: #{tpu_custom_call.1} parent=1 // pred_check
      _
    $region59: #{tpu_custom_call.1} parent=1 // pred_check_branch
      %101 = sbr.rel (0) target = $region61
    $region60: #{tpu_custom_call.1} parent=1 // pred_region
      %102 = dma.done [#allocation8], 512
    $region61: #{tpu_custom_call.1} parent=1 // pred_fallthru
      _
    %v103 = vld [vmem:[%s0] sm:$0xff]
    %v104 = vld [vmem:[%s0 + $0x8] sm:$0xff]
    %v105 = vlaneseq
    %v106 = vand.u32 %v105, 127
    %107 = vset.pattern.permute.xlu0 0
    %108 = vperm.xlu0 %107, %v103
    %v109 = vpop.permute.xlu0 %108
    %110 = vset.pattern.permute.xlu0 0
    %111 = vperm.xlu0 %110, %v104
    %v112 = vpop.permute.xlu0 %111
    %vm113 = vcmp.eq.s32.totalorder %v106, %v109
    %vm114 = vcmp.eq.s32.totalorder %v106, %v112
    %v115 = vsel %vm113, 1, 0
    %v116 = vsel %vm114, 1, 0
    %v117 = vcvt.s32.f32 %v115
    %v118 = vcvt.s32.f32 %v116
    %v119 = vld [vmem:[#allocation4] sm:$0xff]
    %v120 = vld [vmem:[#allocation4 + $0x8] sm:$0xff]
    %vm121 = vcmask 130048
    %v123 = vsel %vm121, %v117, 0
    %v126 = vsel %vm121, %v118, 0
    %128 = vmatprep.subr.mxu0 0.0
    %129 = vmatpush1.msra.mxu0 %v119
    %130 = vmatprep.subr.mxu0 0.0
    %131 = vmatpush1.msra.mxu0 %v120
    %132 = vmatprep.subr.mxu0 0.0
    %133 = vmatpush1.msra.mxu0 0.0
    %134 = vmatprep.subr.mxu0 0.0
    %135 = vmatpush1.msra.mxu0 0.0
    %136 = vmatprep.subr.mxu0 0.0
    %137 = vmatpush1.msra.mxu0 0.0
    %138 = vmatprep.subr.mxu0 0.0
    %139 = vmatpush1.msra.mxu0 0.0
    %140 = vmatprep.subr.mxu0 0.0
    %141 = vmatpush1.msra.mxu0 0.0
    %142 = vmatprep.subr.mxu0 0.0
    %143 = vmatpush1.msra.mxu0 0.0
    %144 = vmatprep.subr.mxu0 0.0
    %145 = vmatpush1.msra.mxu0 0.0
    %146 = vmatprep.subr.mxu0 0.0
    %147 = vmatpush1.msra.mxu0 0.0
    %148 = vmatprep.subr.mxu0 0.0
    %149 = vmatpush1.msra.mxu0 0.0
    %150 = vmatprep.subr.mxu0 0.0
    %151 = vmatpush1.msra.mxu0 0.0
    %152 = vmatprep.subr.mxu0 0.0
    %153 = vmatpush1.msra.mxu0 0.0
    %154 = vmatprep.subr.mxu0 0.0
    %155 = vmatpush1.msra.mxu0 0.0
    %156 = vmatprep.subr.mxu0 0.0
    %157 = vmatpush1.msra.mxu0 0.0
    %158 = vmatprep.subr.mxu0 0.0
    %159 = vmatpush1.msra.mxu0 0.0
    %160 = vmatprep.subr.mxu0 0.0
    %161 = vmatpush1.msra.mxu0 0.0
    %162 = vmatprep.subr.mxu0 0.0
    %163 = vmatpush1.msra.mxu0 0.0
    %164 = vmatprep.subr.mxu0 0.0
    %165 = vmatpush1.msra.mxu0 0.0
    %166 = vmatprep.subr.mxu0 0.0
    %167 = vmatpush1.msra.mxu0 0.0
    %168 = vmatprep.subr.mxu0 0.0
    %169 = vmatpush1.msra.mxu0 0.0
    %170 = vmatprep.subr.mxu0 0.0
    %171 = vmatpush1.msra.mxu0 0.0
    %172 = vmatprep.subr.mxu0 0.0
    %173 = vmatpush1.msra.mxu0 0.0
    %174 = vmatprep.subr.mxu0 0.0
    %175 = vmatpush1.msra.mxu0 0.0
    %176 = vmatprep.subr.mxu0 0.0
    %177 = vmatpush1.msra.mxu0 0.0
    %178 = vmatprep.subr.mxu0 0.0
    %179 = vmatpush1.msra.mxu0 0.0
    %180 = vmatprep.subr.mxu0 0.0
    %181 = vmatpush1.msra.mxu0 0.0
    %182 = vmatprep.subr.mxu0 0.0
    %183 = vmatpush1.msra.mxu0 0.0
    %184 = vmatprep.subr.mxu0 0.0
    %185 = vmatpush1.msra.mxu0 0.0
    %186 = vmatprep.subr.mxu0 0.0
    %187 = vmatpush1.msra.mxu0 0.0
    %188 = vmatprep.subr.mxu0 0.0
    %189 = vmatpush1.msra.mxu0 0.0
    %190 = vmatprep.subr.mxu0 0.0
    %191 = vmatpush1.msra.mxu0 0.0
    %192 = vmatprep.mubr.f32.mxu0 0.0
    %193 = vmatmul.mubr.f32.gmra.mrb[0].mxu0 %v123
    %v194 = vpop.f32.mrb[0].mxu0
    %v195 = vadd.f32 0.0, %v194
    %v196 = vpop.f32.mrb[0].mxu0
    %197 = vmatprep.mubr.f32.mxu0 0.0
    %198 = vmatmul.mubr.f32.gmra.mrb[0].mxu0 %v126
    %v199 = vpop.f32.mrb[0].mxu0
    %v200 = vadd.f32 0.0, %v199
    %v201 = vpop.f32.mrb[0].mxu0
    %202 = vdwg.mxu0
    %v203 = vld [vmem:[%s3] sm:$0xff]
    %v204 = vld [vmem:[%s3 + $0x8] sm:$0xff]
    %v205 = vld [vmem:[%s3 + $0x10] sm:$0xff]
    %v206 = vld [vmem:[%s3 + $0x18] sm:$0xff]
    %v207 = vld [vmem:[%s5] sm:$0x1]
    %v208 = vlaneseq
    %v209 = vshrl.u32 %v208, 7
    %v210 = vsub.s32 0, %v209
    %v211 = vrot.slane %v207, %v210
    %vm212 = vcmask 261120
    %v214 = vsel %vm212, %v195, 0
    %v217 = vsel %vm212, %v200, 0
    %219 = vmatprep.subr.mxu0 0.0
    %220 = vmatpush1.msra.mxu0 %v203
    %221 = vmatprep.subr.mxu0 0.0
    %222 = vmatpush1.msra.mxu0 %v204
    %223 = vmatprep.subr.mxu0 0.0
    %224 = vmatpush1.msra.mxu0 %v205
    %225 = vmatprep.subr.mxu0 0.0
    %226 = vmatpush1.msra.mxu0 %v206
    %227 = vmatprep.subr.mxu0 0.0
    %228 = vmatpush1.msra.mxu0 0.0
    %229 = vmatprep.subr.mxu0 0.0
    %230 = vmatpush1.msra.mxu0 0.0
    %231 = vmatprep.subr.mxu0 0.0
    %232 = vmatpush1.msra.mxu0 0.0
    %233 = vmatprep.subr.mxu0 0.0
    %234 = vmatpush1.msra.mxu0 0.0
    %235 = vmatprep.subr.mxu0 0.0
    %236 = vmatpush1.msra.mxu0 0.0
    %237 = vmatprep.subr.mxu0 0.0
    %238 = vmatpush1.msra.mxu0 0.0
    %239 = vmatprep.subr.mxu0 0.0
    %240 = vmatpush1.msra.mxu0 0.0
    %241 = vmatprep.subr.mxu0 0.0
    %242 = vmatpush1.msra.mxu0 0.0
    %243 = vmatprep.subr.mxu0 0.0
    %244 = vmatpush1.msra.mxu0 0.0
    %245 = vmatprep.subr.mxu0 0.0
    %246 = vmatpush1.msra.mxu0 0.0
    %247 = vmatprep.subr.mxu0 0.0
    %248 = vmatpush1.msra.mxu0 0.0
    %249 = vmatprep.subr.mxu0 0.0
    %250 = vmatpush1.msra.mxu0 0.0
    %251 = vmatprep.subr.mxu0 0.0
    %252 = vmatpush1.msra.mxu0 0.0
    %253 = vmatprep.subr.mxu0 0.0
    %254 = vmatpush1.msra.mxu0 0.0
    %255 = vmatprep.subr.mxu0 0.0
    %256 = vmatpush1.msra.mxu0 0.0
    %257 = vmatprep.subr.mxu0 0.0
    %258 = vmatpush1.msra.mxu0 0.0
    %259 = vmatprep.subr.mxu0 0.0
    %260 = vmatpush1.msra.mxu0 0.0
    %261 = vmatprep.subr.mxu0 0.0
    %262 = vmatpush1.msra.mxu0 0.0
    %263 = vmatprep.subr.mxu0 0.0
    %264 = vmatpush1.msra.mxu0 0.0
    %265 = vmatprep.subr.mxu0 0.0
    %266 = vmatpush1.msra.mxu0 0.0
    %267 = vmatprep.subr.mxu0 0.0
    %268 = vmatpush1.msra.mxu0 0.0
    %269 = vmatprep.subr.mxu0 0.0
    %270 = vmatpush1.msra.mxu0 0.0
    %271 = vmatprep.subr.mxu0 0.0
    %272 = vmatpush1.msra.mxu0 0.0
    %273 = vmatprep.subr.mxu0 0.0
    %274 = vmatpush1.msra.mxu0 0.0
    %275 = vmatprep.subr.mxu0 0.0
    %276 = vmatpush1.msra.mxu0 0.0
    %277 = vmatprep.subr.mxu0 0.0
    %278 = vmatpush1.msra.mxu0 0.0
    %279 = vmatprep.subr.mxu0 0.0
    %280 = vmatpush1.msra.mxu0 0.0
    %281 = vmatprep.subr.mxu0 0.0
    %282 = vmatpush1.msra.mxu0 0.0
    %283 = vmatprep.mubr.f32.mxu0 0.0
    %284 = vmatmul.mubr.f32.gmra.mrb[0].mxu0 %v214
    %v285 = vpop.f32.mrb[0].mxu0
    %v286 = vadd.f32 %v211, %v285
    %v287 = vpop.f32.mrb[0].mxu0
    %288 = vmatprep.mubr.f32.mxu0 0.0
    %289 = vmatmul.mubr.f32.gmra.mrb[0].mxu0 %v217
    %v290 = vpop.f32.mrb[0].mxu0
    %v291 = vadd.f32 %v211, %v290
    %v292 = vpop.f32.mrb[0].mxu0
    %293 = vdwg.mxu0
    %v294 = vld [vmem:[#allocation6] sm:$0xff]
    %v295 = vld [vmem:[#allocation6 + $0x8] sm:$0xff]
    %v296 = vld [vmem:[#allocation6 + $0x10] sm:$0xff]
    %v297 = vld [vmem:[#allocation6 + $0x18] sm:$0xff]
    %v299 = vsel %vm212, 0.0, 0
    %301 = vmatprep.subr.mxu0 0.0
    %302 = vmatpush1.msra.mxu0 %v294
    %303 = vmatprep.subr.mxu0 0.0
    %304 = vmatpush1.msra.mxu0 %v295
    %305 = vmatprep.subr.mxu0 0.0
    %306 = vmatpush1.msra.mxu0 %v296
    %307 = vmatprep.subr.mxu0 0.0
    %308 = vmatpush1.msra.mxu0 %v297
    %309 = vmatprep.subr.mxu0 0.0
    %310 = vmatpush1.msra.mxu0 0.0
    %311 = vmatprep.subr.mxu0 0.0
    %312 = vmatpush1.msra.mxu0 0.0
    %313 = vmatprep.subr.mxu0 0.0
    %314 = vmatpush1.msra.mxu0 0.0
    %315 = vmatprep.subr.mxu0 0.0
    %316 = vmatpush1.msra.mxu0 0.0
    %317 = vmatprep.subr.mxu0 0.0
    %318 = vmatpush1.msra.mxu0 0.0
    %319 = vmatprep.subr.mxu0 0.0
    %320 = vmatpush1.msra.mxu0 0.0
    %321 = vmatprep.subr.mxu0 0.0
    %322 = vmatpush1.msra.mxu0 0.0
    %323 = vmatprep.subr.mxu0 0.0
    %324 = vmatpush1.msra.mxu0 0.0
    %325 = vmatprep.subr.mxu0 0.0
    %326 = vmatpush1.msra.mxu0 0.0
    %327 = vmatprep.subr.mxu0 0.0
    %328 = vmatpush1.msra.mxu0 0.0
    %329 = vmatprep.subr.mxu0 0.0
    %330 = vmatpush1.msra.mxu0 0.0
    %331 = vmatprep.subr.mxu0 0.0
    %332 = vmatpush1.msra.mxu0 0.0
    %333 = vmatprep.subr.mxu0 0.0
    %334 = vmatpush1.msra.mxu0 0.0
    %335 = vmatprep.subr.mxu0 0.0
    %336 = vmatpush1.msra.mxu0 0.0
    %337 = vmatprep.subr.mxu0 0.0
    %338 = vmatpush1.msra.mxu0 0.0
    %339 = vmatprep.subr.mxu0 0.0
    %340 = vmatpush1.msra.mxu0 0.0
    %341 = vmatprep.subr.mxu0 0.0
    %342 = vmatpush1.msra.mxu0 0.0
    %343 = vmatprep.subr.mxu0 0.0
    %344 = vmatpush1.msra.mxu0 0.0
    %345 = vmatprep.subr.mxu0 0.0
    %346 = vmatpush1.msra.mxu0 0.0
    %347 = vmatprep.subr.mxu0 0.0
    %348 = vmatpush1.msra.mxu0 0.0
    %349 = vmatprep.subr.mxu0 0.0
    %350 = vmatpush1.msra.mxu0 0.0
    %351 = vmatprep.subr.mxu0 0.0
    %352 = vmatpush1.msra.mxu0 0.0
    %353 = vmatprep.subr.mxu0 0.0
    %354 = vmatpush1.msra.mxu0 0.0
    %355 = vmatprep.subr.mxu0 0.0
    %356 = vmatpush1.msra.mxu0 0.0
    %357 = vmatprep.subr.mxu0 0.0
    %358 = vmatpush1.msra.mxu0 0.0
    %359 = vmatprep.subr.mxu0 0.0
    %360 = vmatpush1.msra.mxu0 0.0
    %361 = vmatprep.subr.mxu0 0.0
    %362 = vmatpush1.msra.mxu0 0.0
    %363 = vmatprep.subr.mxu0 0.0
    %364 = vmatpush1.msra.mxu0 0.0
    %365 = vmatprep.mubr.f32.mxu0 0.0
    %366 = vmatmul.mubr.f32.gmra.mrb[0].mxu0 %v299
    %v367 = vpop.f32.mrb[0].mxu0
    %v368 = vadd.f32 0.0, %v367
    %v369 = vpop.f32.mrb[0].mxu0
    %370 = vdwg.mxu0
    %v371 = vadd.f32 %v286, %v368
    %v372 = vxor.u32 %v371, 2147483648
    %v373 = vmul.f32 %v372, 1.442695
    %v374 = vpow.pop %v373
    %v375 = vadd.f32 %v374, 1.0
    %v376 = vrcp.pop %v375
    %v377 = vmul.f32 1.0, %v376
    %v378 = vtanh.pop %v371
    %v379 = vmul.f32 %v377, 0.0
    %381 = vrot.lane.b32.xlu0 %v378, 64
    %v382 = vpop.permute.xlu0 %381
    %v384 = vmul.f32 %v377, %v382
    %386 = vrot.lane.b32.xlu0 %v384, 32
    %v387 = vpop.permute.xlu0 %386
    %v389 = vadd.f32 %v379, %v387
    %v390 = vtanh.pop %v389
    %392 = vrot.lane.b32.xlu0 %v390, 64
    %v393 = vpop.permute.xlu0 %392
    %v395 = vmul.f32 %v377, %v393
    %397 = vrot.lane.b32.xlu0 %v395, 32
    %v398 = vpop.permute.xlu0 %397
    %v399 = vsel %vm212, %v398, 0
    %401 = vmatprep.subr.mxu0 0.0
    %402 = vmatpush1.msra.mxu0 %v294
    %403 = vmatprep.subr.mxu0 0.0
    %404 = vmatpush1.msra.mxu0 %v295
    %405 = vmatprep.subr.mxu0 0.0
    %406 = vmatpush1.msra.mxu0 %v296
    %407 = vmatprep.subr.mxu0 0.0
    %408 = vmatpush1.msra.mxu0 %v297
    %409 = vmatprep.subr.mxu0 0.0
    %410 = vmatpush1.msra.mxu0 0.0
    %411 = vmatprep.subr.mxu0 0.0
    %412 = vmatpush1.msra.mxu0 0.0
    %413 = vmatprep.subr.mxu0 0.0
    %414 = vmatpush1.msra.mxu0 0.0
    %415 = vmatprep.subr.mxu0 0.0
    %416 = vmatpush1.msra.mxu0 0.0
    %417 = vmatprep.subr.mxu0 0.0
    %418 = vmatpush1.msra.mxu0 0.0
    %419 = vmatprep.subr.mxu0 0.0
    %420 = vmatpush1.msra.mxu0 0.0
    %421 = vmatprep.subr.mxu0 0.0
    %422 = vmatpush1.msra.mxu0 0.0
    %423 = vmatprep.subr.mxu0 0.0
    %424 = vmatpush1.msra.mxu0 0.0
    %425 = vmatprep.subr.mxu0 0.0
    %426 = vmatpush1.msra.mxu0 0.0
    %427 = vmatprep.subr.mxu0 0.0
    %428 = vmatpush1.msra.mxu0 0.0
    %429 = vmatprep.subr.mxu0 0.0
    %430 = vmatpush1.msra.mxu0 0.0
    %431 = vmatprep.subr.mxu0 0.0
    %432 = vmatpush1.msra.mxu0 0.0
    %433 = vmatprep.subr.mxu0 0.0
    %434 = vmatpush1.msra.mxu0 0.0
    %435 = vmatprep.subr.mxu0 0.0
    %436 = vmatpush1.msra.mxu0 0.0
    %437 = vmatprep.subr.mxu0 0.0
    %438 = vmatpush1.msra.mxu0 0.0
    %439 = vmatprep.subr.mxu0 0.0
    %440 = vmatpush1.msra.mxu0 0.0
    %441 = vmatprep.subr.mxu0 0.0
    %442 = vmatpush1.msra.mxu0 0.0
    %443 = vmatprep.subr.mxu0 0.0
    %444 = vmatpush1.msra.mxu0 0.0
    %445 = vmatprep.subr.mxu0 0.0
    %446 = vmatpush1.msra.mxu0 0.0
    %447 = vmatprep.subr.mxu0 0.0
    %448 = vmatpush1.msra.mxu0 0.0
    %449 = vmatprep.subr.mxu0 0.0
    %450 = vmatpush1.msra.mxu0 0.0
    %451 = vmatprep.subr.mxu0 0.0
    %452 = vmatpush1.msra.mxu0 0.0
    %453 = vmatprep.subr.mxu0 0.0
    %454 = vmatpush1.msra.mxu0 0.0
    %455 = vmatprep.subr.mxu0 0.0
    %456 = vmatpush1.msra.mxu0 0.0
    %457 = vmatprep.subr.mxu0 0.0
    %458 = vmatpush1.msra.mxu0 0.0
    %459 = vmatprep.subr.mxu0 0.0
    %460 = vmatpush1.msra.mxu0 0.0
    %461 = vmatprep.subr.mxu0 0.0
    %462 = vmatpush1.msra.mxu0 0.0
    %463 = vmatprep.subr.mxu0 0.0
    %464 = vmatpush1.msra.mxu0 0.0
    %465 = vmatprep.mubr.f32.mxu0 0.0
    %466 = vmatmul.mubr.f32.gmra.mrb[0].mxu0 %v399
    %v467 = vpop.f32.mrb[0].mxu0
    %v468 = vadd.f32 0.0, %v467
    %v469 = vpop.f32.mrb[0].mxu0
    %470 = vdwg.mxu0
    %v472 = vrot.slane %v468, 6
    %v474 = vadd.f32 %v286, %v472
    %v475 = vxor.u32 %v474, 2147483648
    %v476 = vmul.f32 %v475, 1.442695
    %v477 = vpow.pop %v476
    %v478 = vadd.f32 %v477, 1.0
    %v479 = vrcp.pop %v478
    %v480 = vmul.f32 1.0, %v479
    %v481 = vtanh.pop %v474
    %v483 = vrot.slane %v389, 6
    %v485 = vmul.f32 %v480, %v483
    %487 = vrot.lane.b32.xlu0 %v481, 64
    %v488 = vpop.permute.xlu0 %487
    %v490 = vmul.f32 %v480, %v488
    %492 = vrot.lane.b32.xlu0 %v490, 32
    %v493 = vpop.permute.xlu0 %492
    %v495 = vadd.f32 %v485, %v493
    %v496 = vtanh.pop %v495
    %498 = vrot.lane.b32.xlu0 %v496, 64
    %v499 = vpop.permute.xlu0 %498
    %v501 = vmul.f32 %v480, %v499
    %v503 = vrot.slane %v501, 2
    %504 = vrot.lane.b32.xlu0 %v503, 32
    %v505 = vpop.permute.xlu0 %504
    %v506 = vsel %vm212, %v505, 0
    %508 = vmatprep.subr.mxu0 0.0
    %509 = vmatpush1.msra.mxu0 %v294
    %510 = vmatprep.subr.mxu0 0.0
    %511 = vmatpush1.msra.mxu0 %v295
    %512 = vmatprep.subr.mxu0 0.0
    %513 = vmatpush1.msra.mxu0 %v296
    %514 = vmatprep.subr.mxu0 0.0
    %515 = vmatpush1.msra.mxu0 %v297
    %516 = vmatprep.subr.mxu0 0.0
    %517 = vmatpush1.msra.mxu0 0.0
    %518 = vmatprep.subr.mxu0 0.0
    %519 = vmatpush1.msra.mxu0 0.0
    %520 = vmatprep.subr.mxu0 0.0
    %521 = vmatpush1.msra.mxu0 0.0
    %522 = vmatprep.subr.mxu0 0.0
    %523 = vmatpush1.msra.mxu0 0.0
    %524 = vmatprep.subr.mxu0 0.0
    %525 = vmatpush1.msra.mxu0 0.0
    %526 = vmatprep.subr.mxu0 0.0
    %527 = vmatpush1.msra.mxu0 0.0
    %528 = vmatprep.subr.mxu0 0.0
    %529 = vmatpush1.msra.mxu0 0.0
    %530 = vmatprep.subr.mxu0 0.0
    %531 = vmatpush1.msra.mxu0 0.0
    %532 = vmatprep.subr.mxu0 0.0
    %533 = vmatpush1.msra.mxu0 0.0
    %534 = vmatprep.subr.mxu0 0.0
    %535 = vmatpush1.msra.mxu0 0.0
    %536 = vmatprep.subr.mxu0 0.0
    %537 = vmatpush1.msra.mxu0 0.0
    %538 = vmatprep.subr.mxu0 0.0
    %539 = vmatpush1.msra.mxu0 0.0
    %540 = vmatprep.subr.mxu0 0.0
    %541 = vmatpush1.msra.mxu0 0.0
    %542 = vmatprep.subr.mxu0 0.0
    %543 = vmatpush1.msra.mxu0 0.0
    %544 = vmatprep.subr.mxu0 0.0
    %545 = vmatpush1.msra.mxu0 0.0
    %546 = vmatprep.subr.mxu0 0.0
    %547 = vmatpush1.msra.mxu0 0.0
    %548 = vmatprep.subr.mxu0 0.0
    %549 = vmatpush1.msra.mxu0 0.0
    %550 = vmatprep.subr.mxu0 0.0
    %551 = vmatpush1.msra.mxu0 0.0
    %552 = vmatprep.subr.mxu0 0.0
    %553 = vmatpush1.msra.mxu0 0.0
    %554 = vmatprep.subr.mxu0 0.0
    %555 = vmatpush1.msra.mxu0 0.0
    %556 = vmatprep.subr.mxu0 0.0
    %557 = vmatpush1.msra.mxu0 0.0
    %558 = vmatprep.subr.mxu0 0.0
    %559 = vmatpush1.msra.mxu0 0.0
    %560 = vmatprep.subr.mxu0 0.0
    %561 = vmatpush1.msra.mxu0 0.0
    %562 = vmatprep.subr.mxu0 0.0
    %563 = vmatpush1.msra.mxu0 0.0
    %564 = vmatprep.subr.mxu0 0.0
    %565 = vmatpush1.msra.mxu0 0.0
    %566 = vmatprep.subr.mxu0 0.0
    %567 = vmatpush1.msra.mxu0 0.0
    %568 = vmatprep.subr.mxu0 0.0
    %569 = vmatpush1.msra.mxu0 0.0
    %570 = vmatprep.subr.mxu0 0.0
    %571 = vmatpush1.msra.mxu0 0.0
    %572 = vmatprep.mubr.f32.mxu0 0.0
    %573 = vmatmul.mubr.f32.gmra.mrb[0].mxu0 %v506
    %v574 = vpop.f32.mrb[0].mxu0
    %v575 = vadd.f32 0.0, %v574
    %v576 = vpop.f32.mrb[0].mxu0
    %577 = vdwg.mxu0
    %v579 = vrot.slane %v575, 4
    %v581 = vadd.f32 %v286, %v579
    %v582 = vxor.u32 %v581, 2147483648
    %v583 = vmul.f32 %v582, 1.442695
    %v584 = vpow.pop %v583
    %v585 = vadd.f32 %v584, 1.0
    %v586 = vrcp.pop %v585
    %v587 = vmul.f32 1.0, %v586
    %v588 = vtanh.pop %v581
    %v590 = vrot.slane %v495, 6
    %v592 = vmul.f32 %v587, %v590
    %594 = vrot.lane.b32.xlu0 %v588, 64
    %v595 = vpop.permute.xlu0 %594
    %v597 = vmul.f32 %v587, %v595
    %599 = vrot.lane.b32.xlu0 %v597, 32
    %v600 = vpop.permute.xlu0 %599
    %v602 = vadd.f32 %v592, %v600
    %v603 = vtanh.pop %v602
    %605 = vrot.lane.b32.xlu0 %v603, 64
    %v606 = vpop.permute.xlu0 %605
    %v608 = vmul.f32 %v587, %v606
    %v610 = vrot.slane %v608, 4
    %611 = vrot.lane.b32.xlu0 %v610, 32
    %v612 = vpop.permute.xlu0 %611
    %v613 = vsel %vm212, %v612, 0
    %615 = vmatprep.subr.mxu0 0.0
    %616 = vmatpush1.msra.mxu0 %v294
    %617 = vmatprep.subr.mxu0 0.0
    %618 = vmatpush1.msra.mxu0 %v295
    %619 = vmatprep.subr.mxu0 0.0
    %620 = vmatpush1.msra.mxu0 %v296
    %621 = vmatprep.subr.mxu0 0.0
    %622 = vmatpush1.msra.mxu0 %v297
    %623 = vmatprep.subr.mxu0 0.0
    %624 = vmatpush1.msra.mxu0 0.0
    %625 = vmatprep.subr.mxu0 0.0
    %626 = vmatpush1.msra.mxu0 0.0
    %627 = vmatprep.subr.mxu0 0.0
    %628 = vmatpush1.msra.mxu0 0.0
    %629 = vmatprep.subr.mxu0 0.0
    %630 = vmatpush1.msra.mxu0 0.0
    %631 = vmatprep.subr.mxu0 0.0
    %632 = vmatpush1.msra.mxu0 0.0
    %633 = vmatprep.subr.mxu0 0.0
    %634 = vmatpush1.msra.mxu0 0.0
    %635 = vmatprep.subr.mxu0 0.0
    %636 = vmatpush1.msra.mxu0 0.0
    %637 = vmatprep.subr.mxu0 0.0
    %638 = vmatpush1.msra.mxu0 0.0
    %639 = vmatprep.subr.mxu0 0.0
    %640 = vmatpush1.msra.mxu0 0.0
    %641 = vmatprep.subr.mxu0 0.0
    %642 = vmatpush1.msra.mxu0 0.0
    %643 = vmatprep.subr.mxu0 0.0
    %644 = vmatpush1.msra.mxu0 0.0
    %645 = vmatprep.subr.mxu0 0.0
    %646 = vmatpush1.msra.mxu0 0.0
    %647 = vmatprep.subr.mxu0 0.0
    %648 = vmatpush1.msra.mxu0 0.0
    %649 = vmatprep.subr.mxu0 0.0
    %650 = vmatpush1.msra.mxu0 0.0
    %651 = vmatprep.subr.mxu0 0.0
    %652 = vmatpush1.msra.mxu0 0.0
    %653 = vmatprep.subr.mxu0 0.0
    %654 = vmatpush1.msra.mxu0 0.0
    %655 = vmatprep.subr.mxu0 0.0
    %656 = vmatpush1.msra.mxu0 0.0
    %657 = vmatprep.subr.mxu0 0.0
    %658 = vmatpush1.msra.mxu0 0.0
    %659 = vmatprep.subr.mxu0 0.0
    %660 = vmatpush1.msra.mxu0 0.0
    %661 = vmatprep.subr.mxu0 0.0
    %662 = vmatpush1.msra.mxu0 0.0
    %663 = vmatprep.subr.mxu0 0.0
    %664 = vmatpush1.msra.mxu0 0.0
    %665 = vmatprep.subr.mxu0 0.0
    %666 = vmatpush1.msra.mxu0 0.0
    %667 = vmatprep.subr.mxu0 0.0
    %668 = vmatpush1.msra.mxu0 0.0
    %669 = vmatprep.subr.mxu0 0.0
    %670 = vmatpush1.msra.mxu0 0.0
    %671 = vmatprep.subr.mxu0 0.0
    %672 = vmatpush1.msra.mxu0 0.0
    %673 = vmatprep.subr.mxu0 0.0
    %674 = vmatpush1.msra.mxu0 0.0
    %675 = vmatprep.subr.mxu0 0.0
    %676 = vmatpush1.msra.mxu0 0.0
    %677 = vmatprep.subr.mxu0 0.0
    %678 = vmatpush1.msra.mxu0 0.0
    %679 = vmatprep.mubr.f32.mxu0 0.0
    %680 = vmatmul.mubr.f32.gmra.mrb[0].mxu0 %v613
    %v681 = vpop.f32.mrb[0].mxu0
    %v682 = vadd.f32 0.0, %v681
    %v683 = vpop.f32.mrb[0].mxu0
    %684 = vdwg.mxu0
    %v686 = vrot.slane %v682, 2
    %v688 = vadd.f32 %v286, %v686
    %v689 = vxor.u32 %v688, 2147483648
    %v690 = vmul.f32 %v689, 1.442695
    %v691 = vpow.pop %v690
    %v692 = vadd.f32 %v691, 1.0
    %v693 = vrcp.pop %v692
    %v694 = vmul.f32 1.0, %v693
    %v695 = vtanh.pop %v688
    %v697 = vrot.slane %v602, 6
    %v699 = vmul.f32 %v694, %v697
    %701 = vrot.lane.b32.xlu0 %v695, 64
    %v702 = vpop.permute.xlu0 %701
    %v704 = vmul.f32 %v694, %v702
    %706 = vrot.lane.b32.xlu0 %v704, 32
    %v707 = vpop.permute.xlu0 %706
    %v709 = vadd.f32 %v699, %v707
    %v710 = vtanh.pop %v709
    %712 = vrot.lane.b32.xlu0 %v710, 64
    %v713 = vpop.permute.xlu0 %712
    %v715 = vmul.f32 %v694, %v713
    %v717 = vrot.slane %v715, 6
    %718 = vrot.lane.b32.xlu0 %v717, 32
    %v719 = vpop.permute.xlu0 %718
    %v720 = vsel %vm212, %v719, 0
    %722 = vmatprep.subr.mxu0 0.0
    %723 = vmatpush1.msra.mxu0 %v294
    %724 = vmatprep.subr.mxu0 0.0
    %725 = vmatpush1.msra.mxu0 %v295
    %726 = vmatprep.subr.mxu0 0.0
    %727 = vmatpush1.msra.mxu0 %v296
    %728 = vmatprep.subr.mxu0 0.0
    %729 = vmatpush1.msra.mxu0 %v297
    %730 = vmatprep.subr.mxu0 0.0
    %731 = vmatpush1.msra.mxu0 0.0
    %732 = vmatprep.subr.mxu0 0.0
    %733 = vmatpush1.msra.mxu0 0.0
    %734 = vmatprep.subr.mxu0 0.0
    %735 = vmatpush1.msra.mxu0 0.0
    %736 = vmatprep.subr.mxu0 0.0
    %737 = vmatpush1.msra.mxu0 0.0
    %738 = vmatprep.subr.mxu0 0.0
    %739 = vmatpush1.msra.mxu0 0.0
    %740 = vmatprep.subr.mxu0 0.0
    %741 = vmatpush1.msra.mxu0 0.0
    %742 = vmatprep.subr.mxu0 0.0
    %743 = vmatpush1.msra.mxu0 0.0
    %744 = vmatprep.subr.mxu0 0.0
    %745 = vmatpush1.msra.mxu0 0.0
    %746 = vmatprep.subr.mxu0 0.0
    %747 = vmatpush1.msra.mxu0 0.0
    %748 = vmatprep.subr.mxu0 0.0
    %749 = vmatpush1.msra.mxu0 0.0
    %750 = vmatprep.subr.mxu0 0.0
    %751 = vmatpush1.msra.mxu0 0.0
    %752 = vmatprep.subr.mxu0 0.0
    %753 = vmatpush1.msra.mxu0 0.0
    %754 = vmatprep.subr.mxu0 0.0
    %755 = vmatpush1.msra.mxu0 0.0
    %756 = vmatprep.subr.mxu0 0.0
    %757 = vmatpush1.msra.mxu0 0.0
    %758 = vmatprep.subr.mxu0 0.0
    %759 = vmatpush1.msra.mxu0 0.0
    %760 = vmatprep.subr.mxu0 0.0
    %761 = vmatpush1.msra.mxu0 0.0
    %762 = vmatprep.subr.mxu0 0.0
    %763 = vmatpush1.msra.mxu0 0.0
    %764 = vmatprep.subr.mxu0 0.0
    %765 = vmatpush1.msra.mxu0 0.0
    %766 = vmatprep.subr.mxu0 0.0
    %767 = vmatpush1.msra.mxu0 0.0
    %768 = vmatprep.subr.mxu0 0.0
    %769 = vmatpush1.msra.mxu0 0.0
    %770 = vmatprep.subr.mxu0 0.0
    %771 = vmatpush1.msra.mxu0 0.0
    %772 = vmatprep.subr.mxu0 0.0
    %773 = vmatpush1.msra.mxu0 0.0
    %774 = vmatprep.subr.mxu0 0.0
    %775 = vmatpush1.msra.mxu0 0.0
    %776 = vmatprep.subr.mxu0 0.0
    %777 = vmatpush1.msra.mxu0 0.0
    %778 = vmatprep.subr.mxu0 0.0
    %779 = vmatpush1.msra.mxu0 0.0
    %780 = vmatprep.subr.mxu0 0.0
    %781 = vmatpush1.msra.mxu0 0.0
    %782 = vmatprep.subr.mxu0 0.0
    %783 = vmatpush1.msra.mxu0 0.0
    %784 = vmatprep.subr.mxu0 0.0
    %785 = vmatpush1.msra.mxu0 0.0
    %786 = vmatprep.mubr.f32.mxu0 0.0
    %787 = vmatmul.mubr.f32.gmra.mrb[0].mxu0 %v720
    %v788 = vpop.f32.mrb[0].mxu0
    %v789 = vadd.f32 0.0, %v788
    %v790 = vpop.f32.mrb[0].mxu0
    %791 = vdwg.mxu0
    %v792 = vadd.f32 %v291, %v789
    %v793 = vxor.u32 %v792, 2147483648
    %v794 = vmul.f32 %v793, 1.442695
    %v795 = vpow.pop %v794
    %v796 = vadd.f32 %v795, 1.0
    %v797 = vrcp.pop %v796
    %v798 = vmul.f32 1.0, %v797
    %v799 = vtanh.pop %v792
    %v801 = vrot.slane %v709, 6
    %v803 = vmul.f32 %v798, %v801
    %805 = vrot.lane.b32.xlu0 %v799, 64
    %v806 = vpop.permute.xlu0 %805
    %v808 = vmul.f32 %v798, %v806
    %810 = vrot.lane.b32.xlu0 %v808, 32
    %v811 = vpop.permute.xlu0 %810
    %v813 = vadd.f32 %v803, %v811
    %v814 = vtanh.pop %v813
    %816 = vrot.lane.b32.xlu0 %v814, 64
    %v817 = vpop.permute.xlu0 %816
    %v819 = vmul.f32 %v798, %v817
    %821 = vrot.lane.b32.xlu0 %v819, 32
    %v822 = vpop.permute.xlu0 %821
    %v823 = vsel %vm212, %v822, 0
    %825 = vmatprep.subr.mxu0 0.0
    %826 = vmatpush1.msra.mxu0 %v294
    %827 = vmatprep.subr.mxu0 0.0
    %828 = vmatpush1.msra.mxu0 %v295
    %829 = vmatprep.subr.mxu0 0.0
    %830 = vmatpush1.msra.mxu0 %v296
    %831 = vmatprep.subr.mxu0 0.0
    %832 = vmatpush1.msra.mxu0 %v297
    %833 = vmatprep.subr.mxu0 0.0
    %834 = vmatpush1.msra.mxu0 0.0
    %835 = vmatprep.subr.mxu0 0.0
    %836 = vmatpush1.msra.mxu0 0.0
    %837 = vmatprep.subr.mxu0 0.0
    %838 = vmatpush1.msra.mxu0 0.0
    %839 = vmatprep.subr.mxu0 0.0
    %840 = vmatpush1.msra.mxu0 0.0
    %841 = vmatprep.subr.mxu0 0.0
    %842 = vmatpush1.msra.mxu0 0.0
    %843 = vmatprep.subr.mxu0 0.0
    %844 = vmatpush1.msra.mxu0 0.0
    %845 = vmatprep.subr.mxu0 0.0
    %846 = vmatpush1.msra.mxu0 0.0
    %847 = vmatprep.subr.mxu0 0.0
    %848 = vmatpush1.msra.mxu0 0.0
    %849 = vmatprep.subr.mxu0 0.0
    %850 = vmatpush1.msra.mxu0 0.0
    %851 = vmatprep.subr.mxu0 0.0
    %852 = vmatpush1.msra.mxu0 0.0
    %853 = vmatprep.subr.mxu0 0.0
    %854 = vmatpush1.msra.mxu0 0.0
    %855 = vmatprep.subr.mxu0 0.0
    %856 = vmatpush1.msra.mxu0 0.0
    %857 = vmatprep.subr.mxu0 0.0
    %858 = vmatpush1.msra.mxu0 0.0
    %859 = vmatprep.subr.mxu0 0.0
    %860 = vmatpush1.msra.mxu0 0.0
    %861 = vmatprep.subr.mxu0 0.0
    %862 = vmatpush1.msra.mxu0 0.0
    %863 = vmatprep.subr.mxu0 0.0
    %864 = vmatpush1.msra.mxu0 0.0
    %865 = vmatprep.subr.mxu0 0.0
    %866 = vmatpush1.msra.mxu0 0.0
    %867 = vmatprep.subr.mxu0 0.0
    %868 = vmatpush1.msra.mxu0 0.0
    %869 = vmatprep.subr.mxu0 0.0
    %870 = vmatpush1.msra.mxu0 0.0
    %871 = vmatprep.subr.mxu0 0.0
    %872 = vmatpush1.msra.mxu0 0.0
    %873 = vmatprep.subr.mxu0 0.0
    %874 = vmatpush1.msra.mxu0 0.0
    %875 = vmatprep.subr.mxu0 0.0
    %876 = vmatpush1.msra.mxu0 0.0
    %877 = vmatprep.subr.mxu0 0.0
    %878 = vmatpush1.msra.mxu0 0.0
    %879 = vmatprep.subr.mxu0 0.0
    %880 = vmatpush1.msra.mxu0 0.0
    %881 = vmatprep.subr.mxu0 0.0
    %882 = vmatpush1.msra.mxu0 0.0
    %883 = vmatprep.subr.mxu0 0.0
    %884 = vmatpush1.msra.mxu0 0.0
    %885 = vmatprep.subr.mxu0 0.0
    %886 = vmatpush1.msra.mxu0 0.0
    %887 = vmatprep.subr.mxu0 0.0
    %888 = vmatpush1.msra.mxu0 0.0
    %889 = vmatprep.mubr.f32.mxu0 0.0
    %890 = vmatmul.mubr.f32.gmra.mrb[0].mxu0 %v823
    %v891 = vpop.f32.mrb[0].mxu0
    %v892 = vadd.f32 0.0, %v891
    %v893 = vpop.f32.mrb[0].mxu0
    %894 = vdwg.mxu0
    %v896 = vrot.slane %v892, 6
    %v898 = vadd.f32 %v291, %v896
    %v899 = vxor.u32 %v898, 2147483648
    %v900 = vmul.f32 %v899, 1.442695
    %v901 = vpow.pop %v900
    %v902 = vadd.f32 %v901, 1.0
    %v903 = vrcp.pop %v902
    %v904 = vmul.f32 1.0, %v903
    %v905 = vtanh.pop %v898
    %v907 = vrot.slane %v813, 6
    %v909 = vmul.f32 %v904, %v907
    %911 = vrot.lane.b32.xlu0 %v905, 64
    %v912 = vpop.permute.xlu0 %911
    %v914 = vmul.f32 %v904, %v912
    %916 = vrot.lane.b32.xlu0 %v914, 32
    %v917 = vpop.permute.xlu0 %916
    %v919 = vadd.f32 %v909, %v917
    %v920 = vtanh.pop %v919
    %922 = vrot.lane.b32.xlu0 %v920, 64
    %v923 = vpop.permute.xlu0 %922
    %v925 = vmul.f32 %v904, %v923
    %v927 = vrot.slane %v925, 2
    %928 = vrot.lane.b32.xlu0 %v927, 32
    %v929 = vpop.permute.xlu0 %928
    %v930 = vsel %vm212, %v929, 0
    %932 = vmatprep.subr.mxu0 0.0
    %933 = vmatpush1.msra.mxu0 %v294
    %934 = vmatprep.subr.mxu0 0.0
    %935 = vmatpush1.msra.mxu0 %v295
    %936 = vmatprep.subr.mxu0 0.0
    %937 = vmatpush1.msra.mxu0 %v296
    %938 = vmatprep.subr.mxu0 0.0
    %939 = vmatpush1.msra.mxu0 %v297
    %940 = vmatprep.subr.mxu0 0.0
    %941 = vmatpush1.msra.mxu0 0.0
    %942 = vmatprep.subr.mxu0 0.0
    %943 = vmatpush1.msra.mxu0 0.0
    %944 = vmatprep.subr.mxu0 0.0
    %945 = vmatpush1.msra.mxu0 0.0
    %946 = vmatprep.subr.mxu0 0.0
    %947 = vmatpush1.msra.mxu0 0.0
    %948 = vmatprep.subr.mxu0 0.0
    %949 = vmatpush1.msra.mxu0 0.0
    %950 = vmatprep.subr.mxu0 0.0
    %951 = vmatpush1.msra.mxu0 0.0
    %952 = vmatprep.subr.mxu0 0.0
    %953 = vmatpush1.msra.mxu0 0.0
    %954 = vmatprep.subr.mxu0 0.0
    %955 = vmatpush1.msra.mxu0 0.0
    %956 = vmatprep.subr.mxu0 0.0
    %957 = vmatpush1.msra.mxu0 0.0
    %958 = vmatprep.subr.mxu0 0.0
    %959 = vmatpush1.msra.mxu0 0.0
    %960 = vmatprep.subr.mxu0 0.0
    %961 = vmatpush1.msra.mxu0 0.0
    %962 = vmatprep.subr.mxu0 0.0
    %963 = vmatpush1.msra.mxu0 0.0
    %964 = vmatprep.subr.mxu0 0.0
    %965 = vmatpush1.msra.mxu0 0.0
    %966 = vmatprep.subr.mxu0 0.0
    %967 = vmatpush1.msra.mxu0 0.0
    %968 = vmatprep.subr.mxu0 0.0
    %969 = vmatpush1.msra.mxu0 0.0
    %970 = vmatprep.subr.mxu0 0.0
    %971 = vmatpush1.msra.mxu0 0.0
    %972 = vmatprep.subr.mxu0 0.0
    %973 = vmatpush1.msra.mxu0 0.0
    %974 = vmatprep.subr.mxu0 0.0
    %975 = vmatpush1.msra.mxu0 0.0
    %976 = vmatprep.subr.mxu0 0.0
    %977 = vmatpush1.msra.mxu0 0.0
    %978 = vmatprep.subr.mxu0 0.0
    %979 = vmatpush1.msra.mxu0 0.0
    %980 = vmatprep.subr.mxu0 0.0
    %981 = vmatpush1.msra.mxu0 0.0
    %982 = vmatprep.subr.mxu0 0.0
    %983 = vmatpush1.msra.mxu0 0.0
    %984 = vmatprep.subr.mxu0 0.0
    %985 = vmatpush1.msra.mxu0 0.0
    %986 = vmatprep.subr.mxu0 0.0
    %987 = vmatpush1.msra.mxu0 0.0
    %988 = vmatprep.subr.mxu0 0.0
    %989 = vmatpush1.msra.mxu0 0.0
    %990 = vmatprep.subr.mxu0 0.0
    %991 = vmatpush1.msra.mxu0 0.0
    %992 = vmatprep.subr.mxu0 0.0
    %993 = vmatpush1.msra.mxu0 0.0
    %994 = vmatprep.subr.mxu0 0.0
    %995 = vmatpush1.msra.mxu0 0.0
    %996 = vmatprep.mubr.f32.mxu0 0.0
    %997 = vmatmul.mubr.f32.gmra.mrb[0].mxu0 %v930
    %v998 = vpop.f32.mrb[0].mxu0
    %v999 = vadd.f32 0.0, %v998
    %v1000 = vpop.f32.mrb[0].mxu0
    %1001 = vdwg.mxu0
    %v1003 = vrot.slane %v999, 4
    %v1005 = vadd.f32 %v291, %v1003
    %v1006 = vxor.u32 %v1005, 2147483648
    %v1007 = vmul.f32 %v1006, 1.442695
    %v1008 = vpow.pop %v1007
    %v1009 = vadd.f32 %v1008, 1.0
    %v1010 = vrcp.pop %v1009
    %v1011 = vmul.f32 1.0, %v1010
    %v1012 = vtanh.pop %v1005
    %v1014 = vrot.slane %v919, 6
    %v1016 = vmul.f32 %v1011, %v1014
    %1018 = vrot.lane.b32.xlu0 %v1012, 64
    %v1019 = vpop.permute.xlu0 %1018
    %v1021 = vmul.f32 %v1011, %v1019
    %1023 = vrot.lane.b32.xlu0 %v1021, 32
    %v1024 = vpop.permute.xlu0 %1023
    %v1026 = vadd.f32 %v1016, %v1024
    %v1027 = vtanh.pop %v1026
    %1029 = vrot.lane.b32.xlu0 %v1027, 64
    %v1030 = vpop.permute.xlu0 %1029
    %v1032 = vmul.f32 %v1011, %v1030
    %v1034 = vrot.slane %v1032, 4
    %1035 = vrot.lane.b32.xlu0 %v1034, 32
    %v1036 = vpop.permute.xlu0 %1035
    %v1037 = vsel %vm212, %v1036, 0
    %1039 = vmatprep.subr.mxu0 0.0
    %1040 = vmatpush1.msra.mxu0 %v294
    %1041 = vmatprep.subr.mxu0 0.0
    %1042 = vmatpush1.msra.mxu0 %v295
    %1043 = vmatprep.subr.mxu0 0.0
    %1044 = vmatpush1.msra.mxu0 %v296
    %1045 = vmatprep.subr.mxu0 0.0
    %1046 = vmatpush1.msra.mxu0 %v297
    %1047 = vmatprep.subr.mxu0 0.0
    %1048 = vmatpush1.msra.mxu0 0.0
    %1049 = vmatprep.subr.mxu0 0.0
    %1050 = vmatpush1.msra.mxu0 0.0
    %1051 = vmatprep.subr.mxu0 0.0
    %1052 = vmatpush1.msra.mxu0 0.0
    %1053 = vmatprep.subr.mxu0 0.0
    %1054 = vmatpush1.msra.mxu0 0.0
    %1055 = vmatprep.subr.mxu0 0.0
    %1056 = vmatpush1.msra.mxu0 0.0
    %1057 = vmatprep.subr.mxu0 0.0
    %1058 = vmatpush1.msra.mxu0 0.0
    %1059 = vmatprep.subr.mxu0 0.0
    %1060 = vmatpush1.msra.mxu0 0.0
    %1061 = vmatprep.subr.mxu0 0.0
    %1062 = vmatpush1.msra.mxu0 0.0
    %1063 = vmatprep.subr.mxu0 0.0
    %1064 = vmatpush1.msra.mxu0 0.0
    %1065 = vmatprep.subr.mxu0 0.0
    %1066 = vmatpush1.msra.mxu0 0.0
    %1067 = vmatprep.subr.mxu0 0.0
    %1068 = vmatpush1.msra.mxu0 0.0
    %1069 = vmatprep.subr.mxu0 0.0
    %1070 = vmatpush1.msra.mxu0 0.0
    %1071 = vmatprep.subr.mxu0 0.0
    %1072 = vmatpush1.msra.mxu0 0.0
    %1073 = vmatprep.subr.mxu0 0.0
    %1074 = vmatpush1.msra.mxu0 0.0
    %1075 = vmatprep.subr.mxu0 0.0
    %1076 = vmatpush1.msra.mxu0 0.0
    %1077 = vmatprep.subr.mxu0 0.0
    %1078 = vmatpush1.msra.mxu0 0.0
    %1079 = vmatprep.subr.mxu0 0.0
    %1080 = vmatpush1.msra.mxu0 0.0
    %1081 = vmatprep.subr.mxu0 0.0
    %1082 = vmatpush1.msra.mxu0 0.0
    %1083 = vmatprep.subr.mxu0 0.0
    %1084 = vmatpush1.msra.mxu0 0.0
    %1085 = vmatprep.subr.mxu0 0.0
    %1086 = vmatpush1.msra.mxu0 0.0
    %1087 = vmatprep.subr.mxu0 0.0
    %1088 = vmatpush1.msra.mxu0 0.0
    %1089 = vmatprep.subr.mxu0 0.0
    %1090 = vmatpush1.msra.mxu0 0.0
    %1091 = vmatprep.subr.mxu0 0.0
    %1092 = vmatpush1.msra.mxu0 0.0
    %1093 = vmatprep.subr.mxu0 0.0
    %1094 = vmatpush1.msra.mxu0 0.0
    %1095 = vmatprep.subr.mxu0 0.0
    %1096 = vmatpush1.msra.mxu0 0.0
    %1097 = vmatprep.subr.mxu0 0.0
    %1098 = vmatpush1.msra.mxu0 0.0
    %1099 = vmatprep.subr.mxu0 0.0
    %1100 = vmatpush1.msra.mxu0 0.0
    %1101 = vmatprep.subr.mxu0 0.0
    %1102 = vmatpush1.msra.mxu0 0.0
    %1103 = vmatprep.mubr.f32.mxu0 0.0
    %1104 = vmatmul.mubr.f32.gmra.mrb[0].mxu0 %v1037
    %v1105 = vpop.f32.mrb[0].mxu0
    %v1106 = vadd.f32 0.0, %v1105
    %v1107 = vpop.f32.mrb[0].mxu0
    %1108 = vdwg.mxu0
    %v1110 = vrot.slane %v1106, 2
    %v1112 = vadd.f32 %v291, %v1110
    %v1113 = vxor.u32 %v1112, 2147483648
    %v1114 = vmul.f32 %v1113, 1.442695
    %v1115 = vpow.pop %v1114
    %v1116 = vadd.f32 %v1115, 1.0
    %v1117 = vrcp.pop %v1116
    %v1118 = vmul.f32 1.0, %v1117
    %v1119 = vtanh.pop %v1112
    %v1121 = vrot.slane %v1026, 6
    %v1123 = vmul.f32 %v1118, %v1121
    %1125 = vrot.lane.b32.xlu0 %v1119, 64
    %v1126 = vpop.permute.xlu0 %1125
    %v1128 = vmul.f32 %v1118, %v1126
    %1130 = vrot.lane.b32.xlu0 %v1128, 32
    %v1131 = vpop.permute.xlu0 %1130
    %v1133 = vadd.f32 %v1123, %v1131
    %v1134 = vtanh.pop %v1133
    %1136 = vrot.lane.b32.xlu0 %v1134, 64
    %v1137 = vpop.permute.xlu0 %1136
    %v1139 = vmul.f32 %v1118, %v1137
    %vm1140 = vcmask 1041408
    %v1141 = vsel %vm1140, %v395, %v501
    %vm1142 = vcmask 1043456
    %v1143 = vsel %vm1142, %v1141, %v608
    %vm1144 = vcmask 1045504
    %v1145 = vsel %vm1144, %v1143, %v715
    %v1146 = vsel %vm1140, %v819, %v925
    %v1147 = vsel %vm1142, %v1146, %v1032
    %v1148 = vsel %vm1144, %v1147, %v1139
    %s1149 = scalar_lea.vmem %s3, 32
    %v1150 = vld [vmem:[%s1149] sm:$0xff]
    %v1151 = vld [vmem:[%s1149 + $0x8] sm:$0xff]
    %v1152 = vld [vmem:[%s1149 + $0x10] sm:$0xff]
    %v1153 = vld [vmem:[%s1149 + $0x18] sm:$0xff]
    %v1154 = vld [vmem:[%s5 + $0x1] sm:$0x1]
    %v1155 = vlaneseq
    %v1156 = vshrl.u32 %v1155, 7
    %v1157 = vsub.s32 0, %v1156
    %v1158 = vrot.slane %v1154, %v1157
    %1161 = vrot.lane.b32.xlu0 %v1145, 32
    %v1162 = vpop.permute.xlu0 %1161
    %1163 = vrot.lane.b32.xlu0 %v1148, 32
    %v1164 = vpop.permute.xlu0 %1163
    %v1165 = vsel %vm212, %v1162, 0
    %v1167 = vsel %vm212, %v1164, 0
    %1169 = vmatprep.subr.mxu0 0.0
    %1170 = vmatpush1.msra.mxu0 %v1150
    %1171 = vmatprep.subr.mxu0 0.0
    %1172 = vmatpush1.msra.mxu0 %v1151
    %1173 = vmatprep.subr.mxu0 0.0
    %1174 = vmatpush1.msra.mxu0 %v1152
    %1175 = vmatprep.subr.mxu0 0.0
    %1176 = vmatpush1.msra.mxu0 %v1153
    %1177 = vmatprep.subr.mxu0 0.0
    %1178 = vmatpush1.msra.mxu0 0.0
    %1179 = vmatprep.subr.mxu0 0.0
    %1180 = vmatpush1.msra.mxu0 0.0
    %1181 = vmatprep.subr.mxu0 0.0
    %1182 = vmatpush1.msra.mxu0 0.0
    %1183 = vmatprep.subr.mxu0 0.0
    %1184 = vmatpush1.msra.mxu0 0.0
    %1185 = vmatprep.subr.mxu0 0.0
    %1186 = vmatpush1.msra.mxu0 0.0
    %1187 = vmatprep.subr.mxu0 0.0
    %1188 = vmatpush1.msra.mxu0 0.0
    %1189 = vmatprep.subr.mxu0 0.0
    %1190 = vmatpush1.msra.mxu0 0.0
    %1191 = vmatprep.subr.mxu0 0.0
    %1192 = vmatpush1.msra.mxu0 0.0
    %1193 = vmatprep.subr.mxu0 0.0
    %1194 = vmatpush1.msra.mxu0 0.0
    %1195 = vmatprep.subr.mxu0 0.0
    %1196 = vmatpush1.msra.mxu0 0.0
    %1197 = vmatprep.subr.mxu0 0.0
    %1198 = vmatpush1.msra.mxu0 0.0
    %1199 = vmatprep.subr.mxu0 0.0
    %1200 = vmatpush1.msra.mxu0 0.0
    %1201 = vmatprep.subr.mxu0 0.0
    %1202 = vmatpush1.msra.mxu0 0.0
    %1203 = vmatprep.subr.mxu0 0.0
    %1204 = vmatpush1.msra.mxu0 0.0
    %1205 = vmatprep.subr.mxu0 0.0
    %1206 = vmatpush1.msra.mxu0 0.0
    %1207 = vmatprep.subr.mxu0 0.0
    %1208 = vmatpush1.msra.mxu0 0.0
    %1209 = vmatprep.subr.mxu0 0.0
    %1210 = vmatpush1.msra.mxu0 0.0
    %1211 = vmatprep.subr.mxu0 0.0
    %1212 = vmatpush1.msra.mxu0 0.0
    %1213 = vmatprep.subr.mxu0 0.0
    %1214 = vmatpush1.msra.mxu0 0.0
    %1215 = vmatprep.subr.mxu0 0.0
    %1216 = vmatpush1.msra.mxu0 0.0
    %1217 = vmatprep.subr.mxu0 0.0
    %1218 = vmatpush1.msra.mxu0 0.0
    %1219 = vmatprep.subr.mxu0 0.0
    %1220 = vmatpush1.msra.mxu0 0.0
    %1221 = vmatprep.subr.mxu0 0.0
    %1222 = vmatpush1.msra.mxu0 0.0
    %1223 = vmatprep.subr.mxu0 0.0
    %1224 = vmatpush1.msra.mxu0 0.0
    %1225 = vmatprep.subr.mxu0 0.0
    %1226 = vmatpush1.msra.mxu0 0.0
    %1227 = vmatprep.subr.mxu0 0.0
    %1228 = vmatpush1.msra.mxu0 0.0
    %1229 = vmatprep.subr.mxu0 0.0
    %1230 = vmatpush1.msra.mxu0 0.0
    %1231 = vmatprep.subr.mxu0 0.0
    %1232 = vmatpush1.msra.mxu0 0.0
    %1233 = vmatprep.mubr.f32.mxu0 0.0
    %1234 = vmatmul.mubr.f32.gmra.mrb[0].mxu0 %v1165
    %v1235 = vpop.f32.mrb[0].mxu0
    %v1236 = vadd.f32 %v1158, %v1235
    %v1237 = vpop.f32.mrb[0].mxu0
    %1238 = vmatprep.mubr.f32.mxu0 0.0
    %1239 = vmatmul.mubr.f32.gmra.mrb[0].mxu0 %v1167
    %v1240 = vpop.f32.mrb[0].mxu0
    %v1241 = vadd.f32 %v1158, %v1240
    %v1242 = vpop.f32.mrb[0].mxu0
    %1243 = vdwg.mxu0
    %s1244 = scalar_lea.vmem [#allocation6], 32
    %v1245 = vld [vmem:[%s1244] sm:$0xff]
    %v1246 = vld [vmem:[%s1244 + $0x8] sm:$0xff]
    %v1247 = vld [vmem:[%s1244 + $0x10] sm:$0xff]
    %v1248 = vld [vmem:[%s1244 + $0x18] sm:$0xff]
    %1249 = vmatprep.subr.mxu0 0.0
    %1250 = vmatpush1.msra.mxu0 %v1245
    %1251 = vmatprep.subr.mxu0 0.0
    %1252 = vmatpush1.msra.mxu0 %v1246
    %1253 = vmatprep.subr.mxu0 0.0
    %1254 = vmatpush1.msra.mxu0 %v1247
    %1255 = vmatprep.subr.mxu0 0.0
    %1256 = vmatpush1.msra.mxu0 %v1248
    %1257 = vmatprep.subr.mxu0 0.0
    %1258 = vmatpush1.msra.mxu0 0.0
    %1259 = vmatprep.subr.mxu0 0.0
    %1260 = vmatpush1.msra.mxu0 0.0
    %1261 = vmatprep.subr.mxu0 0.0
    %1262 = vmatpush1.msra.mxu0 0.0
    %1263 = vmatprep.subr.mxu0 0.0
    %1264 = vmatpush1.msra.mxu0 0.0
    %1265 = vmatprep.subr.mxu0 0.0
    %1266 = vmatpush1.msra.mxu0 0.0
    %1267 = vmatprep.subr.mxu0 0.0
    %1268 = vmatpush1.msra.mxu0 0.0
    %1269 = vmatprep.subr.mxu0 0.0
    %1270 = vmatpush1.msra.mxu0 0.0
    %1271 = vmatprep.subr.mxu0 0.0
    %1272 = vmatpush1.msra.mxu0 0.0
    %1273 = vmatprep.subr.mxu0 0.0
    %1274 = vmatpush1.msra.mxu0 0.0
    %1275 = vmatprep.subr.mxu0 0.0
    %1276 = vmatpush1.msra.mxu0 0.0
    %1277 = vmatprep.subr.mxu0 0.0
    %1278 = vmatpush1.msra.mxu0 0.0
    %1279 = vmatprep.subr.mxu0 0.0
    %1280 = vmatpush1.msra.mxu0 0.0
    %1281 = vmatprep.subr.mxu0 0.0
    %1282 = vmatpush1.msra.mxu0 0.0
    %1283 = vmatprep.subr.mxu0 0.0
    %1284 = vmatpush1.msra.mxu0 0.0
    %1285 = vmatprep.subr.mxu0 0.0
    %1286 = vmatpush1.msra.mxu0 0.0
    %1287 = vmatprep.subr.mxu0 0.0
    %1288 = vmatpush1.msra.mxu0 0.0
    %1289 = vmatprep.subr.mxu0 0.0
    %1290 = vmatpush1.msra.mxu0 0.0
    %1291 = vmatprep.subr.mxu0 0.0
    %1292 = vmatpush1.msra.mxu0 0.0
    %1293 = vmatprep.subr.mxu0 0.0
    %1294 = vmatpush1.msra.mxu0 0.0
    %1295 = vmatprep.subr.mxu0 0.0
    %1296 = vmatpush1.msra.mxu0 0.0
    %1297 = vmatprep.subr.mxu0 0.0
    %1298 = vmatpush1.msra.mxu0 0.0
    %1299 = vmatprep.subr.mxu0 0.0
    %1300 = vmatpush1.msra.mxu0 0.0
    %1301 = vmatprep.subr.mxu0 0.0
    %1302 = vmatpush1.msra.mxu0 0.0
    %1303 = vmatprep.subr.mxu0 0.0
    %1304 = vmatpush1.msra.mxu0 0.0
    %1305 = vmatprep.subr.mxu0 0.0
    %1306 = vmatpush1.msra.mxu0 0.0
    %1307 = vmatprep.subr.mxu0 0.0
    %1308 = vmatpush1.msra.mxu0 0.0
    %1309 = vmatprep.subr.mxu0 0.0
    %1310 = vmatpush1.msra.mxu0 0.0
    %1311 = vmatprep.subr.mxu0 0.0
    %1312 = vmatpush1.msra.mxu0 0.0
    %1313 = vmatprep.mubr.f32.mxu0 0.0
    %1314 = vmatmul.mubr.f32.gmra.mrb[0].mxu0 %v299
    %v1315 = vpop.f32.mrb[0].mxu0
    %v1316 = vadd.f32 0.0, %v1315
    %v1317 = vpop.f32.mrb[0].mxu0
    %1318 = vdwg.mxu0
    %v1319 = vadd.f32 %v1236, %v1316
    %v1320 = vxor.u32 %v1319, 2147483648
    %v1321 = vmul.f32 %v1320, 1.442695
    %v1322 = vpow.pop %v1321
    %v1323 = vadd.f32 %v1322, 1.0
    %v1324 = vrcp.pop %v1323
    %v1325 = vmul.f32 1.0, %v1324
    %v1326 = vtanh.pop %v1319
    %v1327 = vmul.f32 %v1325, 0.0
    %1329 = vrot.lane.b32.xlu0 %v1326, 64
    %v1330 = vpop.permute.xlu0 %1329
    %v1332 = vmul.f32 %v1325, %v1330
    %1334 = vrot.lane.b32.xlu0 %v1332, 32
    %v1335 = vpop.permute.xlu0 %1334
    %v1337 = vadd.f32 %v1327, %v1335
    %v1338 = vtanh.pop %v1337
    %1340 = vrot.lane.b32.xlu0 %v1338, 64
    %v1341 = vpop.permute.xlu0 %1340
    %v1343 = vmul.f32 %v1325, %v1341
    %1345 = vrot.lane.b32.xlu0 %v1343, 32
    %v1346 = vpop.permute.xlu0 %1345
    %v1347 = vsel %vm212, %v1346, 0
    %1349 = vmatprep.subr.mxu0 0.0
    %1350 = vmatpush1.msra.mxu0 %v1245
    %1351 = vmatprep.subr.mxu0 0.0
    %1352 = vmatpush1.msra.mxu0 %v1246
    %1353 = vmatprep.subr.mxu0 0.0
    %1354 = vmatpush1.msra.mxu0 %v1247
    %1355 = vmatprep.subr.mxu0 0.0
    %1356 = vmatpush1.msra.mxu0 %v1248
    %1357 = vmatprep.subr.mxu0 0.0
    %1358 = vmatpush1.msra.mxu0 0.0
    %1359 = vmatprep.subr.mxu0 0.0
    %1360 = vmatpush1.msra.mxu0 0.0
    %1361 = vmatprep.subr.mxu0 0.0
    %1362 = vmatpush1.msra.mxu0 0.0
    %1363 = vmatprep.subr.mxu0 0.0
    %1364 = vmatpush1.msra.mxu0 0.0
    %1365 = vmatprep.subr.mxu0 0.0
    %1366 = vmatpush1.msra.mxu0 0.0
    %1367 = vmatprep.subr.mxu0 0.0
    %1368 = vmatpush1.msra.mxu0 0.0
    %1369 = vmatprep.subr.mxu0 0.0
    %1370 = vmatpush1.msra.mxu0 0.0
    %1371 = vmatprep.subr.mxu0 0.0
    %1372 = vmatpush1.msra.mxu0 0.0
    %1373 = vmatprep.subr.mxu0 0.0
    %1374 = vmatpush1.msra.mxu0 0.0
    %1375 = vmatprep.subr.mxu0 0.0
    %1376 = vmatpush1.msra.mxu0 0.0
    %1377 = vmatprep.subr.mxu0 0.0
    %1378 = vmatpush1.msra.mxu0 0.0
    %1379 = vmatprep.subr.mxu0 0.0
    %1380 = vmatpush1.msra.mxu0 0.0
    %1381 = vmatprep.subr.mxu0 0.0
    %1382 = vmatpush1.msra.mxu0 0.0
    %1383 = vmatprep.subr.mxu0 0.0
    %1384 = vmatpush1.msra.mxu0 0.0
    %1385 = vmatprep.subr.mxu0 0.0
    %1386 = vmatpush1.msra.mxu0 0.0
    %1387 = vmatprep.subr.mxu0 0.0
    %1388 = vmatpush1.msra.mxu0 0.0
    %1389 = vmatprep.subr.mxu0 0.0
    %1390 = vmatpush1.msra.mxu0 0.0
    %1391 = vmatprep.subr.mxu0 0.0
    %1392 = vmatpush1.msra.mxu0 0.0
    %1393 = vmatprep.subr.mxu0 0.0
    %1394 = vmatpush1.msra.mxu0 0.0
    %1395 = vmatprep.subr.mxu0 0.0
    %1396 = vmatpush1.msra.mxu0 0.0
    %1397 = vmatprep.subr.mxu0 0.0
    %1398 = vmatpush1.msra.mxu0 0.0
    %1399 = vmatprep.subr.mxu0 0.0
    %1400 = vmatpush1.msra.mxu0 0.0
    %1401 = vmatprep.subr.mxu0 0.0
    %1402 = vmatpush1.msra.mxu0 0.0
    %1403 = vmatprep.subr.mxu0 0.0
    %1404 = vmatpush1.msra.mxu0 0.0
    %1405 = vmatprep.subr.mxu0 0.0
    %1406 = vmatpush1.msra.mxu0 0.0
    %1407 = vmatprep.subr.mxu0 0.0
    %1408 = vmatpush1.msra.mxu0 0.0
    %1409 = vmatprep.subr.mxu0 0.0
    %1410 = vmatpush1.msra.mxu0 0.0
    %1411 = vmatprep.subr.mxu0 0.0
    %1412 = vmatpush1.msra.mxu0 0.0
    %1413 = vmatprep.mubr.f32.mxu0 0.0
    %1414 = vmatmul.mubr.f32.gmra.mrb[0].mxu0 %v1347
    %v1415 = vpop.f32.mrb[0].mxu0
    %v1416 = vadd.f32 0.0, %v1415
    %v1417 = vpop.f32.mrb[0].mxu0
    %1418 = vdwg.mxu0
    %v1420 = vrot.slane %v1416, 6
    %v1422 = vadd.f32 %v1236, %v1420
    %v1423 = vxor.u32 %v1422, 2147483648
    %v1424 = vmul.f32 %v1423, 1.442695
    %v1425 = vpow.pop %v1424
    %v1426 = vadd.f32 %v1425, 1.0
    %v1427 = vrcp.pop %v1426
    %v1428 = vmul.f32 1.0, %v1427
    %v1429 = vtanh.pop %v1422
    %v1431 = vrot.slane %v1337, 6
    %v1433 = vmul.f32 %v1428, %v1431
    %1435 = vrot.lane.b32.xlu0 %v1429, 64
    %v1436 = vpop.permute.xlu0 %1435
    %v1438 = vmul.f32 %v1428, %v1436
    %1440 = vrot.lane.b32.xlu0 %v1438, 32
    %v1441 = vpop.permute.xlu0 %1440
    %v1443 = vadd.f32 %v1433, %v1441
    %v1444 = vtanh.pop %v1443
    %1446 = vrot.lane.b32.xlu0 %v1444, 64
    %v1447 = vpop.permute.xlu0 %1446
    %v1449 = vmul.f32 %v1428, %v1447
    %v1451 = vrot.slane %v1449, 2
    %1452 = vrot.lane.b32.xlu0 %v1451, 32
    %v1453 = vpop.permute.xlu0 %1452
    %v1454 = vsel %vm212, %v1453, 0
    %1456 = vmatprep.subr.mxu0 0.0
    %1457 = vmatpush1.msra.mxu0 %v1245
    %1458 = vmatprep.subr.mxu0 0.0
    %1459 = vmatpush1.msra.mxu0 %v1246
    %1460 = vmatprep.subr.mxu0 0.0
    %1461 = vmatpush1.msra.mxu0 %v1247
    %1462 = vmatprep.subr.mxu0 0.0
    %1463 = vmatpush1.msra.mxu0 %v1248
    %1464 = vmatprep.subr.mxu0 0.0
    %1465 = vmatpush1.msra.mxu0 0.0
    %1466 = vmatprep.subr.mxu0 0.0
    %1467 = vmatpush1.msra.mxu0 0.0
    %1468 = vmatprep.subr.mxu0 0.0
    %1469 = vmatpush1.msra.mxu0 0.0
    %1470 = vmatprep.subr.mxu0 0.0
    %1471 = vmatpush1.msra.mxu0 0.0
    %1472 = vmatprep.subr.mxu0 0.0
    %1473 = vmatpush1.msra.mxu0 0.0
    %1474 = vmatprep.subr.mxu0 0.0
    %1475 = vmatpush1.msra.mxu0 0.0
    %1476 = vmatprep.subr.mxu0 0.0
    %1477 = vmatpush1.msra.mxu0 0.0
    %1478 = vmatprep.subr.mxu0 0.0
    %1479 = vmatpush1.msra.mxu0 0.0
    %1480 = vmatprep.subr.mxu0 0.0
    %1481 = vmatpush1.msra.mxu0 0.0
    %1482 = vmatprep.subr.mxu0 0.0
    %1483 = vmatpush1.msra.mxu0 0.0
    %1484 = vmatprep.subr.mxu0 0.0
    %1485 = vmatpush1.msra.mxu0 0.0
    %1486 = vmatprep.subr.mxu0 0.0
    %1487 = vmatpush1.msra.mxu0 0.0
    %1488 = vmatprep.subr.mxu0 0.0
    %1489 = vmatpush1.msra.mxu0 0.0
    %1490 = vmatprep.subr.mxu0 0.0
    %1491 = vmatpush1.msra.mxu0 0.0
    %1492 = vmatprep.subr.mxu0 0.0
    %1493 = vmatpush1.msra.mxu0 0.0
    %1494 = vmatprep.subr.mxu0 0.0
    %1495 = vmatpush1.msra.mxu0 0.0
    %1496 = vmatprep.subr.mxu0 0.0
    %1497 = vmatpush1.msra.mxu0 0.0
    %1498 = vmatprep.subr.mxu0 0.0
    %1499 = vmatpush1.msra.mxu0 0.0
    %1500 = vmatprep.subr.mxu0 0.0
    %1501 = vmatpush1.msra.mxu0 0.0
    %1502 = vmatprep.subr.mxu0 0.0
    %1503 = vmatpush1.msra.mxu0 0.0
    %1504 = vmatprep.subr.mxu0 0.0
    %1505 = vmatpush1.msra.mxu0 0.0
    %1506 = vmatprep.subr.mxu0 0.0
    %1507 = vmatpush1.msra.mxu0 0.0
    %1508 = vmatprep.subr.mxu0 0.0
    %1509 = vmatpush1.msra.mxu0 0.0
    %1510 = vmatprep.subr.mxu0 0.0
    %1511 = vmatpush1.msra.mxu0 0.0
    %1512 = vmatprep.subr.mxu0 0.0
    %1513 = vmatpush1.msra.mxu0 0.0
    %1514 = vmatprep.subr.mxu0 0.0
    %1515 = vmatpush1.msra.mxu0 0.0
    %1516 = vmatprep.subr.mxu0 0.0
    %1517 = vmatpush1.msra.mxu0 0.0
    %1518 = vmatprep.subr.mxu0 0.0
    %1519 = vmatpush1.msra.mxu0 0.0
    %1520 = vmatprep.mubr.f32.mxu0 0.0
    %1521 = vmatmul.mubr.f32.gmra.mrb[0].mxu0 %v1454
    %v1522 = vpop.f32.mrb[0].mxu0
    %v1523 = vadd.f32 0.0, %v1522
    %v1524 = vpop.f32.mrb[0].mxu0
    %1525 = vdwg.mxu0
    %v1527 = vrot.slane %v1523, 4
    %v1529 = vadd.f32 %v1236, %v1527
    %v1530 = vxor.u32 %v1529, 2147483648
    %v1531 = vmul.f32 %v1530, 1.442695
    %v1532 = vpow.pop %v1531
    %v1533 = vadd.f32 %v1532, 1.0
    %v1534 = vrcp.pop %v1533
    %v1535 = vmul.f32 1.0, %v1534
    %v1536 = vtanh.pop %v1529
    %v1538 = vrot.slane %v1443, 6
    %v1540 = vmul.f32 %v1535, %v1538
    %1542 = vrot.lane.b32.xlu0 %v1536, 64
    %v1543 = vpop.permute.xlu0 %1542
    %v1545 = vmul.f32 %v1535, %v1543
    %1547 = vrot.lane.b32.xlu0 %v1545, 32
    %v1548 = vpop.permute.xlu0 %1547
    %v1550 = vadd.f32 %v1540, %v1548
    %v1551 = vtanh.pop %v1550
    %1553 = vrot.lane.b32.xlu0 %v1551, 64
    %v1554 = vpop.permute.xlu0 %1553
    %v1556 = vmul.f32 %v1535, %v1554
    %v1558 = vrot.slane %v1556, 4
    %1559 = vrot.lane.b32.xlu0 %v1558, 32
    %v1560 = vpop.permute.xlu0 %1559
    %v1561 = vsel %vm212, %v1560, 0
    %1563 = vmatprep.subr.mxu0 0.0
    %1564 = vmatpush1.msra.mxu0 %v1245
    %1565 = vmatprep.subr.mxu0 0.0
    %1566 = vmatpush1.msra.mxu0 %v1246
    %1567 = vmatprep.subr.mxu0 0.0
    %1568 = vmatpush1.msra.mxu0 %v1247
    %1569 = vmatprep.subr.mxu0 0.0
    %1570 = vmatpush1.msra.mxu0 %v1248
    %1571 = vmatprep.subr.mxu0 0.0
    %1572 = vmatpush1.msra.mxu0 0.0
    %1573 = vmatprep.subr.mxu0 0.0
    %1574 = vmatpush1.msra.mxu0 0.0
    %1575 = vmatprep.subr.mxu0 0.0
    %1576 = vmatpush1.msra.mxu0 0.0
    %1577 = vmatprep.subr.mxu0 0.0
    %1578 = vmatpush1.msra.mxu0 0.0
    %1579 = vmatprep.subr.mxu0 0.0
    %1580 = vmatpush1.msra.mxu0 0.0
    %1581 = vmatprep.subr.mxu0 0.0
    %1582 = vmatpush1.msra.mxu0 0.0
    %1583 = vmatprep.subr.mxu0 0.0
    %1584 = vmatpush1.msra.mxu0 0.0
    %1585 = vmatprep.subr.mxu0 0.0
    %1586 = vmatpush1.msra.mxu0 0.0
    %1587 = vmatprep.subr.mxu0 0.0
    %1588 = vmatpush1.msra.mxu0 0.0
    %1589 = vmatprep.subr.mxu0 0.0
    %1590 = vmatpush1.msra.mxu0 0.0
    %1591 = vmatprep.subr.mxu0 0.0
    %1592 = vmatpush1.msra.mxu0 0.0
    %1593 = vmatprep.subr.mxu0 0.0
    %1594 = vmatpush1.msra.mxu0 0.0
    %1595 = vmatprep.subr.mxu0 0.0
    %1596 = vmatpush1.msra.mxu0 0.0
    %1597 = vmatprep.subr.mxu0 0.0
    %1598 = vmatpush1.msra.mxu0 0.0
    %1599 = vmatprep.subr.mxu0 0.0
    %1600 = vmatpush1.msra.mxu0 0.0
    %1601 = vmatprep.subr.mxu0 0.0
    %1602 = vmatpush1.msra.mxu0 0.0
    %1603 = vmatprep.subr.mxu0 0.0
    %1604 = vmatpush1.msra.mxu0 0.0
    %1605 = vmatprep.subr.mxu0 0.0
    %1606 = vmatpush1.msra.mxu0 0.0
    %1607 = vmatprep.subr.mxu0 0.0
    %1608 = vmatpush1.msra.mxu0 0.0
    %1609 = vmatprep.subr.mxu0 0.0
    %1610 = vmatpush1.msra.mxu0 0.0
    %1611 = vmatprep.subr.mxu0 0.0
    %1612 = vmatpush1.msra.mxu0 0.0
    %1613 = vmatprep.subr.mxu0 0.0
    %1614 = vmatpush1.msra.mxu0 0.0
    %1615 = vmatprep.subr.mxu0 0.0
    %1616 = vmatpush1.msra.mxu0 0.0
    %1617 = vmatprep.subr.mxu0 0.0
    %1618 = vmatpush1.msra.mxu0 0.0
    %1619 = vmatprep.subr.mxu0 0.0
    %1620 = vmatpush1.msra.mxu0 0.0
    %1621 = vmatprep.subr.mxu0 0.0
    %1622 = vmatpush1.msra.mxu0 0.0
    %1623 = vmatprep.subr.mxu0 0.0
    %1624 = vmatpush1.msra.mxu0 0.0
    %1625 = vmatprep.subr.mxu0 0.0
    %1626 = vmatpush1.msra.mxu0 0.0
    %1627 = vmatprep.mubr.f32.mxu0 0.0
    %1628 = vmatmul.mubr.f32.gmra.mrb[0].mxu0 %v1561
    %v1629 = vpop.f32.mrb[0].mxu0
    %v1630 = vadd.f32 0.0, %v1629
    %v1631 = vpop.f32.mrb[0].mxu0
    %1632 = vdwg.mxu0
    %v1634 = vrot.slane %v1630, 2
    %v1636 = vadd.f32 %v1236, %v1634
    %v1637 = vxor.u32 %v1636, 2147483648
    %v1638 = vmul.f32 %v1637, 1.442695
    %v1639 = vpow.pop %v1638
    %v1640 = vadd.f32 %v1639, 1.0
    %v1641 = vrcp.pop %v1640
    %v1642 = vmul.f32 1.0, %v1641
    %v1643 = vtanh.pop %v1636
    %v1645 = vrot.slane %v1550, 6
    %v1647 = vmul.f32 %v1642, %v1645
    %1649 = vrot.lane.b32.xlu0 %v1643, 64
    %v1650 = vpop.permute.xlu0 %1649
    %v1652 = vmul.f32 %v1642, %v1650
    %1654 = vrot.lane.b32.xlu0 %v1652, 32
    %v1655 = vpop.permute.xlu0 %1654
    %v1657 = vadd.f32 %v1647, %v1655
    %v1658 = vtanh.pop %v1657
    %1660 = vrot.lane.b32.xlu0 %v1658, 64
    %v1661 = vpop.permute.xlu0 %1660
    %v1663 = vmul.f32 %v1642, %v1661
    %v1665 = vrot.slane %v1663, 6
    %1666 = vrot.lane.b32.xlu0 %v1665, 32
    %v1667 = vpop.permute.xlu0 %1666
    %v1668 = vsel %vm212, %v1667, 0
    %1670 = vmatprep.subr.mxu0 0.0
    %1671 = vmatpush1.msra.mxu0 %v1245
    %1672 = vmatprep.subr.mxu0 0.0
    %1673 = vmatpush1.msra.mxu0 %v1246
    %1674 = vmatprep.subr.mxu0 0.0
    %1675 = vmatpush1.msra.mxu0 %v1247
    %1676 = vmatprep.subr.mxu0 0.0
    %1677 = vmatpush1.msra.mxu0 %v1248
    %1678 = vmatprep.subr.mxu0 0.0
    %1679 = vmatpush1.msra.mxu0 0.0
    %1680 = vmatprep.subr.mxu0 0.0
    %1681 = vmatpush1.msra.mxu0 0.0
    %1682 = vmatprep.subr.mxu0 0.0
    %1683 = vmatpush1.msra.mxu0 0.0
    %1684 = vmatprep.subr.mxu0 0.0
    %1685 = vmatpush1.msra.mxu0 0.0
    %1686 = vmatprep.subr.mxu0 0.0
    %1687 = vmatpush1.msra.mxu0 0.0
    %1688 = vmatprep.subr.mxu0 0.0
    %1689 = vmatpush1.msra.mxu0 0.0
    %1690 = vmatprep.subr.mxu0 0.0
    %1691 = vmatpush1.msra.mxu0 0.0
    %1692 = vmatprep.subr.mxu0 0.0
    %1693 = vmatpush1.msra.mxu0 0.0
    %1694 = vmatprep.subr.mxu0 0.0
    %1695 = vmatpush1.msra.mxu0 0.0
    %1696 = vmatprep.subr.mxu0 0.0
    %1697 = vmatpush1.msra.mxu0 0.0
    %1698 = vmatprep.subr.mxu0 0.0
    %1699 = vmatpush1.msra.mxu0 0.0
    %1700 = vmatprep.subr.mxu0 0.0
    %1701 = vmatpush1.msra.mxu0 0.0
    %1702 = vmatprep.subr.mxu0 0.0
    %1703 = vmatpush1.msra.mxu0 0.0
    %1704 = vmatprep.subr.mxu0 0.0
    %1705 = vmatpush1.msra.mxu0 0.0
    %1706 = vmatprep.subr.mxu0 0.0
    %1707 = vmatpush1.msra.mxu0 0.0
    %1708 = vmatprep.subr.mxu0 0.0
    %1709 = vmatpush1.msra.mxu0 0.0
    %1710 = vmatprep.subr.mxu0 0.0
    %1711 = vmatpush1.msra.mxu0 0.0
    %1712 = vmatprep.subr.mxu0 0.0
    %1713 = vmatpush1.msra.mxu0 0.0
    %1714 = vmatprep.subr.mxu0 0.0
    %1715 = vmatpush1.msra.mxu0 0.0
    %1716 = vmatprep.subr.mxu0 0.0
    %1717 = vmatpush1.msra.mxu0 0.0
    %1718 = vmatprep.subr.mxu0 0.0
    %1719 = vmatpush1.msra.mxu0 0.0
    %1720 = vmatprep.subr.mxu0 0.0
    %1721 = vmatpush1.msra.mxu0 0.0
    %1722 = vmatprep.subr.mxu0 0.0
    %1723 = vmatpush1.msra.mxu0 0.0
    %1724 = vmatprep.subr.mxu0 0.0
    %1725 = vmatpush1.msra.mxu0 0.0
    %1726 = vmatprep.subr.mxu0 0.0
    %1727 = vmatpush1.msra.mxu0 0.0
    %1728 = vmatprep.subr.mxu0 0.0
    %1729 = vmatpush1.msra.mxu0 0.0
    %1730 = vmatprep.subr.mxu0 0.0
    %1731 = vmatpush1.msra.mxu0 0.0
    %1732 = vmatprep.subr.mxu0 0.0
    %1733 = vmatpush1.msra.mxu0 0.0
    %1734 = vmatprep.mubr.f32.mxu0 0.0
    %1735 = vmatmul.mubr.f32.gmra.mrb[0].mxu0 %v1668
    %v1736 = vpop.f32.mrb[0].mxu0
    %v1737 = vadd.f32 0.0, %v1736
    %v1738 = vpop.f32.mrb[0].mxu0
    %1739 = vdwg.mxu0
    %v1740 = vadd.f32 %v1241, %v1737
    %v1741 = vxor.u32 %v1740, 2147483648
    %v1742 = vmul.f32 %v1741, 1.442695
    %v1743 = vpow.pop %v1742
    %v1744 = vadd.f32 %v1743, 1.0
    %v1745 = vrcp.pop %v1744
    %v1746 = vmul.f32 1.0, %v1745
    %v1747 = vtanh.pop %v1740
    %v1749 = vrot.slane %v1657, 6
    %v1751 = vmul.f32 %v1746, %v1749
    %1753 = vrot.lane.b32.xlu0 %v1747, 64
    %v1754 = vpop.permute.xlu0 %1753
    %v1756 = vmul.f32 %v1746, %v1754
    %1758 = vrot.lane.b32.xlu0 %v1756, 32
    %v1759 = vpop.permute.xlu0 %1758
    %v1761 = vadd.f32 %v1751, %v1759
    %v1762 = vtanh.pop %v1761
    %1764 = vrot.lane.b32.xlu0 %v1762, 64
    %v1765 = vpop.permute.xlu0 %1764
    %v1767 = vmul.f32 %v1746, %v1765
    %1769 = vrot.lane.b32.xlu0 %v1767, 32
    %v1770 = vpop.permute.xlu0 %1769
    %v1771 = vsel %vm212, %v1770, 0
    %1773 = vmatprep.subr.mxu0 0.0
    %1774 = vmatpush1.msra.mxu0 %v1245
    %1775 = vmatprep.subr.mxu0 0.0
    %1776 = vmatpush1.msra.mxu0 %v1246
    %1777 = vmatprep.subr.mxu0 0.0
    %1778 = vmatpush1.msra.mxu0 %v1247
    %1779 = vmatprep.subr.mxu0 0.0
    %1780 = vmatpush1.msra.mxu0 %v1248
    %1781 = vmatprep.subr.mxu0 0.0
    %1782 = vmatpush1.msra.mxu0 0.0
    %1783 = vmatprep.subr.mxu0 0.0
    %1784 = vmatpush1.msra.mxu0 0.0
    %1785 = vmatprep.subr.mxu0 0.0
    %1786 = vmatpush1.msra.mxu0 0.0
    %1787 = vmatprep.subr.mxu0 0.0
    %1788 = vmatpush1.msra.mxu0 0.0
    %1789 = vmatprep.subr.mxu0 0.0
    %1790 = vmatpush1.msra.mxu0 0.0
    %1791 = vmatprep.subr.mxu0 0.0
    %1792 = vmatpush1.msra.mxu0 0.0
    %1793 = vmatprep.subr.mxu0 0.0
    %1794 = vmatpush1.msra.mxu0 0.0
    %1795 = vmatprep.subr.mxu0 0.0
    %1796 = vmatpush1.msra.mxu0 0.0
    %1797 = vmatprep.subr.mxu0 0.0
    %1798 = vmatpush1.msra.mxu0 0.0
    %1799 = vmatprep.subr.mxu0 0.0
    %1800 = vmatpush1.msra.mxu0 0.0
    %1801 = vmatprep.subr.mxu0 0.0
    %1802 = vmatpush1.msra.mxu0 0.0
    %1803 = vmatprep.subr.mxu0 0.0
    %1804 = vmatpush1.msra.mxu0 0.0
    %1805 = vmatprep.subr.mxu0 0.0
    %1806 = vmatpush1.msra.mxu0 0.0
    %1807 = vmatprep.subr.mxu0 0.0
    %1808 = vmatpush1.msra.mxu0 0.0
    %1809 = vmatprep.subr.mxu0 0.0
    %1810 = vmatpush1.msra.mxu0 0.0
    %1811 = vmatprep.subr.mxu0 0.0
    %1812 = vmatpush1.msra.mxu0 0.0
    %1813 = vmatprep.subr.mxu0 0.0
    %1814 = vmatpush1.msra.mxu0 0.0
    %1815 = vmatprep.subr.mxu0 0.0
    %1816 = vmatpush1.msra.mxu0 0.0
    %1817 = vmatprep.subr.mxu0 0.0
    %1818 = vmatpush1.msra.mxu0 0.0
    %1819 = vmatprep.subr.mxu0 0.0
    %1820 = vmatpush1.msra.mxu0 0.0
    %1821 = vmatprep.subr.mxu0 0.0
    %1822 = vmatpush1.msra.mxu0 0.0
    %1823 = vmatprep.subr.mxu0 0.0
    %1824 = vmatpush1.msra.mxu0 0.0
    %1825 = vmatprep.subr.mxu0 0.0
    %1826 = vmatpush1.msra.mxu0 0.0
    %1827 = vmatprep.subr.mxu0 0.0
    %1828 = vmatpush1.msra.mxu0 0.0
    %1829 = vmatprep.subr.mxu0 0.0
    %1830 = vmatpush1.msra.mxu0 0.0
    %1831 = vmatprep.subr.mxu0 0.0
    %1832 = vmatpush1.msra.mxu0 0.0
    %1833 = vmatprep.subr.mxu0 0.0
    %1834 = vmatpush1.msra.mxu0 0.0
    %1835 = vmatprep.subr.mxu0 0.0
    %1836 = vmatpush1.msra.mxu0 0.0
    %1837 = vmatprep.mubr.f32.mxu0 0.0
    %1838 = vmatmul.mubr.f32.gmra.mrb[0].mxu0 %v1771
    %v1839 = vpop.f32.mrb[0].mxu0
    %v1840 = vadd.f32 0.0, %v1839
    %v1841 = vpop.f32.mrb[0].mxu0
    %1842 = vdwg.mxu0
    %v1844 = vrot.slane %v1840, 6
    %v1846 = vadd.f32 %v1241, %v1844
    %v1847 = vxor.u32 %v1846, 2147483648
    %v1848 = vmul.f32 %v1847, 1.442695
    %v1849 = vpow.pop %v1848
    %v1850 = vadd.f32 %v1849, 1.0
    %v1851 = vrcp.pop %v1850
    %v1852 = vmul.f32 1.0, %v1851
    %v1853 = vtanh.pop %v1846
    %v1855 = vrot.slane %v1761, 6
    %v1857 = vmul.f32 %v1852, %v1855
    %1859 = vrot.lane.b32.xlu0 %v1853, 64
    %v1860 = vpop.permute.xlu0 %1859
    %v1862 = vmul.f32 %v1852, %v1860
    %1864 = vrot.lane.b32.xlu0 %v1862, 32
    %v1865 = vpop.permute.xlu0 %1864
    %v1867 = vadd.f32 %v1857, %v1865
    %v1868 = vtanh.pop %v1867
    %1870 = vrot.lane.b32.xlu0 %v1868, 64
    %v1871 = vpop.permute.xlu0 %1870
    %v1873 = vmul.f32 %v1852, %v1871
    %v1875 = vrot.slane %v1873, 2
    %1876 = vrot.lane.b32.xlu0 %v1875, 32
    %v1877 = vpop.permute.xlu0 %1876
    %v1878 = vsel %vm212, %v1877, 0
    %1880 = vmatprep.subr.mxu0 0.0
    %1881 = vmatpush1.msra.mxu0 %v1245
    %1882 = vmatprep.subr.mxu0 0.0
    %1883 = vmatpush1.msra.mxu0 %v1246
    %1884 = vmatprep.subr.mxu0 0.0
    %1885 = vmatpush1.msra.mxu0 %v1247
    %1886 = vmatprep.subr.mxu0 0.0
    %1887 = vmatpush1.msra.mxu0 %v1248
    %1888 = vmatprep.subr.mxu0 0.0
    %1889 = vmatpush1.msra.mxu0 0.0
    %1890 = vmatprep.subr.mxu0 0.0
    %1891 = vmatpush1.msra.mxu0 0.0
    %1892 = vmatprep.subr.mxu0 0.0
    %1893 = vmatpush1.msra.mxu0 0.0
    %1894 = vmatprep.subr.mxu0 0.0
    %1895 = vmatpush1.msra.mxu0 0.0
    %1896 = vmatprep.subr.mxu0 0.0
    %1897 = vmatpush1.msra.mxu0 0.0
    %1898 = vmatprep.subr.mxu0 0.0
    %1899 = vmatpush1.msra.mxu0 0.0
    %1900 = vmatprep.subr.mxu0 0.0
    %1901 = vmatpush1.msra.mxu0 0.0
    %1902 = vmatprep.subr.mxu0 0.0
    %1903 = vmatpush1.msra.mxu0 0.0
    %1904 = vmatprep.subr.mxu0 0.0
    %1905 = vmatpush1.msra.mxu0 0.0
    %1906 = vmatprep.subr.mxu0 0.0
    %1907 = vmatpush1.msra.mxu0 0.0
    %1908 = vmatprep.subr.mxu0 0.0
    %1909 = vmatpush1.msra.mxu0 0.0
    %1910 = vmatprep.subr.mxu0 0.0
    %1911 = vmatpush1.msra.mxu0 0.0
    %1912 = vmatprep.subr.mxu0 0.0
    %1913 = vmatpush1.msra.mxu0 0.0
    %1914 = vmatprep.subr.mxu0 0.0
    %1915 = vmatpush1.msra.mxu0 0.0
    %1916 = vmatprep.subr.mxu0 0.0
    %1917 = vmatpush1.msra.mxu0 0.0
    %1918 = vmatprep.subr.mxu0 0.0
    %1919 = vmatpush1.msra.mxu0 0.0
    %1920 = vmatprep.subr.mxu0 0.0
    %1921 = vmatpush1.msra.mxu0 0.0
    %1922 = vmatprep.subr.mxu0 0.0
    %1923 = vmatpush1.msra.mxu0 0.0
    %1924 = vmatprep.subr.mxu0 0.0
    %1925 = vmatpush1.msra.mxu0 0.0
    %1926 = vmatprep.subr.mxu0 0.0
    %1927 = vmatpush1.msra.mxu0 0.0
    %1928 = vmatprep.subr.mxu0 0.0
    %1929 = vmatpush1.msra.mxu0 0.0
    %1930 = vmatprep.subr.mxu0 0.0
    %1931 = vmatpush1.msra.mxu0 0.0
    %1932 = vmatprep.subr.mxu0 0.0
    %1933 = vmatpush1.msra.mxu0 0.0
    %1934 = vmatprep.subr.mxu0 0.0
    %1935 = vmatpush1.msra.mxu0 0.0
    %1936 = vmatprep.subr.mxu0 0.0
    %1937 = vmatpush1.msra.mxu0 0.0
    %1938 = vmatprep.subr.mxu0 0.0
    %1939 = vmatpush1.msra.mxu0 0.0
    %1940 = vmatprep.subr.mxu0 0.0
    %1941 = vmatpush1.msra.mxu0 0.0
    %1942 = vmatprep.subr.mxu0 0.0
    %1943 = vmatpush1.msra.mxu0 0.0
    %1944 = vmatprep.mubr.f32.mxu0 0.0
    %1945 = vmatmul.mubr.f32.gmra.mrb[0].mxu0 %v1878
    %v1946 = vpop.f32.mrb[0].mxu0
    %v1947 = vadd.f32 0.0, %v1946
    %v1948 = vpop.f32.mrb[0].mxu0
    %1949 = vdwg.mxu0
    %v1951 = vrot.slane %v1947, 4
    %v1953 = vadd.f32 %v1241, %v1951
    %v1954 = vxor.u32 %v1953, 2147483648
    %v1955 = vmul.f32 %v1954, 1.442695
    %v1956 = vpow.pop %v1955
    %v1957 = vadd.f32 %v1956, 1.0
    %v1958 = vrcp.pop %v1957
    %v1959 = vmul.f32 1.0, %v1958
    %v1960 = vtanh.pop %v1953
    %v1962 = vrot.slane %v1867, 6
    %v1964 = vmul.f32 %v1959, %v1962
    %1966 = vrot.lane.b32.xlu0 %v1960, 64
    %v1967 = vpop.permute.xlu0 %1966
    %v1969 = vmul.f32 %v1959, %v1967
    %1971 = vrot.lane.b32.xlu0 %v1969, 32
    %v1972 = vpop.permute.xlu0 %1971
    %v1974 = vadd.f32 %v1964, %v1972
    %v1975 = vtanh.pop %v1974
    %1977 = vrot.lane.b32.xlu0 %v1975, 64
    %v1978 = vpop.permute.xlu0 %1977
    %v1980 = vmul.f32 %v1959, %v1978
    %v1982 = vrot.slane %v1980, 4
    %1983 = vrot.lane.b32.xlu0 %v1982, 32
    %v1984 = vpop.permute.xlu0 %1983
    %v1985 = vsel %vm212, %v1984, 0
    %1987 = vmatprep.subr.mxu0 0.0
    %1988 = vmatpush1.msra.mxu0 %v1245
    %1989 = vmatprep.subr.mxu0 0.0
    %1990 = vmatpush1.msra.mxu0 %v1246
    %1991 = vmatprep.subr.mxu0 0.0
    %1992 = vmatpush1.msra.mxu0 %v1247
    %1993 = vmatprep.subr.mxu0 0.0
    %1994 = vmatpush1.msra.mxu0 %v1248
    %1995 = vmatprep.subr.mxu0 0.0
    %1996 = vmatpush1.msra.mxu0 0.0
    %1997 = vmatprep.subr.mxu0 0.0
    %1998 = vmatpush1.msra.mxu0 0.0
    %1999 = vmatprep.subr.mxu0 0.0
    %2000 = vmatpush1.msra.mxu0 0.0
    %2001 = vmatprep.subr.mxu0 0.0
    %2002 = vmatpush1.msra.mxu0 0.0
    %2003 = vmatprep.subr.mxu0 0.0
    %2004 = vmatpush1.msra.mxu0 0.0
    %2005 = vmatprep.subr.mxu0 0.0
    %2006 = vmatpush1.msra.mxu0 0.0
    %2007 = vmatprep.subr.mxu0 0.0
    %2008 = vmatpush1.msra.mxu0 0.0
    %2009 = vmatprep.subr.mxu0 0.0
    %2010 = vmatpush1.msra.mxu0 0.0
    %2011 = vmatprep.subr.mxu0 0.0
    %2012 = vmatpush1.msra.mxu0 0.0
    %2013 = vmatprep.subr.mxu0 0.0
    %2014 = vmatpush1.msra.mxu0 0.0
    %2015 = vmatprep.subr.mxu0 0.0
    %2016 = vmatpush1.msra.mxu0 0.0
    %2017 = vmatprep.subr.mxu0 0.0
    %2018 = vmatpush1.msra.mxu0 0.0
    %2019 = vmatprep.subr.mxu0 0.0
    %2020 = vmatpush1.msra.mxu0 0.0
    %2021 = vmatprep.subr.mxu0 0.0
    %2022 = vmatpush1.msra.mxu0 0.0
    %2023 = vmatprep.subr.mxu0 0.0
    %2024 = vmatpush1.msra.mxu0 0.0
    %2025 = vmatprep.subr.mxu0 0.0
    %2026 = vmatpush1.msra.mxu0 0.0
    %2027 = vmatprep.subr.mxu0 0.0
    %2028 = vmatpush1.msra.mxu0 0.0
    %2029 = vmatprep.subr.mxu0 0.0
    %2030 = vmatpush1.msra.mxu0 0.0
    %2031 = vmatprep.subr.mxu0 0.0
    %2032 = vmatpush1.msra.mxu0 0.0
    %2033 = vmatprep.subr.mxu0 0.0
    %2034 = vmatpush1.msra.mxu0 0.0
    %2035 = vmatprep.subr.mxu0 0.0
    %2036 = vmatpush1.msra.mxu0 0.0
    %2037 = vmatprep.subr.mxu0 0.0
    %2038 = vmatpush1.msra.mxu0 0.0
    %2039 = vmatprep.subr.mxu0 0.0
    %2040 = vmatpush1.msra.mxu0 0.0
    %2041 = vmatprep.subr.mxu0 0.0
    %2042 = vmatpush1.msra.mxu0 0.0
    %2043 = vmatprep.subr.mxu0 0.0
    %2044 = vmatpush1.msra.mxu0 0.0
    %2045 = vmatprep.subr.mxu0 0.0
    %2046 = vmatpush1.msra.mxu0 0.0
    %2047 = vmatprep.subr.mxu0 0.0
    %2048 = vmatpush1.msra.mxu0 0.0
    %2049 = vmatprep.subr.mxu0 0.0
    %2050 = vmatpush1.msra.mxu0 0.0
    %2051 = vmatprep.mubr.f32.mxu0 0.0
    %2052 = vmatmul.mubr.f32.gmra.mrb[0].mxu0 %v1985
    %v2053 = vpop.f32.mrb[0].mxu0
    %v2054 = vadd.f32 0.0, %v2053
    %v2055 = vpop.f32.mrb[0].mxu0
    %2056 = vdwg.mxu0
    %v2058 = vrot.slane %v2054, 2
    %v2060 = vadd.f32 %v1241, %v2058
    %v2061 = vxor.u32 %v2060, 2147483648
    %v2062 = vmul.f32 %v2061, 1.442695
    %v2063 = vpow.pop %v2062
    %v2064 = vadd.f32 %v2063, 1.0
    %v2065 = vrcp.pop %v2064
    %v2066 = vmul.f32 1.0, %v2065
    %v2067 = vtanh.pop %v2060
    %v2069 = vrot.slane %v1974, 6
    %v2071 = vmul.f32 %v2066, %v2069
    %2073 = vrot.lane.b32.xlu0 %v2067, 64
    %v2074 = vpop.permute.xlu0 %2073
    %v2076 = vmul.f32 %v2066, %v2074
    %2078 = vrot.lane.b32.xlu0 %v2076, 32
    %v2079 = vpop.permute.xlu0 %2078
    %v2081 = vadd.f32 %v2071, %v2079
    %v2082 = vtanh.pop %v2081
    %2084 = vrot.lane.b32.xlu0 %v2082, 64
    %v2085 = vpop.permute.xlu0 %2084
    %v2087 = vmul.f32 %v2066, %v2085
    %v2089 = vunpack.c.l.s4 1966171168
    %v2090 = vunpack.c.0.s8 %v2089
    %v2091 = vlaneseq
    %v2092 = vshrl.u32 %v2091, 7
    %v2093 = vsub.s32 %v2090, %v2092
    %v2094 = vrot.slane %v1343, %v2093
    %v2095 = vcombine.high %v2094, %v2094
    %v2097 = vunpack.c.l.s4 1966171168
    %v2098 = vunpack.c.0.s8 %v2097
    %v2099 = vlaneseq
    %v2100 = vshrl.u32 %v2099, 7
    %v2101 = vsub.s32 %v2098, %v2100
    %v2102 = vrot.slane %v2094, %v2101
    %v2104 = vunpack.c.l.s4 1966171168
    %v2105 = vunpack.c.0.s8 %v2104
    %v2106 = vlaneseq
    %v2107 = vshrl.u32 %v2106, 7
    %v2108 = vsub.s32 %v2105, %v2107
    %v2109 = vrot.slane %v2095, %v2108
    %v2113 = vunpack.c.l.s4 1966171168
    %v2114 = vunpack.c.0.s8 %v2113
    %v2115 = vlaneseq
    %v2116 = vshrl.u32 %v2115, 7
    %v2117 = vsub.s32 %v2114, %v2116
    %v2118 = vrot.slane %v1449, %v2117
    %v2119 = vcombine.high %v2118, %v2118
    %v2121 = vunpack.c.l.s4 1966171168
    %v2122 = vunpack.c.0.s8 %v2121
    %v2123 = vlaneseq
    %v2124 = vshrl.u32 %v2123, 7
    %v2125 = vsub.s32 %v2122, %v2124
    %v2126 = vrot.slane %v2118, %v2125
    %v2128 = vunpack.c.l.s4 1966171168
    %v2129 = vunpack.c.0.s8 %v2128
    %v2130 = vlaneseq
    %v2131 = vshrl.u32 %v2130, 7
    %v2132 = vsub.s32 %v2129, %v2131
    %v2133 = vrot.slane %v2119, %v2132
    %v2134 = vcombine.high %v2126, %v2126
    %v2135 = vcombine.high %v2133, %v2133
    %v2136 = vcombine.high %v1556, %v1556
    %v2138 = vunpack.c.l.s4 1966171168
    %v2139 = vunpack.c.0.s8 %v2138
    %v2140 = vlaneseq
    %v2141 = vshrl.u32 %v2140, 7
    %v2142 = vsub.s32 %v2139, %v2141
    %v2143 = vrot.slane %v2136, %v2142
    %v2144 = vcombine.high %v2143, %v2143
    %v2146 = vunpack.c.l.s4 1966171168
    %v2147 = vunpack.c.0.s8 %v2146
    %v2148 = vlaneseq
    %v2149 = vshrl.u32 %v2148, 7
    %v2150 = vsub.s32 %v2147, %v2149
    %v2151 = vrot.slane %v2143, %v2150
    %v2153 = vunpack.c.l.s4 1966171168
    %v2154 = vunpack.c.0.s8 %v2153
    %v2155 = vlaneseq
    %v2156 = vshrl.u32 %v2155, 7
    %v2157 = vsub.s32 %v2154, %v2156
    %v2158 = vrot.slane %v2144, %v2157
    %v2159 = vcombine.high %v1663, %v1663
    %v2161 = vunpack.c.l.s4 1966171168
    %v2162 = vunpack.c.0.s8 %v2161
    %v2163 = vlaneseq
    %v2164 = vshrl.u32 %v2163, 7
    %v2165 = vsub.s32 %v2162, %v2164
    %v2166 = vrot.slane %v2159, %v2165
    %v2167 = vcombine.high %v2166, %v2166
    %v2169 = vunpack.c.l.s4 1966171168
    %v2170 = vunpack.c.0.s8 %v2169
    %v2171 = vlaneseq
    %v2172 = vshrl.u32 %v2171, 7
    %v2173 = vsub.s32 %v2170, %v2172
    %v2174 = vrot.slane %v2166, %v2173
    %v2176 = vunpack.c.l.s4 1966171168
    %v2177 = vunpack.c.0.s8 %v2176
    %v2178 = vlaneseq
    %v2179 = vshrl.u32 %v2178, 7
    %v2180 = vsub.s32 %v2177, %v2179
    %v2181 = vrot.slane %v2167, %v2180
    %v2182 = vcombine.high %v2174, %v2174
    %v2183 = vcombine.high %v2181, %v2181
    %v2185 = vunpack.c.l.s4 1966171168
    %v2186 = vunpack.c.0.s8 %v2185
    %v2187 = vlaneseq
    %v2188 = vshrl.u32 %v2187, 7
    %v2189 = vsub.s32 %v2186, %v2188
    %v2190 = vrot.slane %v1767, %v2189
    %v2191 = vcombine.high %v2190, %v2190
    %v2193 = vunpack.c.l.s4 1966171168
    %v2194 = vunpack.c.0.s8 %v2193
    %v2195 = vlaneseq
    %v2196 = vshrl.u32 %v2195, 7
    %v2197 = vsub.s32 %v2194, %v2196
    %v2198 = vrot.slane %v2190, %v2197
    %v2200 = vunpack.c.l.s4 1966171168
    %v2201 = vunpack.c.0.s8 %v2200
    %v2202 = vlaneseq
    %v2203 = vshrl.u32 %v2202, 7
    %v2204 = vsub.s32 %v2201, %v2203
    %v2205 = vrot.slane %v2191, %v2204
    %v2207 = vunpack.c.l.s4 1966171168
    %v2208 = vunpack.c.0.s8 %v2207
    %v2209 = vlaneseq
    %v2210 = vshrl.u32 %v2209, 7
    %v2211 = vsub.s32 %v2208, %v2210
    %v2212 = vrot.slane %v1873, %v2211
    %v2213 = vcombine.high %v2212, %v2212
    %v2215 = vunpack.c.l.s4 1966171168
    %v2216 = vunpack.c.0.s8 %v2215
    %v2217 = vlaneseq
    %v2218 = vshrl.u32 %v2217, 7
    %v2219 = vsub.s32 %v2216, %v2218
    %v2220 = vrot.slane %v2212, %v2219
    %v2222 = vunpack.c.l.s4 1966171168
    %v2223 = vunpack.c.0.s8 %v2222
    %v2224 = vlaneseq
    %v2225 = vshrl.u32 %v2224, 7
    %v2226 = vsub.s32 %v2223, %v2225
    %v2227 = vrot.slane %v2213, %v2226
    %v2228 = vcombine.high %v2220, %v2220
    %v2229 = vcombine.high %v2227, %v2227
    %v2230 = vcombine.high %v1980, %v1980
    %v2232 = vunpack.c.l.s4 1966171168
    %v2233 = vunpack.c.0.s8 %v2232
    %v2234 = vlaneseq
    %v2235 = vshrl.u32 %v2234, 7
    %v2236 = vsub.s32 %v2233, %v2235
    %v2237 = vrot.slane %v2230, %v2236
    %v2238 = vcombine.high %v2237, %v2237
    %v2240 = vunpack.c.l.s4 1966171168
    %v2241 = vunpack.c.0.s8 %v2240
    %v2242 = vlaneseq
    %v2243 = vshrl.u32 %v2242, 7
    %v2244 = vsub.s32 %v2241, %v2243
    %v2245 = vrot.slane %v2237, %v2244
    %v2247 = vunpack.c.l.s4 1966171168
    %v2248 = vunpack.c.0.s8 %v2247
    %v2249 = vlaneseq
    %v2250 = vshrl.u32 %v2249, 7
    %v2251 = vsub.s32 %v2248, %v2250
    %v2252 = vrot.slane %v2238, %v2251
    %v2254 = vcombine.high %v2087, %v2087
    %v2256 = vunpack.c.l.s4 1966171168
    %v2257 = vunpack.c.0.s8 %v2256
    %v2258 = vlaneseq
    %v2259 = vshrl.u32 %v2258, 7
    %v2260 = vsub.s32 %v2257, %v2259
    %v2261 = vrot.slane %v2254, %v2260
    %v2262 = vcombine.high %v2261, %v2261
    %v2264 = vunpack.c.l.s4 1966171168
    %v2265 = vunpack.c.0.s8 %v2264
    %v2266 = vlaneseq
    %v2267 = vshrl.u32 %v2266, 7
    %v2268 = vsub.s32 %v2265, %v2267
    %v2269 = vrot.slane %v2261, %v2268
    %v2271 = vunpack.c.l.s4 1966171168
    %v2272 = vunpack.c.0.s8 %v2271
    %v2273 = vlaneseq
    %v2274 = vshrl.u32 %v2273, 7
    %v2275 = vsub.s32 %v2272, %v2274
    %v2276 = vrot.slane %v2262, %v2275
    %v2277 = vcombine.high %v2269, %v2269
    %v2278 = vcombine.high %v2276, %v2276
    %v2279 = vlaneseq
    %v2280 = vshrl.u32 %v2279, 7
    %v2281 = vsub.s32 0, %v2280
    %v2282 = vrot.slane %v2134, %v2281
    %v2283 = vlaneseq
    %v2284 = vshrl.u32 %v2283, 7
    %v2285 = vsub.s32 0, %v2284
    %v2286 = vrot.slane %v2135, %v2285
    %v2289 = vlaneseq
    %v2290 = vshrl.u32 %v2289, 7
    %v2291 = vsub.s32 0, %v2290
    %v2292 = vrot.slane %v2151, %v2291
    %v2293 = vlaneseq
    %v2294 = vshrl.u32 %v2293, 7
    %v2295 = vsub.s32 0, %v2294
    %v2296 = vrot.slane %v2158, %v2295
    %v2299 = vlaneseq
    %v2300 = vshrl.u32 %v2299, 7
    %v2301 = vsub.s32 0, %v2300
    %v2302 = vrot.slane %v2182, %v2301
    %v2303 = vlaneseq
    %v2304 = vshrl.u32 %v2303, 7
    %v2305 = vsub.s32 0, %v2304
    %v2306 = vrot.slane %v2183, %v2305
    %v2309 = vlaneseq
    %v2310 = vshrl.u32 %v2309, 7
    %v2311 = vsub.s32 0, %v2310
    %v2312 = vrot.slane %v2198, %v2311
    %v2313 = vlaneseq
    %v2314 = vshrl.u32 %v2313, 7
    %v2315 = vsub.s32 0, %v2314
    %v2316 = vrot.slane %v2205, %v2315
    %v2319 = vlaneseq
    %v2320 = vshrl.u32 %v2319, 7
    %v2321 = vsub.s32 0, %v2320
    %v2322 = vrot.slane %v2228, %v2321
    %v2323 = vlaneseq
    %v2324 = vshrl.u32 %v2323, 7
    %v2325 = vsub.s32 0, %v2324
    %v2326 = vrot.slane %v2229, %v2325
    %v2329 = vlaneseq
    %v2330 = vshrl.u32 %v2329, 7
    %v2331 = vsub.s32 0, %v2330
    %v2332 = vrot.slane %v2245, %v2331
    %v2333 = vlaneseq
    %v2334 = vshrl.u32 %v2333, 7
    %v2335 = vsub.s32 0, %v2334
    %v2336 = vrot.slane %v2252, %v2335
    %v2339 = vlaneseq
    %v2340 = vshrl.u32 %v2339, 7
    %v2341 = vsub.s32 0, %v2340
    %v2342 = vrot.slane %v2277, %v2341
    %v2343 = vlaneseq
    %v2344 = vshrl.u32 %v2343, 7
    %v2345 = vsub.s32 0, %v2344
    %v2346 = vrot.slane %v2278, %v2345
    %vm2349 = vcmask 1040384
    %v2350 = vsel %vm2349, %v2102, %v2282
    %v2351 = vsel %vm2349, %v2109, %v2286
    %v2352 = vsel %vm1140, %v2350, %v2292
    %v2353 = vsel %vm1140, %v2351, %v2296
    %vm2354 = vcmask 1042432
    %v2355 = vsel %vm2354, %v2352, %v2302
    %v2356 = vsel %vm2354, %v2353, %v2306
    %v2357 = vsel %vm1142, %v2355, %v2312
    %v2358 = vsel %vm1142, %v2356, %v2316
    %vm2359 = vcmask 1044480
    %v2360 = vsel %vm2359, %v2357, %v2322
    %v2361 = vsel %vm2359, %v2358, %v2326
    %v2362 = vsel %vm1144, %v2360, %v2332
    %v2363 = vsel %vm1144, %v2361, %v2336
    %vm2364 = vcmask 1046528
    %v2365 = vsel %vm2364, %v2362, %v2342
    %v2366 = vsel %vm2364, %v2363, %v2346
    %v2367 = vld [vmem:[#allocation9] sm:$0xff]
    %v2368 = vld [vmem:[#allocation9 + $0x8] sm:$0xff]
    %v2369 = vld [vmem:[#allocation9 + $0x10] sm:$0xff]
    %v2370 = vld [vmem:[#allocation9 + $0x18] sm:$0xff]
    %v2371 = vld [vmem:[%s8] sm:$0x1]
    %v2373 = vlaneseq
    %v2374 = vshrl.u32 %v2373, 7
    %v2375 = vsub.s32 0, %v2374
    %v2376 = vrot.slane %v2371, %v2375
    %2380 = vrot.lane.b32.xlu0 %v2365, 32
    %v2381 = vpop.permute.xlu0 %2380
    %2382 = vrot.lane.b32.xlu0 %v2366, 32
    %v2383 = vpop.permute.xlu0 %2382
    %v2384 = vsel %vm212, %v2381, 0
    %v2386 = vsel %vm212, %v2383, 0
    %2388 = vmatprep.subr.mxu0 0.0
    %2389 = vmatpush1.msra.mxu0 %v2367
    %2390 = vmatprep.subr.mxu0 0.0
    %2391 = vmatpush1.msra.mxu0 %v2368
    %2392 = vmatprep.subr.mxu0 0.0
    %2393 = vmatpush1.msra.mxu0 %v2369
    %2394 = vmatprep.subr.mxu0 0.0
    %2395 = vmatpush1.msra.mxu0 %v2370
    %2396 = vmatprep.subr.mxu0 0.0
    %2397 = vmatpush1.msra.mxu0 0.0
    %2398 = vmatprep.subr.mxu0 0.0
    %2399 = vmatpush1.msra.mxu0 0.0
    %2400 = vmatprep.subr.mxu0 0.0
    %2401 = vmatpush1.msra.mxu0 0.0
    %2402 = vmatprep.subr.mxu0 0.0
    %2403 = vmatpush1.msra.mxu0 0.0
    %2404 = vmatprep.subr.mxu0 0.0
    %2405 = vmatpush1.msra.mxu0 0.0
    %2406 = vmatprep.subr.mxu0 0.0
    %2407 = vmatpush1.msra.mxu0 0.0
    %2408 = vmatprep.subr.mxu0 0.0
    %2409 = vmatpush1.msra.mxu0 0.0
    %2410 = vmatprep.subr.mxu0 0.0
    %2411 = vmatpush1.msra.mxu0 0.0
    %2412 = vmatprep.subr.mxu0 0.0
    %2413 = vmatpush1.msra.mxu0 0.0
    %2414 = vmatprep.subr.mxu0 0.0
    %2415 = vmatpush1.msra.mxu0 0.0
    %2416 = vmatprep.subr.mxu0 0.0
    %2417 = vmatpush1.msra.mxu0 0.0
    %2418 = vmatprep.subr.mxu0 0.0
    %2419 = vmatpush1.msra.mxu0 0.0
    %2420 = vmatprep.subr.mxu0 0.0
    %2421 = vmatpush1.msra.mxu0 0.0
    %2422 = vmatprep.subr.mxu0 0.0
    %2423 = vmatpush1.msra.mxu0 0.0
    %2424 = vmatprep.subr.mxu0 0.0
    %2425 = vmatpush1.msra.mxu0 0.0
    %2426 = vmatprep.subr.mxu0 0.0
    %2427 = vmatpush1.msra.mxu0 0.0
    %2428 = vmatprep.subr.mxu0 0.0
    %2429 = vmatpush1.msra.mxu0 0.0
    %2430 = vmatprep.subr.mxu0 0.0
    %2431 = vmatpush1.msra.mxu0 0.0
    %2432 = vmatprep.subr.mxu0 0.0
    %2433 = vmatpush1.msra.mxu0 0.0
    %2434 = vmatprep.subr.mxu0 0.0
    %2435 = vmatpush1.msra.mxu0 0.0
    %2436 = vmatprep.subr.mxu0 0.0
    %2437 = vmatpush1.msra.mxu0 0.0
    %2438 = vmatprep.subr.mxu0 0.0
    %2439 = vmatpush1.msra.mxu0 0.0
    %2440 = vmatprep.subr.mxu0 0.0
    %2441 = vmatpush1.msra.mxu0 0.0
    %2442 = vmatprep.subr.mxu0 0.0
    %2443 = vmatpush1.msra.mxu0 0.0
    %2444 = vmatprep.subr.mxu0 0.0
    %2445 = vmatpush1.msra.mxu0 0.0
    %2446 = vmatprep.subr.mxu0 0.0
    %2447 = vmatpush1.msra.mxu0 0.0
    %2448 = vmatprep.subr.mxu0 0.0
    %2449 = vmatpush1.msra.mxu0 0.0
    %2450 = vmatprep.subr.mxu0 0.0
    %2451 = vmatpush1.msra.mxu0 0.0
    %2452 = vmatprep.mubr.f32.mxu0 0.0
    %2453 = vmatmul.mubr.f32.gmra.mrb[0].mxu0 %v2384
    %v2454 = vpop.f32.mrb[0].mxu0
    %v2455 = vadd.f32 %v2376, %v2454
    %v2456 = vpop.f32.mrb[0].mxu0
    %2457 = vmatprep.mubr.f32.mxu0 0.0
    %2458 = vmatmul.mubr.f32.gmra.mrb[0].mxu0 %v2386
    %v2459 = vpop.f32.mrb[0].mxu0
    %v2460 = vadd.f32 %v2376, %v2459
    %v2461 = vpop.f32.mrb[0].mxu0
    %2462 = vdwg.mxu0
    %v2463 = vld [vmem:[#allocation2] sm:$0xff]
    %v2464 = vld [vmem:[#allocation2 + $0x8] sm:$0xff]
    %v2465 = vld [vmem:[#allocation7] sm:$0xff]
    %v2466 = vld [vmem:[#allocation7 + $0x8] sm:$0xff]
    %v2467 = vld [vmem:[#allocation7 + $0x10] sm:$0xff]
    %v2468 = vld [vmem:[#allocation7 + $0x18] sm:$0xff]
    %v2470 = vsel %vm212, %v2463, 0
    %v2473 = vsel %vm212, %v2464, 0
    %2475 = vmatprep.subr.mxu0 0.0
    %2476 = vmatpush1.msra.mxu0 %v2465
    %2477 = vmatprep.subr.mxu0 0.0
    %2478 = vmatpush1.msra.mxu0 %v2466
    %2479 = vmatprep.subr.mxu0 0.0
    %2480 = vmatpush1.msra.mxu0 %v2467
    %2481 = vmatprep.subr.mxu0 0.0
    %2482 = vmatpush1.msra.mxu0 %v2468
    %2483 = vmatprep.subr.mxu0 0.0
    %2484 = vmatpush1.msra.mxu0 0.0
    %2485 = vmatprep.subr.mxu0 0.0
    %2486 = vmatpush1.msra.mxu0 0.0
    %2487 = vmatprep.subr.mxu0 0.0
    %2488 = vmatpush1.msra.mxu0 0.0
    %2489 = vmatprep.subr.mxu0 0.0
    %2490 = vmatpush1.msra.mxu0 0.0
    %2491 = vmatprep.subr.mxu0 0.0
    %2492 = vmatpush1.msra.mxu0 0.0
    %2493 = vmatprep.subr.mxu0 0.0
    %2494 = vmatpush1.msra.mxu0 0.0
    %2495 = vmatprep.subr.mxu0 0.0
    %2496 = vmatpush1.msra.mxu0 0.0
    %2497 = vmatprep.subr.mxu0 0.0
    %2498 = vmatpush1.msra.mxu0 0.0
    %2499 = vmatprep.subr.mxu0 0.0
    %2500 = vmatpush1.msra.mxu0 0.0
    %2501 = vmatprep.subr.mxu0 0.0
    %2502 = vmatpush1.msra.mxu0 0.0
    %2503 = vmatprep.subr.mxu0 0.0
    %2504 = vmatpush1.msra.mxu0 0.0
    %2505 = vmatprep.subr.mxu0 0.0
    %2506 = vmatpush1.msra.mxu0 0.0
    %2507 = vmatprep.subr.mxu0 0.0
    %2508 = vmatpush1.msra.mxu0 0.0
    %2509 = vmatprep.subr.mxu0 0.0
    %2510 = vmatpush1.msra.mxu0 0.0
    %2511 = vmatprep.subr.mxu0 0.0
    %2512 = vmatpush1.msra.mxu0 0.0
    %2513 = vmatprep.subr.mxu0 0.0
    %2514 = vmatpush1.msra.mxu0 0.0
    %2515 = vmatprep.subr.mxu0 0.0
    %2516 = vmatpush1.msra.mxu0 0.0
    %2517 = vmatprep.subr.mxu0 0.0
    %2518 = vmatpush1.msra.mxu0 0.0
    %2519 = vmatprep.subr.mxu0 0.0
    %2520 = vmatpush1.msra.mxu0 0.0
    %2521 = vmatprep.subr.mxu0 0.0
    %2522 = vmatpush1.msra.mxu0 0.0
    %2523 = vmatprep.subr.mxu0 0.0
    %2524 = vmatpush1.msra.mxu0 0.0
    %2525 = vmatprep.subr.mxu0 0.0
    %2526 = vmatpush1.msra.mxu0 0.0
    %2527 = vmatprep.subr.mxu0 0.0
    %2528 = vmatpush1.msra.mxu0 0.0
    %2529 = vmatprep.subr.mxu0 0.0
    %2530 = vmatpush1.msra.mxu0 0.0
    %2531 = vmatprep.subr.mxu0 0.0
    %2532 = vmatpush1.msra.mxu0 0.0
    %2533 = vmatprep.subr.mxu0 0.0
    %2534 = vmatpush1.msra.mxu0 0.0
    %2535 = vmatprep.subr.mxu0 0.0
    %2536 = vmatpush1.msra.mxu0 0.0
    %2537 = vmatprep.subr.mxu0 0.0
    %2538 = vmatpush1.msra.mxu0 0.0
    %2539 = vmatprep.mubr.f32.mxu0 0.0
    %2540 = vmatmul.mubr.f32.gmra.mrb[0].mxu0 %v2470
    %v2541 = vpop.f32.mrb[0].mxu0
    %v2542 = vadd.f32 0.0, %v2541
    %v2543 = vpop.f32.mrb[0].mxu0
    %2544 = vmatprep.mubr.f32.mxu0 0.0
    %2545 = vmatmul.mubr.f32.gmra.mrb[0].mxu0 %v2473
    %v2546 = vpop.f32.mrb[0].mxu0
    %v2547 = vadd.f32 0.0, %v2546
    %v2548 = vpop.f32.mrb[0].mxu0
    %2549 = vdwg.mxu0
    %v2552 = vcombine.high %v2542, %v2542
    %v2554 = vunpack.c.l.s4 1966171168
    %v2555 = vunpack.c.0.s8 %v2554
    %v2556 = vlaneseq
    %v2557 = vshrl.u32 %v2556, 7
    %v2558 = vsub.s32 %v2555, %v2557
    %v2559 = vrot.slane %v2542, %v2558
    %v2561 = vunpack.c.l.s4 1966171168
    %v2562 = vunpack.c.0.s8 %v2561
    %v2563 = vlaneseq
    %v2564 = vshrl.u32 %v2563, 7
    %v2565 = vsub.s32 %v2562, %v2564
    %v2566 = vrot.slane %v2552, %v2565
    %v2567 = vcombine.high %v2559, %v2559
    %v2568 = vcombine.high %v2566, %v2566
    %v2570 = vunpack.c.l.s4 1966171168
    %v2571 = vunpack.c.0.s8 %v2570
    %v2572 = vlaneseq
    %v2573 = vshrl.u32 %v2572, 7
    %v2574 = vsub.s32 %v2571, %v2573
    %v2575 = vrot.slane %v2559, %v2574
    %v2577 = vunpack.c.l.s4 1966171168
    %v2578 = vunpack.c.0.s8 %v2577
    %v2579 = vlaneseq
    %v2580 = vshrl.u32 %v2579, 7
    %v2581 = vsub.s32 %v2578, %v2580
    %v2582 = vrot.slane %v2566, %v2581
    %v2584 = vunpack.c.l.s4 1966171168
    %v2585 = vunpack.c.0.s8 %v2584
    %v2586 = vlaneseq
    %v2587 = vshrl.u32 %v2586, 7
    %v2588 = vsub.s32 %v2585, %v2587
    %v2589 = vrot.slane %v2567, %v2588
    %v2591 = vunpack.c.l.s4 1966171168
    %v2592 = vunpack.c.0.s8 %v2591
    %v2593 = vlaneseq
    %v2594 = vshrl.u32 %v2593, 7
    %v2595 = vsub.s32 %v2592, %v2594
    %v2596 = vrot.slane %v2568, %v2595
    %v2597 = vcombine.high %v2575, %v2575
    %v2598 = vcombine.high %v2582, %v2582
    %v2599 = vcombine.high %v2589, %v2589
    %v2600 = vcombine.high %v2596, %v2596
    %v2601 = vcombine.high %v2547, %v2547
    %v2603 = vunpack.c.l.s4 1966171168
    %v2604 = vunpack.c.0.s8 %v2603
    %v2605 = vlaneseq
    %v2606 = vshrl.u32 %v2605, 7
    %v2607 = vsub.s32 %v2604, %v2606
    %v2608 = vrot.slane %v2547, %v2607
    %v2610 = vunpack.c.l.s4 1966171168
    %v2611 = vunpack.c.0.s8 %v2610
    %v2612 = vlaneseq
    %v2613 = vshrl.u32 %v2612, 7
    %v2614 = vsub.s32 %v2611, %v2613
    %v2615 = vrot.slane %v2601, %v2614
    %v2616 = vcombine.high %v2608, %v2608
    %v2617 = vcombine.high %v2615, %v2615
    %v2619 = vunpack.c.l.s4 1966171168
    %v2620 = vunpack.c.0.s8 %v2619
    %v2621 = vlaneseq
    %v2622 = vshrl.u32 %v2621, 7
    %v2623 = vsub.s32 %v2620, %v2622
    %v2624 = vrot.slane %v2608, %v2623
    %v2626 = vunpack.c.l.s4 1966171168
    %v2627 = vunpack.c.0.s8 %v2626
    %v2628 = vlaneseq
    %v2629 = vshrl.u32 %v2628, 7
    %v2630 = vsub.s32 %v2627, %v2629
    %v2631 = vrot.slane %v2615, %v2630
    %v2633 = vunpack.c.l.s4 1966171168
    %v2634 = vunpack.c.0.s8 %v2633
    %v2635 = vlaneseq
    %v2636 = vshrl.u32 %v2635, 7
    %v2637 = vsub.s32 %v2634, %v2636
    %v2638 = vrot.slane %v2616, %v2637
    %v2640 = vunpack.c.l.s4 1966171168
    %v2641 = vunpack.c.0.s8 %v2640
    %v2642 = vlaneseq
    %v2643 = vshrl.u32 %v2642, 7
    %v2644 = vsub.s32 %v2641, %v2643
    %v2645 = vrot.slane %v2617, %v2644
    %v2646 = vcombine.high %v2624, %v2624
    %v2647 = vcombine.high %v2631, %v2631
    %v2648 = vcombine.high %v2638, %v2638
    %v2649 = vcombine.high %v2645, %v2645
    %v2650 = vlaneseq
    %v2651 = vshrl.u32 %v2650, 7
    %v2652 = vsub.s32 0, %v2651
    %v2653 = vrot.slane %v2575, %v2652
    %v2654 = vlaneseq
    %v2655 = vshrl.u32 %v2654, 7
    %v2656 = vsub.s32 0, %v2655
    %v2657 = vrot.slane %v2589, %v2656
    %v2658 = vlaneseq
    %v2659 = vshrl.u32 %v2658, 7
    %v2660 = vsub.s32 0, %v2659
    %v2661 = vrot.slane %v2597, %v2660
    %v2662 = vlaneseq
    %v2663 = vshrl.u32 %v2662, 7
    %v2664 = vsub.s32 0, %v2663
    %v2665 = vrot.slane %v2599, %v2664
    %v2666 = vlaneseq
    %v2667 = vshrl.u32 %v2666, 7
    %v2668 = vsub.s32 0, %v2667
    %v2669 = vrot.slane %v2582, %v2668
    %v2670 = vlaneseq
    %v2671 = vshrl.u32 %v2670, 7
    %v2672 = vsub.s32 0, %v2671
    %v2673 = vrot.slane %v2596, %v2672
    %v2674 = vlaneseq
    %v2675 = vshrl.u32 %v2674, 7
    %v2676 = vsub.s32 0, %v2675
    %v2677 = vrot.slane %v2598, %v2676
    %v2678 = vlaneseq
    %v2679 = vshrl.u32 %v2678, 7
    %v2680 = vsub.s32 0, %v2679
    %v2681 = vrot.slane %v2600, %v2680
    %v2682 = vlaneseq
    %v2683 = vshrl.u32 %v2682, 7
    %v2684 = vsub.s32 0, %v2683
    %v2685 = vrot.slane %v2624, %v2684
    %v2686 = vlaneseq
    %v2687 = vshrl.u32 %v2686, 7
    %v2688 = vsub.s32 0, %v2687
    %v2689 = vrot.slane %v2638, %v2688
    %v2690 = vlaneseq
    %v2691 = vshrl.u32 %v2690, 7
    %v2692 = vsub.s32 0, %v2691
    %v2693 = vrot.slane %v2646, %v2692
    %v2694 = vlaneseq
    %v2695 = vshrl.u32 %v2694, 7
    %v2696 = vsub.s32 0, %v2695
    %v2697 = vrot.slane %v2648, %v2696
    %v2698 = vlaneseq
    %v2699 = vshrl.u32 %v2698, 7
    %v2700 = vsub.s32 0, %v2699
    %v2701 = vrot.slane %v2631, %v2700
    %v2702 = vlaneseq
    %v2703 = vshrl.u32 %v2702, 7
    %v2704 = vsub.s32 0, %v2703
    %v2705 = vrot.slane %v2645, %v2704
    %v2706 = vlaneseq
    %v2707 = vshrl.u32 %v2706, 7
    %v2708 = vsub.s32 0, %v2707
    %v2709 = vrot.slane %v2647, %v2708
    %v2710 = vlaneseq
    %v2711 = vshrl.u32 %v2710, 7
    %v2712 = vsub.s32 0, %v2711
    %v2713 = vrot.slane %v2649, %v2712
    %v2730 = vadd.f32 %v2653, %v2455
    %v2731 = vadd.f32 %v2657, %v2455
    %v2732 = vadd.f32 %v2661, %v2455
    %v2733 = vadd.f32 %v2665, %v2455
    %v2734 = vadd.f32 %v2669, %v2455
    %v2735 = vadd.f32 %v2673, %v2455
    %v2736 = vadd.f32 %v2677, %v2455
    %v2737 = vadd.f32 %v2681, %v2455
    %v2738 = vadd.f32 %v2685, %v2460
    %v2739 = vadd.f32 %v2689, %v2460
    %v2740 = vadd.f32 %v2693, %v2460
    %v2741 = vadd.f32 %v2697, %v2460
    %v2742 = vadd.f32 %v2701, %v2460
    %v2743 = vadd.f32 %v2705, %v2460
    %v2744 = vadd.f32 %v2709, %v2460
    %v2745 = vadd.f32 %v2713, %v2460
    %v2746 = vtanh.pop %v2730
    %v2747 = vtanh.pop %v2731
    %v2748 = vtanh.pop %v2732
    %v2749 = vtanh.pop %v2733
    %v2750 = vtanh.pop %v2734
    %v2751 = vtanh.pop %v2735
    %v2752 = vtanh.pop %v2736
    %v2753 = vtanh.pop %v2737
    %v2754 = vtanh.pop %v2738
    %v2755 = vtanh.pop %v2739
    %v2756 = vtanh.pop %v2740
    %v2757 = vtanh.pop %v2741
    %v2758 = vtanh.pop %v2742
    %v2759 = vtanh.pop %v2743
    %v2760 = vtanh.pop %v2744
    %v2761 = vtanh.pop %v2745
    %v2762 = vld [vmem:[%s9] sm:$0xff]
    %v2763 = vld [vmem:[%s9 + $0x8] sm:$0xff]
    %v2764 = vld [vmem:[%s9 + $0x10] sm:$0xff]
    %v2765 = vld [vmem:[%s9 + $0x18] sm:$0xff]
    %v2767 = vsel %vm212, %v2746, 0
    %v2770 = vsel %vm212, %v2747, 0
    %v2773 = vsel %vm212, %v2748, 0
    %v2776 = vsel %vm212, %v2749, 0
    %v2779 = vsel %vm212, %v2750, 0
    %v2782 = vsel %vm212, %v2751, 0
    %v2785 = vsel %vm212, %v2752, 0
    %v2788 = vsel %vm212, %v2753, 0
    %v2791 = vsel %vm212, %v2754, 0
    %v2794 = vsel %vm212, %v2755, 0
    %v2797 = vsel %vm212, %v2756, 0
    %v2800 = vsel %vm212, %v2757, 0
    %v2803 = vsel %vm212, %v2758, 0
    %v2806 = vsel %vm212, %v2759, 0
    %v2809 = vsel %vm212, %v2760, 0
    %v2812 = vsel %vm212, %v2761, 0
    %2814 = vmatprep.subr.mxu0 0.0
    %2815 = vmatpush1.msra.mxu0 %v2762
    %2816 = vmatprep.subr.mxu0 0.0
    %2817 = vmatpush1.msra.mxu0 %v2763
    %2818 = vmatprep.subr.mxu0 0.0
    %2819 = vmatpush1.msra.mxu0 %v2764
    %2820 = vmatprep.subr.mxu0 0.0
    %2821 = vmatpush1.msra.mxu0 %v2765
    %2822 = vmatprep.subr.mxu0 0.0
    %2823 = vmatpush1.msra.mxu0 0.0
    %2824 = vmatprep.subr.mxu0 0.0
    %2825 = vmatpush1.msra.mxu0 0.0
    %2826 = vmatprep.subr.mxu0 0.0
    %2827 = vmatpush1.msra.mxu0 0.0
    %2828 = vmatprep.subr.mxu0 0.0
    %2829 = vmatpush1.msra.mxu0 0.0
    %2830 = vmatprep.subr.mxu0 0.0
    %2831 = vmatpush1.msra.mxu0 0.0
    %2832 = vmatprep.subr.mxu0 0.0
    %2833 = vmatpush1.msra.mxu0 0.0
    %2834 = vmatprep.subr.mxu0 0.0
    %2835 = vmatpush1.msra.mxu0 0.0
    %2836 = vmatprep.subr.mxu0 0.0
    %2837 = vmatpush1.msra.mxu0 0.0
    %2838 = vmatprep.subr.mxu0 0.0
    %2839 = vmatpush1.msra.mxu0 0.0
    %2840 = vmatprep.subr.mxu0 0.0
    %2841 = vmatpush1.msra.mxu0 0.0
    %2842 = vmatprep.subr.mxu0 0.0
    %2843 = vmatpush1.msra.mxu0 0.0
    %2844 = vmatprep.subr.mxu0 0.0
    %2845 = vmatpush1.msra.mxu0 0.0
    %2846 = vmatprep.subr.mxu0 0.0
    %2847 = vmatpush1.msra.mxu0 0.0
    %2848 = vmatprep.subr.mxu0 0.0
    %2849 = vmatpush1.msra.mxu0 0.0
    %2850 = vmatprep.subr.mxu0 0.0
    %2851 = vmatpush1.msra.mxu0 0.0
    %2852 = vmatprep.subr.mxu0 0.0
    %2853 = vmatpush1.msra.mxu0 0.0
    %2854 = vmatprep.subr.mxu0 0.0
    %2855 = vmatpush1.msra.mxu0 0.0
    %2856 = vmatprep.subr.mxu0 0.0
    %2857 = vmatpush1.msra.mxu0 0.0
    %2858 = vmatprep.subr.mxu0 0.0
    %2859 = vmatpush1.msra.mxu0 0.0
    %2860 = vmatprep.subr.mxu0 0.0
    %2861 = vmatpush1.msra.mxu0 0.0
    %2862 = vmatprep.subr.mxu0 0.0
    %2863 = vmatpush1.msra.mxu0 0.0
    %2864 = vmatprep.subr.mxu0 0.0
    %2865 = vmatpush1.msra.mxu0 0.0
    %2866 = vmatprep.subr.mxu0 0.0
    %2867 = vmatpush1.msra.mxu0 0.0
    %2868 = vmatprep.subr.mxu0 0.0
    %2869 = vmatpush1.msra.mxu0 0.0
    %2870 = vmatprep.subr.mxu0 0.0
    %2871 = vmatpush1.msra.mxu0 0.0
    %2872 = vmatprep.subr.mxu0 0.0
    %2873 = vmatpush1.msra.mxu0 0.0
    %2874 = vmatprep.subr.mxu0 0.0
    %2875 = vmatpush1.msra.mxu0 0.0
    %2876 = vmatprep.subr.mxu0 0.0
    %2877 = vmatpush1.msra.mxu0 0.0
    %2878 = vmatprep.mubr.f32.mxu0 0.0
    %2879 = vmatmul.mubr.f32.gmra.mrb[0].mxu0 %v2767
    %v2880 = vpop.f32.mrb[0].mxu0
    %v2881 = vadd.f32 0.0, %v2880
    %v2882 = vpop.f32.mrb[0].mxu0
    %2883 = vmatprep.mubr.f32.mxu0 0.0
    %2884 = vmatmul.mubr.f32.gmra.mrb[0].mxu0 %v2770
    %v2885 = vpop.f32.mrb[0].mxu0
    %v2886 = vadd.f32 0.0, %v2885
    %v2887 = vpop.f32.mrb[0].mxu0
    %2888 = vmatprep.mubr.f32.mxu0 0.0
    %2889 = vmatmul.mubr.f32.gmra.mrb[0].mxu0 %v2773
    %v2890 = vpop.f32.mrb[0].mxu0
    %v2891 = vadd.f32 0.0, %v2890
    %v2892 = vpop.f32.mrb[0].mxu0
    %2893 = vmatprep.mubr.f32.mxu0 0.0
    %2894 = vmatmul.mubr.f32.gmra.mrb[0].mxu0 %v2776
    %v2895 = vpop.f32.mrb[0].mxu0
    %v2896 = vadd.f32 0.0, %v2895
    %v2897 = vpop.f32.mrb[0].mxu0
    %2898 = vmatprep.mubr.f32.mxu0 0.0
    %2899 = vmatmul.mubr.f32.gmra.mrb[0].mxu0 %v2779
    %v2900 = vpop.f32.mrb[0].mxu0
    %v2901 = vadd.f32 0.0, %v2900
    %v2902 = vpop.f32.mrb[0].mxu0
    %2903 = vmatprep.mubr.f32.mxu0 0.0
    %2904 = vmatmul.mubr.f32.gmra.mrb[0].mxu0 %v2782
    %v2905 = vpop.f32.mrb[0].mxu0
    %v2906 = vadd.f32 0.0, %v2905
    %v2907 = vpop.f32.mrb[0].mxu0
    %2908 = vmatprep.mubr.f32.mxu0 0.0
    %2909 = vmatmul.mubr.f32.gmra.mrb[0].mxu0 %v2785
    %v2910 = vpop.f32.mrb[0].mxu0
    %v2911 = vadd.f32 0.0, %v2910
    %v2912 = vpop.f32.mrb[0].mxu0
    %2913 = vmatprep.mubr.f32.mxu0 0.0
    %2914 = vmatmul.mubr.f32.gmra.mrb[0].mxu0 %v2788
    %v2915 = vpop.f32.mrb[0].mxu0
    %v2916 = vadd.f32 0.0, %v2915
    %v2917 = vpop.f32.mrb[0].mxu0
    %2918 = vmatprep.mubr.f32.mxu0 0.0
    %2919 = vmatmul.mubr.f32.gmra.mrb[0].mxu0 %v2791
    %v2920 = vpop.f32.mrb[0].mxu0
    %v2921 = vadd.f32 0.0, %v2920
    %v2922 = vpop.f32.mrb[0].mxu0
    %2923 = vmatprep.mubr.f32.mxu0 0.0
    %2924 = vmatmul.mubr.f32.gmra.mrb[0].mxu0 %v2794
    %v2925 = vpop.f32.mrb[0].mxu0
    %v2926 = vadd.f32 0.0, %v2925
    %v2927 = vpop.f32.mrb[0].mxu0
    %2928 = vmatprep.mubr.f32.mxu0 0.0
    %2929 = vmatmul.mubr.f32.gmra.mrb[0].mxu0 %v2797
    %v2930 = vpop.f32.mrb[0].mxu0
    %v2931 = vadd.f32 0.0, %v2930
    %v2932 = vpop.f32.mrb[0].mxu0
    %2933 = vmatprep.mubr.f32.mxu0 0.0
    %2934 = vmatmul.mubr.f32.gmra.mrb[0].mxu0 %v2800
    %v2935 = vpop.f32.mrb[0].mxu0
    %v2936 = vadd.f32 0.0, %v2935
    %v2937 = vpop.f32.mrb[0].mxu0
    %2938 = vmatprep.mubr.f32.mxu0 0.0
    %2939 = vmatmul.mubr.f32.gmra.mrb[0].mxu0 %v2803
    %v2940 = vpop.f32.mrb[0].mxu0
    %v2941 = vadd.f32 0.0, %v2940
    %v2942 = vpop.f32.mrb[0].mxu0
    %2943 = vmatprep.mubr.f32.mxu0 0.0
    %2944 = vmatmul.mubr.f32.gmra.mrb[0].mxu0 %v2806
    %v2945 = vpop.f32.mrb[0].mxu0
    %v2946 = vadd.f32 0.0, %v2945
    %v2947 = vpop.f32.mrb[0].mxu0
    %2948 = vmatprep.mubr.f32.mxu0 0.0
    %2949 = vmatmul.mubr.f32.gmra.mrb[0].mxu0 %v2809
    %v2950 = vpop.f32.mrb[0].mxu0
    %v2951 = vadd.f32 0.0, %v2950
    %v2952 = vpop.f32.mrb[0].mxu0
    %2953 = vmatprep.mubr.f32.mxu0 0.0
    %2954 = vmatmul.mubr.f32.gmra.mrb[0].mxu0 %v2812
    %v2955 = vpop.f32.mrb[0].mxu0
    %v2956 = vadd.f32 0.0, %v2955
    %v2957 = vpop.f32.mrb[0].mxu0
    %2958 = vdwg.mxu0
    %2959 = vst.msk [vmem:[%s10] sm:$0xff] %vm121, %v2881
    %2960 = vst.msk [vmem:[%s10 + $0x8] sm:$0xff] %vm121, %v2886
    %2961 = vst.msk [vmem:[%s10 + $0x10] sm:$0xff] %vm121, %v2891
    %2962 = vst.msk [vmem:[%s10 + $0x18] sm:$0xff] %vm121, %v2896
    %2963 = vst.msk [vmem:[%s10 + $0x20] sm:$0xff] %vm121, %v2901
    %2964 = vst.msk [vmem:[%s10 + $0x28] sm:$0xff] %vm121, %v2906
    %2965 = vst.msk [vmem:[%s10 + $0x30] sm:$0xff] %vm121, %v2911
    %2966 = vst.msk [vmem:[%s10 + $0x38] sm:$0xff] %vm121, %v2916
    %2967 = vst.msk [vmem:[%s10 + $0x40] sm:$0xff] %vm121, %v2921
    %2968 = vst.msk [vmem:[%s10 + $0x48] sm:$0xff] %vm121, %v2926
    %2969 = vst.msk [vmem:[%s10 + $0x50] sm:$0xff] %vm121, %v2931
    %2970 = vst.msk [vmem:[%s10 + $0x58] sm:$0xff] %vm121, %v2936
    %2971 = vst.msk [vmem:[%s10 + $0x60] sm:$0xff] %vm121, %v2941
    %2972 = vst.msk [vmem:[%s10 + $0x68] sm:$0xff] %vm121, %v2946
    %2973 = vst.msk [vmem:[%s10 + $0x70] sm:$0xff] %vm121, %v2951
    %2974 = vst.msk [vmem:[%s10 + $0x78] sm:$0xff] %vm121, %v2956
    // Predicated region
    $region62: #{tpu_custom_call.1} parent=1 // pred_check
      _
    $region63: #{tpu_custom_call.1} parent=1 // pred_check_branch
      %2976 = sbr.rel (0) target = $region65
    $region64: #{tpu_custom_call.1} parent=1 // pred_region
      _
    $region65: #{tpu_custom_call.1} parent=1 // pred_fallthru
      _
    // Predicated region
    $region66: #{tpu_custom_call.1} parent=1 // pred_check
      _
    $region67: #{tpu_custom_call.1} parent=1 // pred_check_branch
      %2978 = sbr.rel (0) target = $region69
    $region68: #{tpu_custom_call.1} parent=1 // pred_region
      _
    $region69: #{tpu_custom_call.1} parent=1 // pred_fallthru
      _
    %2979 = vsyncpa [#allocation3], 1
    %2980 = vsyncpa [#allocation5], 1
    %2981 = vsyncpa [#allocation8], 1

</llo_original>
